<compile_context>
chip_gen: v7x
topology: tpu7x:2x2x1
jax: 0.10.0
libtpu: 0.0.40
codegen_flags: <defaults>
</compile_context>

<pallas_src>
import functools

import jax
import jax.numpy as jnp
from jax.experimental import pallas as pl
from jax.experimental.pallas import tpu as pltpu


def _round_up(x, m):
    return ((x + m - 1) // m) * m


# ----------------------------------------------------------------------------
# Pallas kernels
# ----------------------------------------------------------------------------
def _parity_gemm_kernel(w_ref, x_ref, b_ref, o_ref, *, act):
    """o[b, :, n-tile] = act(Wbig @ patches[b][:, n-tile] + bias).

    Wbig : [4*Cout, 4*Cin]  bf16, fully resident (block index never changes)
    x    : [1, 4*Cin, tn]   bf16 patch tile (lane-dense)
    bias : [4*Cout, 1]      f32  (per (parity, cout) row)
    o    : [1, 4*Cout, tn]  bf16 (GN layers) or f32 + tanh (final layer)

    One K = 4*Cin contraction (fills the 256-deep MXU on v6e/v7x) with f32
    accumulation; bias / tanh fused into the epilogue, single rounding.
    """
    acc = jnp.dot(w_ref[...], x_ref[0], preferred_element_type=jnp.float32)
    acc = acc + b_ref[...]
    if act == "tanh":
        acc = jnp.tanh(acc)
    o_ref[0] = acc.astype(o_ref.dtype)


def _gn_lrelu_kernel(x_ref, gamma_ref, beta_ref, ind_ref, o_ref, *,
                     eps, slope, inv_n):
    """GroupNorm + LeakyReLU on a per-sample [C, HW] block.

    Channels on sublanes (C in {48,32,16}: perfectly tiled), spatial on lanes.
    Per-channel lane sums -> tiny [C,1] partials; the cross-channel group
    reduction + broadcast-back is a single [C,C] indicator matvec (negligible
    MXU work).  Two-pass variance in f32 for numerical fidelity.
    """
    x = x_ref[0].astype(jnp.float32)                               # [C, HW]
    s = jnp.sum(x, axis=1, keepdims=True)                          # [C, 1]
    mean = jnp.dot(ind_ref[...], s,
                   preferred_element_type=jnp.float32) * inv_n     # [C, 1]
    xc = x - mean
    ssq = jnp.sum(xc * xc, axis=1, keepdims=True)                  # [C, 1]
    var = jnp.dot(ind_ref[...], ssq,
                  preferred_element_type=jnp.float32) * inv_n      # [C, 1]
    inv = jax.lax.rsqrt(var + eps)
    y = xc * inv * gamma_ref[...] + beta_ref[...]
    y = jnp.where(y >= 0, y, slope * y)                            # LeakyReLU(0.01)
    o_ref[0] = y.astype(o_ref.dtype)


# ----------------------------------------------------------------------------
# Pallas wrappers
# ----------------------------------------------------------------------------
def _parity_gemm(wbig, patches, bias_rows, *, out_dtype, act, tn_target=2048):
    """wbig: [M, K] bf16; patches: [B, K, N] bf16 -> [B, M, Npad] out_dtype."""
    M, K = wbig.shape
    B, K2, N = patches.shape
    assert K == K2
    n128 = _round_up(N, 128)                     # lane-dense stores, always
    if n128 <= tn_target:
        tn, n_pad = n128, n128
    else:
        tn = tn_target
        n_pad = _round_up(N, tn)
    if n_pad != N:
        patches = jnp.pad(patches, ((0, 0), (0, 0), (0, n_pad - N)))

    # Working set (double-buffered x + out, resident W) stays well under the
    # 32 MiB scoped VMEM default of every generation (incl. v7x's 64 MiB phys).
    return pl.pallas_call(
        functools.partial(_parity_gemm_kernel, act=act),
        out_shape=jax.ShapeDtypeStruct((B, M, n_pad), out_dtype),
        grid=(B, n_pad // tn),                    # N innermost: W never re-DMAd
        in_specs=[
            pl.BlockSpec((M, K), lambda b, n: (0, 0)),         # resident weight
            pl.BlockSpec((1, K, tn), lambda b, n: (b, 0, n)),
            pl.BlockSpec((M, 1), lambda b, n: (0, 0)),
        ],
        out_specs=pl.BlockSpec((1, M, tn), lambda b, n: (b, 0, n)),
        compiler_params=pltpu.CompilerParams(
            dimension_semantics=("parallel", "parallel"),
            vmem_limit_bytes=32 * 1024 * 1024),
    )(wbig, patches, bias_rows)


def _groupnorm_lrelu(x, gamma, beta, ind, groups, *, eps=1e-5, slope=0.01):
    """x: [B, C, HW] bf16; gamma/beta: [C,1] f32; ind: [C,C] f32 -> bf16."""
    B, C, HW = x.shape
    inv_n = 1.0 / float((C // groups) * HW)
    return pl.pallas_call(
        functools.partial(_gn_lrelu_kernel, eps=eps, slope=slope, inv_n=inv_n),
        out_shape=jax.ShapeDtypeStruct((B, C, HW), jnp.bfloat16),
        grid=(B,),
        in_specs=[
            pl.BlockSpec((1, C, HW), lambda b: (b, 0, 0)),
            pl.BlockSpec((C, 1), lambda b: (0, 0)),
            pl.BlockSpec((C, 1), lambda b: (0, 0)),
            pl.BlockSpec((C, C), lambda b: (0, 0)),
        ],
        out_specs=pl.BlockSpec((1, C, HW), lambda b: (b, 0, 0)),
        compiler_params=pltpu.CompilerParams(dimension_semantics=("parallel",)),
    )(x, gamma, beta, ind)


# ----------------------------------------------------------------------------
# XLA layout glue (thin copy fusions between Pallas calls)
# ----------------------------------------------------------------------------
def _build_patches(x):
    """x: [B, Cin, H, W] -> Patches [B, 4*Cin, (H+1)*(W+1)].

    Rows ordered (dy, dx, ci); P(dy,dx)[ci, tt, ss] = x[ci, tt+dy-1, ss+dx-1]
    (zero outside), i.e. four 1-pixel-shifted, zero-padded copies of x.
    """
    B, Cin, H, W = x.shape
    shifts = [jnp.pad(x, ((0, 0), (0, 0), (1 - dy, dy), (1 - dx, dx)))
              for dy in (0, 1) for dx in (0, 1)]
    p = jnp.stack(shifts, axis=1)                 # [B, 4, Cin, H+1, W+1]
    return p.reshape(B, 4 * Cin, (H + 1) * (W + 1))


def _depth_to_space_crop(out, cout, h, w):
    """out: [B, 4*Cout, Npad], rows ordered (a, b, co), cols (tt, ss).

    y[:, co, 2*tt-1+a, 2*ss-1+b] = out[:, (a,b,co), (tt,ss)]; crop to [2H, 2W].
    """
    bsz = out.shape[0]
    hp, wp = h + 1, w + 1
    o = out[:, :, :hp * wp].reshape(bsz, 2, 2, cout, hp, wp)
    o = jnp.transpose(o, (0, 3, 4, 1, 5, 2)).reshape(bsz, cout, 2 * hp, 2 * wp)
    return o[:, :, 1:1 + 2 * h, 1:1 + 2 * w]


# ----------------------------------------------------------------------------
# Decoder forward
# ----------------------------------------------------------------------------
def decoder_forward(z, params, input_shape, in_channels, num_groups=8):
    F_, T_ = input_shape
    Fp, Tp = F_ // 16, T_ // 16
    B = z.shape[0]

    # fc: M = batch is tiny -> launch-overhead dominated in Pallas; plain XLA dot.
    x = jnp.dot(z, params["fc_w_t"]) + params["fc_b"]           # [B, 64*Fp*Tp]
    x = x.reshape(B, 64, Fp, Tp).astype(jnp.bfloat16)           # channels-major

    H, W = Fp, Tp
    chans = [64, 48, 32, 16, in_channels]
    for i in range(4):
        cout = chans[i + 1]
        last = (i == 3)
        patches = _build_patches(x)                             # [B, 4Cin, Np]
        out = _parity_gemm(params[f"deconv{i}_wbig"], patches,
                           params[f"deconv{i}_bias_rows"],
                           out_dtype=jnp.float32 if last else jnp.bfloat16,
                           act="tanh" if last else "none")      # [B, 4Cout, Npad]
        y = _depth_to_space_crop(out, cout, H, W)               # [B, Cout, 2H, 2W]
        H, W = 2 * H, 2 * W
        if not last:
            g = min(num_groups, cout)
            yn = _groupnorm_lrelu(y.reshape(B, cout, H * W),
                                  params[f"gn{i}_gamma"],
                                  params[f"gn{i}_beta"],
                                  params[f"gn{i}_ind"], g)
            x = yn.reshape(B, cout, H, W)
            # Dropout2d -> identity in eval mode.
        else:
            x = y                                               # f32, already tanh'd
    return x.reshape(B, in_channels, F_, T_)


# ----------------------------------------------------------------------------
# Parameter handling
# ----------------------------------------------------------------------------
def prepare_params(raw, input_shape, in_channels, num_groups=8):
    """Precompute matmul-ready weight layouts once (not per forward call)."""
    del input_shape
    p = {"fc_w_t": raw["fc_w"].T.astype(jnp.float32),           # [latent, 64*Fp*Tp]
         "fc_b": raw["fc_b"].astype(jnp.float32)}
    chans = [64, 48, 32, 16, in_channels]
    for i in range(4):
        cin, cout = chans[i], chans[i + 1]
        w = raw[f"deconv{i}_w"]                                 # (Cin, Cout, 4, 4)
        # Output-parity GEMM weight:
        #   Wbig[(a,b,co), (dy,dx,ci)] = w[ci, co, 2-2*dy+a, 2-2*dx+b]
        row_blocks = []
        for a in (0, 1):
            for b_ in (0, 1):
                col_blocks = [w[:, :, 2 - 2 * dy + a, 2 - 2 * dx + b_].T
                              for dy in (0, 1) for dx in (0, 1)]  # each [Cout, Cin]
                row_blocks.append(jnp.concatenate(col_blocks, axis=1))
        p[f"deconv{i}_wbig"] = jnp.concatenate(row_blocks, axis=0).astype(jnp.bfloat16)
        p[f"deconv{i}_bias_rows"] = (
            jnp.tile(raw[f"deconv{i}_b"], 4).reshape(4 * cout, 1).astype(jnp.float32))
        if i < 3:
            g = min(num_groups, cout)
            cpg = cout // g
            gid = jnp.arange(cout) // cpg
            p[f"gn{i}_ind"] = (gid[:, None] == gid[None, :]).astype(jnp.float32)
            p[f"gn{i}_gamma"] = raw[f"gn{i}_gamma"].reshape(cout, 1).astype(jnp.float32)
            p[f"gn{i}_beta"] = raw[f"gn{i}_beta"].reshape(cout, 1).astype(jnp.float32)
    return p


def init_raw_params(key, input_shape, in_channels, latent_dim):
    F_, T_ = input_shape
    Fp, Tp = F_ // 16, T_ // 16
    flat = 64 * Fp * Tp
    keys = jax.random.split(key, 16)
    p = {}
    p["fc_w"] = 0.05 * jax.random.normal(keys[0], (flat, latent_dim), jnp.float32)
    p["fc_b"] = 0.05 * jax.random.normal(keys[1], (flat,), jnp.float32)
    chans = [64, 48, 32, 16, in_channels]
    ki = 2
    for i in range(4):
        cin, cout = chans[i], chans[i + 1]
        # PyTorch ConvTranspose2d weight layout: (in_channels, out_channels, kH, kW)
        p[f"deconv{i}_w"] = 0.05 * jax.random.normal(keys[ki], (cin, cout, 4, 4),
                                                     jnp.float32)
        p[f"deconv{i}_b"] = 0.05 * jax.random.normal(keys[ki + 1], (cout,), jnp.float32)
        ki += 2
        if i < 3:
            p[f"gn{i}_gamma"] = jnp.ones((cout,), jnp.float32)
            p[f"gn{i}_beta"] = jnp.zeros((cout,), jnp.float32)
    return p


if __name__ == "__main__":
    # small shapes: F=T=32 (must be divisible by 16), latent_dim=16, batch=2
    input_shape = (32, 32)
    in_channels = 2
    latent_dim = 16
    B = 2

    key = jax.random.PRNGKey(0)
    k_param, k_z = jax.random.split(key)
    raw = init_raw_params(k_param, input_shape, in_channels, latent_dim)
    params = prepare_params(raw, input_shape, in_channels, num_groups=8)
    z = jax.random.normal(k_z, (B, latent_dim), jnp.float32)

    fwd = jax.jit(functools.partial(decoder_forward,
                                    input_shape=input_shape,
                                    in_channels=in_channels,
                                    num_groups=8))
    out = fwd(z, params)
    out = jax.block_until_ready(out)

    assert out.shape == (B, in_channels, input_shape[0], input_shape[1]), out.shape
    assert bool(jnp.all(jnp.isfinite(out)))
    assert bool(jnp.all(jnp.abs(out) <= 1.0))      # tanh output range
    print("KERNEL_OK")
</pallas_src>

<mosaic_0001>
module attributes {stable_mosaic.version = 11 : i64} {
  func.func @_parity_gemm_kernel(%arg0: i32, %arg1: i32, %arg2: memref<192x256xbf16, #tpu.memory_space<vmem>>, %arg3: memref<1x256x128xbf16, #tpu.memory_space<vmem>>, %arg4: memref<192x1xf32, #tpu.memory_space<vmem>>, %arg5: memref<1x192x128xbf16, #tpu.memory_space<vmem>>) attributes {dimension_semantics = [#tpu.dimension_semantics<parallel>, #tpu.dimension_semantics<parallel>], iteration_bounds = array<i64: 2, 1>, scalar_prefetch = 0 : i64, scratch_operands = 0 : i64, tpu.core_type = #tpu.core_type<tc>, window_params = [{pipeline_mode = #tpu.pipeline_mode<synchronous>, transform_indices = @transform_0, window_bounds = array<i64: 192, 256>}, {transform_indices = @transform_1, window_bounds = array<i64: 1, 256, 128>}, {pipeline_mode = #tpu.pipeline_mode<synchronous>, transform_indices = @transform_2, window_bounds = array<i64: 192, 1>}, {transform_indices = @transform_3, window_bounds = array<i64: 1, 192, 128>}]} {
    %c0 = arith.constant 0 : index
    %c0_0 = arith.constant 0 : index
    %0 = vector.load %arg2[%c0, %c0_0] : memref<192x256xbf16, #tpu.memory_space<vmem>>, vector<192x256xbf16>
    %c0_1 = arith.constant 0 : index
    %c0_2 = arith.constant 0 : index
    %c0_3 = arith.constant 0 : index
    %1 = vector.load %arg3[%c0_1, %c0_2, %c0_3] : memref<1x256x128xbf16, #tpu.memory_space<vmem>>, vector<1x256x128xbf16>
    %2 = vector.shape_cast %1 : vector<1x256x128xbf16> to vector<256x128xbf16>
    %cst = arith.constant dense<0.000000e+00> : vector<192x128xf32>
    %3 = tpu.matmul %0, %2, %cst {dimension_numbers = #tpu.dot_dimension_numbers<[1], [0], [0], [1], [0, 0, 1, 1], [], []>} : vector<192x256xbf16>, vector<256x128xbf16>, vector<192x128xf32> -> vector<192x128xf32>
    %c0_4 = arith.constant 0 : index
    %c0_5 = arith.constant 0 : index
    %4 = vector.load %arg4[%c0_4, %c0_5] : memref<192x1xf32, #tpu.memory_space<vmem>>, vector<192x1xf32>
    %5 = vector.broadcast %4 : vector<192x1xf32> to vector<192x128xf32>
    %6 = arith.addf %3, %5 : vector<192x128xf32>
    %7 = arith.truncf %6 : vector<192x128xf32> to vector<192x128xbf16>
    %c0_6 = arith.constant 0 : index
    %c0_7 = arith.constant 0 : index
    %c0_8 = arith.constant 0 : index
    %8 = vector.load %arg5[%c0_6, %c0_7, %c0_8] : memref<1x192x128xbf16, #tpu.memory_space<vmem>>, vector<1x192x128xbf16>
    %9 = vector.shape_cast %8 : vector<1x192x128xbf16> to vector<192x128xbf16>
    %10 = vector.shape_cast %7 : vector<192x128xbf16> to vector<1x192x128xbf16>
    tpu.vector_store %arg5[%c0_6, %c0_7, %c0_8], %10 {strides = array<i32>} : memref<1x192x128xbf16, #tpu.memory_space<vmem>>, vector<1x192x128xbf16>,
    return
  }
  func.func @transform_0(%arg0: i32, %arg1: i32) -> (i32, i32) {
    %c0_i32 = arith.constant 0 : i32
    %c0_i32_0 = arith.constant 0 : i32
    %c0_i32_1 = arith.constant 0 : i32
    return %c0_i32, %c0_i32_0 : i32, i32
  }
  func.func @transform_1(%arg0: i32, %arg1: i32) -> (i32, i32, i32) {
    %c0_i32 = arith.constant 0 : i32
    %c0_i32_0 = arith.constant 0 : i32
    return %arg0, %c0_i32, %arg1 : i32, i32, i32
  }
  func.func @transform_2(%arg0: i32, %arg1: i32) -> (i32, i32) {
    %c0_i32 = arith.constant 0 : i32
    %c0_i32_0 = arith.constant 0 : i32
    %c0_i32_1 = arith.constant 0 : i32
    return %c0_i32, %c0_i32_0 : i32, i32
  }
  func.func @transform_3(%arg0: i32, %arg1: i32) -> (i32, i32, i32) {
    %c0_i32 = arith.constant 0 : i32
    %c0_i32_0 = arith.constant 0 : i32
    return %arg0, %c0_i32, %arg1 : i32, i32, i32
  }
}

module attributes {stable_mosaic.version = 11 : i64} {
  func.func @_gn_lrelu_kernel(%arg0: i32, %arg1: memref<1x48x16xbf16, #tpu.memory_space<vmem>>, %arg2: memref<48x1xf32, #tpu.memory_space<vmem>>, %arg3: memref<48x1xf32, #tpu.memory_space<vmem>>, %arg4: memref<48x48xf32, #tpu.memory_space<vmem>>, %arg5: memref<1x48x16xbf16, #tpu.memory_space<vmem>>) attributes {dimension_semantics = [#tpu.dimension_semantics<parallel>], iteration_bounds = array<i64: 2>, scalar_prefetch = 0 : i64, scratch_operands = 0 : i64, tpu.core_type = #tpu.core_type<tc>, window_params = [{transform_indices = @transform_0, window_bounds = array<i64: 1, 48, 16>}, {pipeline_mode = #tpu.pipeline_mode<synchronous>, transform_indices = @transform_1, window_bounds = array<i64: 48, 1>}, {pipeline_mode = #tpu.pipeline_mode<synchronous>, transform_indices = @transform_2, window_bounds = array<i64: 48, 1>}, {pipeline_mode = #tpu.pipeline_mode<synchronous>, transform_indices = @transform_3, window_bounds = array<i64: 48, 48>}, {transform_indices = @transform_4, window_bounds = array<i64: 1, 48, 16>}]} {
    %c0 = arith.constant 0 : index
    %c0_0 = arith.constant 0 : index
    %c0_1 = arith.constant 0 : index
    %0 = vector.load %arg1[%c0, %c0_0, %c0_1] : memref<1x48x16xbf16, #tpu.memory_space<vmem>>, vector<1x48x16xbf16>
    %1 = vector.shape_cast %0 : vector<1x48x16xbf16> to vector<48x16xbf16>
    %2 = arith.extf %1 : vector<48x16xbf16> to vector<48x16xf32>
    %cst = arith.constant dense<0.000000e+00> : vector<48xf32>
    %3 = vector.multi_reduction <add>, %2, %cst [1] : vector<48x16xf32> to vector<48xf32>
    %4 = vector.shape_cast %3 : vector<48xf32> to vector<48x1xf32>
    %c0_2 = arith.constant 0 : index
    %c0_3 = arith.constant 0 : index
    %5 = vector.load %arg4[%c0_2, %c0_3] : memref<48x48xf32, #tpu.memory_space<vmem>>, vector<48x48xf32>
    %cst_4 = arith.constant dense<0.000000e+00> : vector<48x1xf32>
    %6 = tpu.matmul %5, %4, %cst_4 {dimension_numbers = #tpu.dot_dimension_numbers<[1], [0], [0], [1], [0, 0, 1, 1], [], []>} : vector<48x48xf32>, vector<48x1xf32>, vector<48x1xf32> -> vector<48x1xf32>
    %cst_5 = arith.constant 0.010416667 : f32
    %7 = vector.broadcast %cst_5 : f32 to vector<48x1xf32>
    %8 = arith.mulf %6, %7 : vector<48x1xf32>
    %9 = vector.broadcast %8 : vector<48x1xf32> to vector<48x16xf32>
    %10 = arith.subf %2, %9 : vector<48x16xf32>
    %11 = arith.mulf %10, %10 : vector<48x16xf32>
    %cst_6 = arith.constant dense<0.000000e+00> : vector<48xf32>
    %12 = vector.multi_reduction <add>, %11, %cst_6 [1] : vector<48x16xf32> to vector<48xf32>
    %13 = vector.shape_cast %12 : vector<48xf32> to vector<48x1xf32>
    %c0_7 = arith.constant 0 : index
    %c0_8 = arith.constant 0 : index
    %14 = vector.load %arg4[%c0_7, %c0_8] : memref<48x48xf32, #tpu.memory_space<vmem>>, vector<48x48xf32>
    %cst_9 = arith.constant dense<0.000000e+00> : vector<48x1xf32>
    %15 = tpu.matmul %14, %13, %cst_9 {dimension_numbers = #tpu.dot_dimension_numbers<[1], [0], [0], [1], [0, 0, 1, 1], [], []>} : vector<48x48xf32>, vector<48x1xf32>, vector<48x1xf32> -> vector<48x1xf32>
    %cst_10 = arith.constant 0.010416667 : f32
    %16 = vector.broadcast %cst_10 : f32 to vector<48x1xf32>
    %17 = arith.mulf %15, %16 : vector<48x1xf32>
    %cst_11 = arith.constant 9.99999974E-6 : f32
    %18 = vector.broadcast %cst_11 : f32 to vector<48x1xf32>
    %19 = arith.addf %17, %18 : vector<48x1xf32>
    %20 = math.rsqrt %19 : vector<48x1xf32>
    %21 = vector.broadcast %20 : vector<48x1xf32> to vector<48x16xf32>
    %22 = arith.mulf %10, %21 : vector<48x16xf32>
    %c0_12 = arith.constant 0 : index
    %c0_13 = arith.constant 0 : index
    %23 = vector.load %arg2[%c0_12, %c0_13] : memref<48x1xf32, #tpu.memory_space<vmem>>, vector<48x1xf32>
    %24 = vector.broadcast %23 : vector<48x1xf32> to vector<48x16xf32>
    %25 = arith.mulf %22, %24 : vector<48x16xf32>
    %c0_14 = arith.constant 0 : index
    %c0_15 = arith.constant 0 : index
    %26 = vector.load %arg3[%c0_14, %c0_15] : memref<48x1xf32, #tpu.memory_space<vmem>>, vector<48x1xf32>
    %27 = vector.broadcast %26 : vector<48x1xf32> to vector<48x16xf32>
    %28 = arith.addf %25, %27 : vector<48x16xf32>
    %cst_16 = arith.constant 0.000000e+00 : f32
    %29 = vector.broadcast %cst_16 : f32 to vector<48x16xf32>
    %30 = arith.cmpf oge, %28, %29 : vector<48x16xf32>
    %cst_17 = arith.constant 0.00999999977 : f32
    %31 = vector.broadcast %cst_17 : f32 to vector<48x16xf32>
    %32 = arith.mulf %31, %28 : vector<48x16xf32>
    %33 = arith.select %30, %28, %32 : vector<48x16xi1>, vector<48x16xf32>
    %34 = arith.truncf %33 : vector<48x16xf32> to vector<48x16xbf16>
    %c0_18 = arith.constant 0 : index
    %c0_19 = arith.constant 0 : index
    %c0_20 = arith.constant 0 : index
    %35 = vector.load %arg5[%c0_18, %c0_19, %c0_20] : memref<1x48x16xbf16, #tpu.memory_space<vmem>>, vector<1x48x16xbf16>
    %36 = vector.shape_cast %35 : vector<1x48x16xbf16> to vector<48x16xbf16>
    %37 = vector.shape_cast %34 : vector<48x16xbf16> to vector<1x48x16xbf16>
    tpu.vector_store %arg5[%c0_18, %c0_19, %c0_20], %37 {strides = array<i32>} : memref<1x48x16xbf16, #tpu.memory_space<vmem>>, vector<1x48x16xbf16>,
    return
  }
  func.func @transform_0(%arg0: i32) -> (i32, i32, i32) {
    %c0_i32 = arith.constant 0 : i32
    %c0_i32_0 = arith.constant 0 : i32
    %c0_i32_1 = arith.constant 0 : i32
    return %arg0, %c0_i32, %c0_i32_0 : i32, i32, i32
  }
  func.func @transform_1(%arg0: i32) -> (i32, i32) {
    %c0_i32 = arith.constant 0 : i32
    %c0_i32_0 = arith.constant 0 : i32
    %c0_i32_1 = arith.constant 0 : i32
    return %c0_i32, %c0_i32_0 : i32, i32
  }
  func.func @transform_2(%arg0: i32) -> (i32, i32) {
    %c0_i32 = arith.constant 0 : i32
    %c0_i32_0 = arith.constant 0 : i32
    %c0_i32_1 = arith.constant 0 : i32
    return %c0_i32, %c0_i32_0 : i32, i32
  }
  func.func @transform_3(%arg0: i32) -> (i32, i32) {
    %c0_i32 = arith.constant 0 : i32
    %c0_i32_0 = arith.constant 0 : i32
    %c0_i32_1 = arith.constant 0 : i32
    return %c0_i32, %c0_i32_0 : i32, i32
  }
  func.func @transform_4(%arg0: i32) -> (i32, i32, i32) {
    %c0_i32 = arith.constant 0 : i32
    %c0_i32_0 = arith.constant 0 : i32
    %c0_i32_1 = arith.constant 0 : i32
    return %arg0, %c0_i32, %c0_i32_0 : i32, i32, i32
  }
}

module attributes {stable_mosaic.version = 11 : i64} {
  func.func @_parity_gemm_kernel(%arg0: i32, %arg1: i32, %arg2: memref<128x192xbf16, #tpu.memory_space<vmem>>, %arg3: memref<1x192x128xbf16, #tpu.memory_space<vmem>>, %arg4: memref<128x1xf32, #tpu.memory_space<vmem>>, %arg5: memref<1x128x128xbf16, #tpu.memory_space<vmem>>) attributes {dimension_semantics = [#tpu.dimension_semantics<parallel>, #tpu.dimension_semantics<parallel>], iteration_bounds = array<i64: 2, 1>, scalar_prefetch = 0 : i64, scratch_operands = 0 : i64, tpu.core_type = #tpu.core_type<tc>, window_params = [{pipeline_mode = #tpu.pipeline_mode<synchronous>, transform_indices = @transform_0, window_bounds = array<i64: 128, 192>}, {transform_indices = @transform_1, window_bounds = array<i64: 1, 192, 128>}, {pipeline_mode = #tpu.pipeline_mode<synchronous>, transform_indices = @transform_2, window_bounds = array<i64: 128, 1>}, {transform_indices = @transform_3, window_bounds = array<i64: 1, 128, 128>}]} {
    %c0 = arith.constant 0 : index
    %c0_0 = arith.constant 0 : index
    %0 = vector.load %arg2[%c0, %c0_0] : memref<128x192xbf16, #tpu.memory_space<vmem>>, vector<128x192xbf16>
    %c0_1 = arith.constant 0 : index
    %c0_2 = arith.constant 0 : index
    %c0_3 = arith.constant 0 : index
    %1 = vector.load %arg3[%c0_1, %c0_2, %c0_3] : memref<1x192x128xbf16, #tpu.memory_space<vmem>>, vector<1x192x128xbf16>
    %2 = vector.shape_cast %1 : vector<1x192x128xbf16> to vector<192x128xbf16>
    %cst = arith.constant dense<0.000000e+00> : vector<128x128xf32>
    %3 = tpu.matmul %0, %2, %cst {dimension_numbers = #tpu.dot_dimension_numbers<[1], [0], [0], [1], [0, 0, 1, 1], [], []>} : vector<128x192xbf16>, vector<192x128xbf16>, vector<128x128xf32> -> vector<128x128xf32>
    %c0_4 = arith.constant 0 : index
    %c0_5 = arith.constant 0 : index
    %4 = vector.load %arg4[%c0_4, %c0_5] : memref<128x1xf32, #tpu.memory_space<vmem>>, vector<128x1xf32>
    %5 = vector.broadcast %4 : vector<128x1xf32> to vector<128x128xf32>
    %6 = arith.addf %3, %5 : vector<128x128xf32>
    %7 = arith.truncf %6 : vector<128x128xf32> to vector<128x128xbf16>
    %c0_6 = arith.constant 0 : index
    %c0_7 = arith.constant 0 : index
    %c0_8 = arith.constant 0 : index
    %8 = vector.load %arg5[%c0_6, %c0_7, %c0_8] : memref<1x128x128xbf16, #tpu.memory_space<vmem>>, vector<1x128x128xbf16>
    %9 = vector.shape_cast %8 : vector<1x128x128xbf16> to vector<128x128xbf16>
    %10 = vector.shape_cast %7 : vector<128x128xbf16> to vector<1x128x128xbf16>
    tpu.vector_store %arg5[%c0_6, %c0_7, %c0_8], %10 {strides = array<i32>} : memref<1x128x128xbf16, #tpu.memory_space<vmem>>, vector<1x128x128xbf16>,
    return
  }
  func.func @transform_0(%arg0: i32, %arg1: i32) -> (i32, i32) {
    %c0_i32 = arith.constant 0 : i32
    %c0_i32_0 = arith.constant 0 : i32
    %c0_i32_1 = arith.constant 0 : i32
    return %c0_i32, %c0_i32_0 : i32, i32
  }
  func.func @transform_1(%arg0: i32, %arg1: i32) -> (i32, i32, i32) {
    %c0_i32 = arith.constant 0 : i32
    %c0_i32_0 = arith.constant 0 : i32
    return %arg0, %c0_i32, %arg1 : i32, i32, i32
  }
  func.func @transform_2(%arg0: i32, %arg1: i32) -> (i32, i32) {
    %c0_i32 = arith.constant 0 : i32
    %c0_i32_0 = arith.constant 0 : i32
    %c0_i32_1 = arith.constant 0 : i32
    return %c0_i32, %c0_i32_0 : i32, i32
  }
  func.func @transform_3(%arg0: i32, %arg1: i32) -> (i32, i32, i32) {
    %c0_i32 = arith.constant 0 : i32
    %c0_i32_0 = arith.constant 0 : i32
    return %arg0, %c0_i32, %arg1 : i32, i32, i32
  }
}

module attributes {stable_mosaic.version = 11 : i64} {
  func.func @_gn_lrelu_kernel(%arg0: i32, %arg1: memref<1x32x64xbf16, #tpu.memory_space<vmem>>, %arg2: memref<32x1xf32, #tpu.memory_space<vmem>>, %arg3: memref<32x1xf32, #tpu.memory_space<vmem>>, %arg4: memref<32x32xf32, #tpu.memory_space<vmem>>, %arg5: memref<1x32x64xbf16, #tpu.memory_space<vmem>>) attributes {dimension_semantics = [#tpu.dimension_semantics<parallel>], iteration_bounds = array<i64: 2>, scalar_prefetch = 0 : i64, scratch_operands = 0 : i64, tpu.core_type = #tpu.core_type<tc>, window_params = [{transform_indices = @transform_0, window_bounds = array<i64: 1, 32, 64>}, {pipeline_mode = #tpu.pipeline_mode<synchronous>, transform_indices = @transform_1, window_bounds = array<i64: 32, 1>}, {pipeline_mode = #tpu.pipeline_mode<synchronous>, transform_indices = @transform_2, window_bounds = array<i64: 32, 1>}, {pipeline_mode = #tpu.pipeline_mode<synchronous>, transform_indices = @transform_3, window_bounds = array<i64: 32, 32>}, {transform_indices = @transform_4, window_bounds = array<i64: 1, 32, 64>}]} {
    %c0 = arith.constant 0 : index
    %c0_0 = arith.constant 0 : index
    %c0_1 = arith.constant 0 : index
    %0 = vector.load %arg1[%c0, %c0_0, %c0_1] : memref<1x32x64xbf16, #tpu.memory_space<vmem>>, vector<1x32x64xbf16>
    %1 = vector.shape_cast %0 : vector<1x32x64xbf16> to vector<32x64xbf16>
    %2 = arith.extf %1 : vector<32x64xbf16> to vector<32x64xf32>
    %cst = arith.constant dense<0.000000e+00> : vector<32xf32>
    %3 = vector.multi_reduction <add>, %2, %cst [1] : vector<32x64xf32> to vector<32xf32>
    %4 = vector.shape_cast %3 : vector<32xf32> to vector<32x1xf32>
    %c0_2 = arith.constant 0 : index
    %c0_3 = arith.constant 0 : index
    %5 = vector.load %arg4[%c0_2, %c0_3] : memref<32x32xf32, #tpu.memory_space<vmem>>, vector<32x32xf32>
    %cst_4 = arith.constant dense<0.000000e+00> : vector<32x1xf32>
    %6 = tpu.matmul %5, %4, %cst_4 {dimension_numbers = #tpu.dot_dimension_numbers<[1], [0], [0], [1], [0, 0, 1, 1], [], []>} : vector<32x32xf32>, vector<32x1xf32>, vector<32x1xf32> -> vector<32x1xf32>
    %cst_5 = arith.constant 3.906250e-03 : f32
    %7 = vector.broadcast %cst_5 : f32 to vector<32x1xf32>
    %8 = arith.mulf %6, %7 : vector<32x1xf32>
    %9 = vector.broadcast %8 : vector<32x1xf32> to vector<32x64xf32>
    %10 = arith.subf %2, %9 : vector<32x64xf32>
    %11 = arith.mulf %10, %10 : vector<32x64xf32>
    %cst_6 = arith.constant dense<0.000000e+00> : vector<32xf32>
    %12 = vector.multi_reduction <add>, %11, %cst_6 [1] : vector<32x64xf32> to vector<32xf32>
    %13 = vector.shape_cast %12 : vector<32xf32> to vector<32x1xf32>
    %c0_7 = arith.constant 0 : index
    %c0_8 = arith.constant 0 : index
    %14 = vector.load %arg4[%c0_7, %c0_8] : memref<32x32xf32, #tpu.memory_space<vmem>>, vector<32x32xf32>
    %cst_9 = arith.constant dense<0.000000e+00> : vector<32x1xf32>
    %15 = tpu.matmul %14, %13, %cst_9 {dimension_numbers = #tpu.dot_dimension_numbers<[1], [0], [0], [1], [0, 0, 1, 1], [], []>} : vector<32x32xf32>, vector<32x1xf32>, vector<32x1xf32> -> vector<32x1xf32>
    %cst_10 = arith.constant 3.906250e-03 : f32
    %16 = vector.broadcast %cst_10 : f32 to vector<32x1xf32>
    %17 = arith.mulf %15, %16 : vector<32x1xf32>
    %cst_11 = arith.constant 9.99999974E-6 : f32
    %18 = vector.broadcast %cst_11 : f32 to vector<32x1xf32>
    %19 = arith.addf %17, %18 : vector<32x1xf32>
    %20 = math.rsqrt %19 : vector<32x1xf32>
    %21 = vector.broadcast %20 : vector<32x1xf32> to vector<32x64xf32>
    %22 = arith.mulf %10, %21 : vector<32x64xf32>
    %c0_12 = arith.constant 0 : index
    %c0_13 = arith.constant 0 : index
    %23 = vector.load %arg2[%c0_12, %c0_13] : memref<32x1xf32, #tpu.memory_space<vmem>>, vector<32x1xf32>
    %24 = vector.broadcast %23 : vector<32x1xf32> to vector<32x64xf32>
    %25 = arith.mulf %22, %24 : vector<32x64xf32>
    %c0_14 = arith.constant 0 : index
    %c0_15 = arith.constant 0 : index
    %26 = vector.load %arg3[%c0_14, %c0_15] : memref<32x1xf32, #tpu.memory_space<vmem>>, vector<32x1xf32>
    %27 = vector.broadcast %26 : vector<32x1xf32> to vector<32x64xf32>
    %28 = arith.addf %25, %27 : vector<32x64xf32>
    %cst_16 = arith.constant 0.000000e+00 : f32
    %29 = vector.broadcast %cst_16 : f32 to vector<32x64xf32>
    %30 = arith.cmpf oge, %28, %29 : vector<32x64xf32>
    %cst_17 = arith.constant 0.00999999977 : f32
    %31 = vector.broadcast %cst_17 : f32 to vector<32x64xf32>
    %32 = arith.mulf %31, %28 : vector<32x64xf32>
    %33 = arith.select %30, %28, %32 : vector<32x64xi1>, vector<32x64xf32>
    %34 = arith.truncf %33 : vector<32x64xf32> to vector<32x64xbf16>
    %c0_18 = arith.constant 0 : index
    %c0_19 = arith.constant 0 : index
    %c0_20 = arith.constant 0 : index
    %35 = vector.load %arg5[%c0_18, %c0_19, %c0_20] : memref<1x32x64xbf16, #tpu.memory_space<vmem>>, vector<1x32x64xbf16>
    %36 = vector.shape_cast %35 : vector<1x32x64xbf16> to vector<32x64xbf16>
    %37 = vector.shape_cast %34 : vector<32x64xbf16> to vector<1x32x64xbf16>
    tpu.vector_store %arg5[%c0_18, %c0_19, %c0_20], %37 {strides = array<i32>} : memref<1x32x64xbf16, #tpu.memory_space<vmem>>, vector<1x32x64xbf16>,
    return
  }
  func.func @transform_0(%arg0: i32) -> (i32, i32, i32) {
    %c0_i32 = arith.constant 0 : i32
    %c0_i32_0 = arith.constant 0 : i32
    %c0_i32_1 = arith.constant 0 : i32
    return %arg0, %c0_i32, %c0_i32_0 : i32, i32, i32
  }
  func.func @transform_1(%arg0: i32) -> (i32, i32) {
    %c0_i32 = arith.constant 0 : i32
    %c0_i32_0 = arith.constant 0 : i32
    %c0_i32_1 = arith.constant 0 : i32
    return %c0_i32, %c0_i32_0 : i32, i32
  }
  func.func @transform_2(%arg0: i32) -> (i32, i32) {
    %c0_i32 = arith.constant 0 : i32
    %c0_i32_0 = arith.constant 0 : i32
    %c0_i32_1 = arith.constant 0 : i32
    return %c0_i32, %c0_i32_0 : i32, i32
  }
  func.func @transform_3(%arg0: i32) -> (i32, i32) {
    %c0_i32 = arith.constant 0 : i32
    %c0_i32_0 = arith.constant 0 : i32
    %c0_i32_1 = arith.constant 0 : i32
    return %c0_i32, %c0_i32_0 : i32, i32
  }
  func.func @transform_4(%arg0: i32) -> (i32, i32, i32) {
    %c0_i32 = arith.constant 0 : i32
    %c0_i32_0 = arith.constant 0 : i32
    %c0_i32_1 = arith.constant 0 : i32
    return %arg0, %c0_i32, %c0_i32_0 : i32, i32, i32
  }
}

module attributes {stable_mosaic.version = 11 : i64} {
  func.func @_parity_gemm_kernel(%arg0: i32, %arg1: i32, %arg2: memref<64x128xbf16, #tpu.memory_space<vmem>>, %arg3: memref<1x128x128xbf16, #tpu.memory_space<vmem>>, %arg4: memref<64x1xf32, #tpu.memory_space<vmem>>, %arg5: memref<1x64x128xbf16, #tpu.memory_space<vmem>>) attributes {dimension_semantics = [#tpu.dimension_semantics<parallel>, #tpu.dimension_semantics<parallel>], iteration_bounds = array<i64: 2, 1>, scalar_prefetch = 0 : i64, scratch_operands = 0 : i64, tpu.core_type = #tpu.core_type<tc>, window_params = [{pipeline_mode = #tpu.pipeline_mode<synchronous>, transform_indices = @transform_0, window_bounds = array<i64: 64, 128>}, {transform_indices = @transform_1, window_bounds = array<i64: 1, 128, 128>}, {pipeline_mode = #tpu.pipeline_mode<synchronous>, transform_indices = @transform_2, window_bounds = array<i64: 64, 1>}, {transform_indices = @transform_3, window_bounds = array<i64: 1, 64, 128>}]} {
    %c0 = arith.constant 0 : index
    %c0_0 = arith.constant 0 : index
    %0 = vector.load %arg2[%c0, %c0_0] : memref<64x128xbf16, #tpu.memory_space<vmem>>, vector<64x128xbf16>
    %c0_1 = arith.constant 0 : index
    %c0_2 = arith.constant 0 : index
    %c0_3 = arith.constant 0 : index
    %1 = vector.load %arg3[%c0_1, %c0_2, %c0_3] : memref<1x128x128xbf16, #tpu.memory_space<vmem>>, vector<1x128x128xbf16>
    %2 = vector.shape_cast %1 : vector<1x128x128xbf16> to vector<128x128xbf16>
    %cst = arith.constant dense<0.000000e+00> : vector<64x128xf32>
    %3 = tpu.matmul %0, %2, %cst {dimension_numbers = #tpu.dot_dimension_numbers<[1], [0], [0], [1], [0, 0, 1, 1], [], []>} : vector<64x128xbf16>, vector<128x128xbf16>, vector<64x128xf32> -> vector<64x128xf32>
    %c0_4 = arith.constant 0 : index
    %c0_5 = arith.constant 0 : index
    %4 = vector.load %arg4[%c0_4, %c0_5] : memref<64x1xf32, #tpu.memory_space<vmem>>, vector<64x1xf32>
    %5 = vector.broadcast %4 : vector<64x1xf32> to vector<64x128xf32>
    %6 = arith.addf %3, %5 : vector<64x128xf32>
    %7 = arith.truncf %6 : vector<64x128xf32> to vector<64x128xbf16>
    %c0_6 = arith.constant 0 : index
    %c0_7 = arith.constant 0 : index
    %c0_8 = arith.constant 0 : index
    %8 = vector.load %arg5[%c0_6, %c0_7, %c0_8] : memref<1x64x128xbf16, #tpu.memory_space<vmem>>, vector<1x64x128xbf16>
    %9 = vector.shape_cast %8 : vector<1x64x128xbf16> to vector<64x128xbf16>
    %10 = vector.shape_cast %7 : vector<64x128xbf16> to vector<1x64x128xbf16>
    tpu.vector_store %arg5[%c0_6, %c0_7, %c0_8], %10 {strides = array<i32>} : memref<1x64x128xbf16, #tpu.memory_space<vmem>>, vector<1x64x128xbf16>,
    return
  }
  func.func @transform_0(%arg0: i32, %arg1: i32) -> (i32, i32) {
    %c0_i32 = arith.constant 0 : i32
    %c0_i32_0 = arith.constant 0 : i32
    %c0_i32_1 = arith.constant 0 : i32
    return %c0_i32, %c0_i32_0 : i32, i32
  }
  func.func @transform_1(%arg0: i32, %arg1: i32) -> (i32, i32, i32) {
    %c0_i32 = arith.constant 0 : i32
    %c0_i32_0 = arith.constant 0 : i32
    return %arg0, %c0_i32, %arg1 : i32, i32, i32
  }
  func.func @transform_2(%arg0: i32, %arg1: i32) -> (i32, i32) {
    %c0_i32 = arith.constant 0 : i32
    %c0_i32_0 = arith.constant 0 : i32
    %c0_i32_1 = arith.constant 0 : i32
    return %c0_i32, %c0_i32_0 : i32, i32
  }
  func.func @transform_3(%arg0: i32, %arg1: i32) -> (i32, i32, i32) {
    %c0_i32 = arith.constant 0 : i32
    %c0_i32_0 = arith.constant 0 : i32
    return %arg0, %c0_i32, %arg1 : i32, i32, i32
  }
}

module attributes {stable_mosaic.version = 11 : i64} {
  func.func @_gn_lrelu_kernel(%arg0: i32, %arg1: memref<1x16x256xbf16, #tpu.memory_space<vmem>>, %arg2: memref<16x1xf32, #tpu.memory_space<vmem>>, %arg3: memref<16x1xf32, #tpu.memory_space<vmem>>, %arg4: memref<16x16xf32, #tpu.memory_space<vmem>>, %arg5: memref<1x16x256xbf16, #tpu.memory_space<vmem>>) attributes {dimension_semantics = [#tpu.dimension_semantics<parallel>], iteration_bounds = array<i64: 2>, scalar_prefetch = 0 : i64, scratch_operands = 0 : i64, tpu.core_type = #tpu.core_type<tc>, window_params = [{transform_indices = @transform_0, window_bounds = array<i64: 1, 16, 256>}, {pipeline_mode = #tpu.pipeline_mode<synchronous>, transform_indices = @transform_1, window_bounds = array<i64: 16, 1>}, {pipeline_mode = #tpu.pipeline_mode<synchronous>, transform_indices = @transform_2, window_bounds = array<i64: 16, 1>}, {pipeline_mode = #tpu.pipeline_mode<synchronous>, transform_indices = @transform_3, window_bounds = array<i64: 16, 16>}, {transform_indices = @transform_4, window_bounds = array<i64: 1, 16, 256>}]} {
    %c0 = arith.constant 0 : index
    %c0_0 = arith.constant 0 : index
    %c0_1 = arith.constant 0 : index
    %0 = vector.load %arg1[%c0, %c0_0, %c0_1] : memref<1x16x256xbf16, #tpu.memory_space<vmem>>, vector<1x16x256xbf16>
    %1 = vector.shape_cast %0 : vector<1x16x256xbf16> to vector<16x256xbf16>
    %2 = arith.extf %1 : vector<16x256xbf16> to vector<16x256xf32>
    %cst = arith.constant dense<0.000000e+00> : vector<16xf32>
    %3 = vector.multi_reduction <add>, %2, %cst [1] : vector<16x256xf32> to vector<16xf32>
    %4 = vector.shape_cast %3 : vector<16xf32> to vector<16x1xf32>
    %c0_2 = arith.constant 0 : index
    %c0_3 = arith.constant 0 : index
    %5 = vector.load %arg4[%c0_2, %c0_3] : memref<16x16xf32, #tpu.memory_space<vmem>>, vector<16x16xf32>
    %cst_4 = arith.constant dense<0.000000e+00> : vector<16x1xf32>
    %6 = tpu.matmul %5, %4, %cst_4 {dimension_numbers = #tpu.dot_dimension_numbers<[1], [0], [0], [1], [0, 0, 1, 1], [], []>} : vector<16x16xf32>, vector<16x1xf32>, vector<16x1xf32> -> vector<16x1xf32>
    %cst_5 = arith.constant 0.001953125 : f32
    %7 = vector.broadcast %cst_5 : f32 to vector<16x1xf32>
    %8 = arith.mulf %6, %7 : vector<16x1xf32>
    %9 = vector.broadcast %8 : vector<16x1xf32> to vector<16x256xf32>
    %10 = arith.subf %2, %9 : vector<16x256xf32>
    %11 = arith.mulf %10, %10 : vector<16x256xf32>
    %cst_6 = arith.constant dense<0.000000e+00> : vector<16xf32>
    %12 = vector.multi_reduction <add>, %11, %cst_6 [1] : vector<16x256xf32> to vector<16xf32>
    %13 = vector.shape_cast %12 : vector<16xf32> to vector<16x1xf32>
    %c0_7 = arith.constant 0 : index
    %c0_8 = arith.constant 0 : index
    %14 = vector.load %arg4[%c0_7, %c0_8] : memref<16x16xf32, #tpu.memory_space<vmem>>, vector<16x16xf32>
    %cst_9 = arith.constant dense<0.000000e+00> : vector<16x1xf32>
    %15 = tpu.matmul %14, %13, %cst_9 {dimension_numbers = #tpu.dot_dimension_numbers<[1], [0], [0], [1], [0, 0, 1, 1], [], []>} : vector<16x16xf32>, vector<16x1xf32>, vector<16x1xf32> -> vector<16x1xf32>
    %cst_10 = arith.constant 0.001953125 : f32
    %16 = vector.broadcast %cst_10 : f32 to vector<16x1xf32>
    %17 = arith.mulf %15, %16 : vector<16x1xf32>
    %cst_11 = arith.constant 9.99999974E-6 : f32
    %18 = vector.broadcast %cst_11 : f32 to vector<16x1xf32>
    %19 = arith.addf %17, %18 : vector<16x1xf32>
    %20 = math.rsqrt %19 : vector<16x1xf32>
    %21 = vector.broadcast %20 : vector<16x1xf32> to vector<16x256xf32>
    %22 = arith.mulf %10, %21 : vector<16x256xf32>
    %c0_12 = arith.constant 0 : index
    %c0_13 = arith.constant 0 : index
    %23 = vector.load %arg2[%c0_12, %c0_13] : memref<16x1xf32, #tpu.memory_space<vmem>>, vector<16x1xf32>
    %24 = vector.broadcast %23 : vector<16x1xf32> to vector<16x256xf32>
    %25 = arith.mulf %22, %24 : vector<16x256xf32>
    %c0_14 = arith.constant 0 : index
    %c0_15 = arith.constant 0 : index
    %26 = vector.load %arg3[%c0_14, %c0_15] : memref<16x1xf32, #tpu.memory_space<vmem>>, vector<16x1xf32>
    %27 = vector.broadcast %26 : vector<16x1xf32> to vector<16x256xf32>
    %28 = arith.addf %25, %27 : vector<16x256xf32>
    %cst_16 = arith.constant 0.000000e+00 : f32
    %29 = vector.broadcast %cst_16 : f32 to vector<16x256xf32>
    %30 = arith.cmpf oge, %28, %29 : vector<16x256xf32>
    %cst_17 = arith.constant 0.00999999977 : f32
    %31 = vector.broadcast %cst_17 : f32 to vector<16x256xf32>
    %32 = arith.mulf %31, %28 : vector<16x256xf32>
    %33 = arith.select %30, %28, %32 : vector<16x256xi1>, vector<16x256xf32>
    %34 = arith.truncf %33 : vector<16x256xf32> to vector<16x256xbf16>
    %c0_18 = arith.constant 0 : index
    %c0_19 = arith.constant 0 : index
    %c0_20 = arith.constant 0 : index
    %35 = vector.load %arg5[%c0_18, %c0_19, %c0_20] : memref<1x16x256xbf16, #tpu.memory_space<vmem>>, vector<1x16x256xbf16>
    %36 = vector.shape_cast %35 : vector<1x16x256xbf16> to vector<16x256xbf16>
    %37 = vector.shape_cast %34 : vector<16x256xbf16> to vector<1x16x256xbf16>
    tpu.vector_store %arg5[%c0_18, %c0_19, %c0_20], %37 {strides = array<i32>} : memref<1x16x256xbf16, #tpu.memory_space<vmem>>, vector<1x16x256xbf16>,
    return
  }
  func.func @transform_0(%arg0: i32) -> (i32, i32, i32) {
    %c0_i32 = arith.constant 0 : i32
    %c0_i32_0 = arith.constant 0 : i32
    %c0_i32_1 = arith.constant 0 : i32
    return %arg0, %c0_i32, %c0_i32_0 : i32, i32, i32
  }
  func.func @transform_1(%arg0: i32) -> (i32, i32) {
    %c0_i32 = arith.constant 0 : i32
    %c0_i32_0 = arith.constant 0 : i32
    %c0_i32_1 = arith.constant 0 : i32
    return %c0_i32, %c0_i32_0 : i32, i32
  }
  func.func @transform_2(%arg0: i32) -> (i32, i32) {
    %c0_i32 = arith.constant 0 : i32
    %c0_i32_0 = arith.constant 0 : i32
    %c0_i32_1 = arith.constant 0 : i32
    return %c0_i32, %c0_i32_0 : i32, i32
  }
  func.func @transform_3(%arg0: i32) -> (i32, i32) {
    %c0_i32 = arith.constant 0 : i32
    %c0_i32_0 = arith.constant 0 : i32
    %c0_i32_1 = arith.constant 0 : i32
    return %c0_i32, %c0_i32_0 : i32, i32
  }
  func.func @transform_4(%arg0: i32) -> (i32, i32, i32) {
    %c0_i32 = arith.constant 0 : i32
    %c0_i32_0 = arith.constant 0 : i32
    %c0_i32_1 = arith.constant 0 : i32
    return %arg0, %c0_i32, %c0_i32_0 : i32, i32, i32
  }
}

module attributes {stable_mosaic.version = 11 : i64} {
  func.func @_parity_gemm_kernel(%arg0: i32, %arg1: i32, %arg2: memref<8x64xbf16, #tpu.memory_space<vmem>>, %arg3: memref<1x64x384xbf16, #tpu.memory_space<vmem>>, %arg4: memref<8x1xf32, #tpu.memory_space<vmem>>, %arg5: memref<1x8x384xf32, #tpu.memory_space<vmem>>) attributes {dimension_semantics = [#tpu.dimension_semantics<parallel>, #tpu.dimension_semantics<parallel>], iteration_bounds = array<i64: 2, 1>, scalar_prefetch = 0 : i64, scratch_operands = 0 : i64, tpu.core_type = #tpu.core_type<tc>, window_params = [{pipeline_mode = #tpu.pipeline_mode<synchronous>, transform_indices = @transform_0, window_bounds = array<i64: 8, 64>}, {transform_indices = @transform_1, window_bounds = array<i64: 1, 64, 384>}, {pipeline_mode = #tpu.pipeline_mode<synchronous>, transform_indices = @transform_2, window_bounds = array<i64: 8, 1>}, {transform_indices = @transform_3, window_bounds = array<i64: 1, 8, 384>}]} {
    %c0 = arith.constant 0 : index
    %c0_0 = arith.constant 0 : index
    %0 = vector.load %arg2[%c0, %c0_0] : memref<8x64xbf16, #tpu.memory_space<vmem>>, vector<8x64xbf16>
    %c0_1 = arith.constant 0 : index
    %c0_2 = arith.constant 0 : index
    %c0_3 = arith.constant 0 : index
    %1 = vector.load %arg3[%c0_1, %c0_2, %c0_3] : memref<1x64x384xbf16, #tpu.memory_space<vmem>>, vector<1x64x384xbf16>
    %2 = vector.shape_cast %1 : vector<1x64x384xbf16> to vector<64x384xbf16>
    %cst = arith.constant dense<0.000000e+00> : vector<8x384xf32>
    %3 = tpu.matmul %0, %2, %cst {dimension_numbers = #tpu.dot_dimension_numbers<[1], [0], [0], [1], [0, 0, 1, 1], [], []>} : vector<8x64xbf16>, vector<64x384xbf16>, vector<8x384xf32> -> vector<8x384xf32>
    %c0_4 = arith.constant 0 : index
    %c0_5 = arith.constant 0 : index
    %4 = vector.load %arg4[%c0_4, %c0_5] : memref<8x1xf32, #tpu.memory_space<vmem>>, vector<8x1xf32>
    %5 = vector.broadcast %4 : vector<8x1xf32> to vector<8x384xf32>
    %6 = arith.addf %3, %5 : vector<8x384xf32>
    %7 = math.tanh %6 : vector<8x384xf32>
    %c0_6 = arith.constant 0 : index
    %c0_7 = arith.constant 0 : index
    %c0_8 = arith.constant 0 : index
    %8 = vector.load %arg5[%c0_6, %c0_7, %c0_8] : memref<1x8x384xf32, #tpu.memory_space<vmem>>, vector<1x8x384xf32>
    %9 = vector.shape_cast %8 : vector<1x8x384xf32> to vector<8x384xf32>
    %10 = vector.shape_cast %7 : vector<8x384xf32> to vector<1x8x384xf32>
    tpu.vector_store %arg5[%c0_6, %c0_7, %c0_8], %10 {strides = array<i32>} : memref<1x8x384xf32, #tpu.memory_space<vmem>>, vector<1x8x384xf32>,
    return
  }
  func.func @transform_0(%arg0: i32, %arg1: i32) -> (i32, i32) {
    %c0_i32 = arith.constant 0 : i32
    %c0_i32_0 = arith.constant 0 : i32
    %c0_i32_1 = arith.constant 0 : i32
    return %c0_i32, %c0_i32_0 : i32, i32
  }
  func.func @transform_1(%arg0: i32, %arg1: i32) -> (i32, i32, i32) {
    %c0_i32 = arith.constant 0 : i32
    %c0_i32_0 = arith.constant 0 : i32
    return %arg0, %c0_i32, %arg1 : i32, i32, i32
  }
  func.func @transform_2(%arg0: i32, %arg1: i32) -> (i32, i32) {
    %c0_i32 = arith.constant 0 : i32
    %c0_i32_0 = arith.constant 0 : i32
    %c0_i32_1 = arith.constant 0 : i32
    return %c0_i32, %c0_i32_0 : i32, i32
  }
  func.func @transform_3(%arg0: i32, %arg1: i32) -> (i32, i32, i32) {
    %c0_i32 = arith.constant 0 : i32
    %c0_i32_0 = arith.constant 0 : i32
    return %arg0, %c0_i32, %arg1 : i32, i32, i32
  }
}

</mosaic_0001>

<llo_original>
// kernel: decoder_forward.7
$region0: #{decoder_forward.7}
  #allocation0 [shape = 'u32[]', space=smem, size = 0x4, offset = 0x4, fixed_abs, tag = 'smem constant byte address 0x4 - core index']
  #allocation1 [shape = 'u32[144,128]{1,0:T(1,128)}', space=vmem, size = 0x12000, scoped, tag = 'internal scratch']
  %s0 = inlined_call_operand.vmem [shape: bf16[192,256], index: 0, kind: input, shape index: {}]
  %s1 = inlined_call_operand.vmem [shape: bf16[2,256,128], index: 1, kind: input, shape index: {}]
  %s2 = inlined_call_operand.vmem [shape: f32[192,1], index: 2, kind: input, shape index: {}]
  %s3 = inlined_call_operand.vmem [shape: bf16[2,192,128], index: 3, kind: output, shape index: {}]
  %s4 = sld [smem:[#allocation0]]
  $region45: #{decoder_forward.7} parent=0
    _
  %s6 = ssub.s32 1, %s4
  %s7 = scalar_select 0, %s6, %s4
  loop: start=0, step=1, limit=4
  $region2: #{decoder_forward.7} parent=0 // loop_pre_header
    _
  $region3: #{decoder_forward.7} parent=0 // loop_header
    %s9 = sphi 0, %s13
    %p10 = scmp.ge.s32.totalorder %s9, 4
    %s16 = sphi 0, %s28
    %s17 = sphi 0, %s24
    %s18 = sphi 0, %s16
    %s19 = sphi 0, %s17
    %s20 = sphi 0, %s18
    %s21 = sphi 0, %s19
    %s29 = sphi 0, %s29
    %s31 = sphi 0, %s29
    %s32 = sphi 0, %s31
    %s46 = sphi 0, %s32
    %s54 = sphi 0, %s56
    %s57 = sphi 0, %s54
    %s58 = sphi 0, %s57
    %s74 = sphi 0, %s58
    %s78 = sphi 0, %s78
    %s80 = sphi 0, %s78
    %s81 = sphi 0, %s80
    %s95 = sphi 0, %s81
    %s103 = sphi 0, %s105
    %s106 = sphi 0, %s103
    %s107 = sphi 0, %s106
    %s123 = sphi 0, %s107
  $region4: #{decoder_forward.7} parent=0 // loop_header_branch
    %12 = sbr.rel (%p10) target = $region8
  $region5: #{decoder_forward.7} parent=0 // loop_body
    %s14 = ssub.s32 %s9, 1
    %s15 = ssub.s32 %s9, 2
    %s22 = sadd.s32 1, %s17
    %p23 = scmp.ge.s32.totalorder %s22, 1
    %s24 = scalar_select %p23, 0, %s22
    %s25 = sadd.s32 1, %s16
    %s26 = scalar_select %p23, %s25, %s16
    %p27 = scmp.ge.s32.totalorder %s26, 2
    %s28 = scalar_select %p27, 0, %s26
    %s30 = sadd.s32 %s29, 1
    %p33 = scmp.eq.s32.totalorder %s9, 1
    %p34 = scmp.ne.s32.totalorder %s29, %s31
    %p35 = scmp.eq.s32.totalorder %s9, 0
    %p36 = por %p34, %p35
    %p37 = scmp.ne.s32.totalorder %s29, %s31
    %p38 = scmp.eq.s32.totalorder %s14, 1
    %p39 = por %p37, %p38
    %p40 = scmp.ne.s32.totalorder %s31, %s32
    %p41 = scmp.eq.s32.totalorder %s14, 0
    %p42 = por %p40, %p41
    %p43 = scmp.ne.s32.totalorder %s31, %s32
    %p44 = scmp.eq.s32.totalorder %s15, 1
    %p45 = por %p43, %p44
    %p47 = scmp.ne.s32.totalorder %s32, %s46
    %p48 = scmp.eq.s32.totalorder %s15, 0
    %p49 = por %p47, %p48
    %s50 = ssub.s32 %s16, %s28
    %s51 = ssub.s32 %s17, %s24
    %s52 = sor.u32 %s50, %s51
    %p53 = scmp.eq.s32.totalorder %s52, 0
    %s55 = sadd.s32 %s54, 1
    %s56 = scalar_select %p53, %s54, %s55
    %p59 = pneg %p53
    %p60 = scmp.eq.s32.totalorder %s9, 1
    %p61 = por %p59, %p60
    %p62 = scmp.ne.s32.totalorder %s54, %s57
    %p63 = scmp.eq.s32.totalorder %s9, 0
    %p64 = por %p62, %p63
    %p65 = scmp.ne.s32.totalorder %s54, %s57
    %p66 = scmp.eq.s32.totalorder %s14, 1
    %p67 = por %p65, %p66
    %p68 = scmp.ne.s32.totalorder %s57, %s58
    %p69 = scmp.eq.s32.totalorder %s14, 0
    %p70 = por %p68, %p69
    %p71 = scmp.ne.s32.totalorder %s57, %s58
    %p72 = scmp.eq.s32.totalorder %s15, 1
    %p73 = por %p71, %p72
    %p75 = scmp.ne.s32.totalorder %s58, %s74
    %p76 = scmp.eq.s32.totalorder %s15, 0
    %p77 = por %p75, %p76
    %s79 = sadd.s32 %s78, 1
    %p82 = scmp.eq.s32.totalorder %s9, 1
    %p83 = scmp.ne.s32.totalorder %s78, %s80
    %p84 = scmp.eq.s32.totalorder %s9, 0
    %p85 = por %p83, %p84
    %p86 = scmp.ne.s32.totalorder %s78, %s80
    %p87 = scmp.eq.s32.totalorder %s14, 1
    %p88 = por %p86, %p87
    %p89 = scmp.ne.s32.totalorder %s80, %s81
    %p90 = scmp.eq.s32.totalorder %s14, 0
    %p91 = por %p89, %p90
    %p92 = scmp.ne.s32.totalorder %s80, %s81
    %p93 = scmp.eq.s32.totalorder %s15, 1
    %p94 = por %p92, %p93
    %p96 = scmp.ne.s32.totalorder %s81, %s95
    %p97 = scmp.eq.s32.totalorder %s15, 0
    %p98 = por %p96, %p97
    %s99 = ssub.s32 %s16, %s28
    %s100 = ssub.s32 %s17, %s24
    %s101 = sor.u32 %s99, %s100
    %p102 = scmp.eq.s32.totalorder %s101, 0
    %s104 = sadd.s32 %s103, 1
    %s105 = scalar_select %p102, %s103, %s104
    %p108 = pneg %p102
    %p109 = scmp.eq.s32.totalorder %s9, 1
    %p110 = por %p108, %p109
    %p111 = scmp.ne.s32.totalorder %s103, %s106
    %p112 = scmp.eq.s32.totalorder %s9, 0
    %p113 = por %p111, %p112
    %p114 = scmp.ne.s32.totalorder %s103, %s106
    %p115 = scmp.eq.s32.totalorder %s14, 1
    %p116 = por %p114, %p115
    %p117 = scmp.ne.s32.totalorder %s106, %s107
    %p118 = scmp.eq.s32.totalorder %s14, 0
    %p119 = por %p117, %p118
    %p120 = scmp.ne.s32.totalorder %s106, %s107
    %p121 = scmp.eq.s32.totalorder %s15, 1
    %p122 = por %p120, %p121
    %p124 = scmp.ne.s32.totalorder %s107, %s123
    %p125 = scmp.eq.s32.totalorder %s15, 0
    %p126 = por %p124, %p125
    %p127 = scmp.le.s32.totalorder 1, %s9
    %p128 = scmp.lt.s32.totalorder %s9, 3
    %p129 = pnand %p127, %p128
    %p130 = pneg %p129
    // Predicated region
    $region9: #{decoder_forward.7} parent=5 // pred_check
      _
    $region10: #{decoder_forward.7} parent=5 // pred_check_branch
      %132 = sbr.rel (%p129) target = $region12
    $region11: #{decoder_forward.7} parent=5 // pred_region
      %s133 = ssub.s32 %s9, 1
      // Predicated region
      $region13: #{decoder_forward.7} parent=11 // pred_check
        %p134 = pneg %p42
      $region14: #{decoder_forward.7} parent=11 // pred_check_branch
        %136 = sbr.rel (%p134) target = $region16
      $region15: #{decoder_forward.7} parent=11 // pred_region
        _
      $region16: #{decoder_forward.7} parent=11 // pred_fallthru
        _
      // Predicated region
      $region17: #{decoder_forward.7} parent=11 // pred_check
        %p137 = pneg %p91
      $region18: #{decoder_forward.7} parent=11 // pred_check_branch
        %139 = sbr.rel (%p137) target = $region20
      $region19: #{decoder_forward.7} parent=11 // pred_region
        _
      $region20: #{decoder_forward.7} parent=11 // pred_fallthru
        _
    $region12: #{decoder_forward.7} parent=5 // pred_fallthru
      _
    %p140 = scmp.lt.s32.totalorder %s9, 2
    // Predicated region
    $region21: #{decoder_forward.7} parent=5 // pred_check
      %p141 = pneg %p140
    $region22: #{decoder_forward.7} parent=5 // pred_check_branch
      %143 = sbr.rel (%p141) target = $region24
    $region23: #{decoder_forward.7} parent=5 // pred_region
      // Predicated region
      $region25: #{decoder_forward.7} parent=23 // pred_check
        %p144 = pneg %p64
      $region26: #{decoder_forward.7} parent=23 // pred_check_branch
        %146 = sbr.rel (%p144) target = $region28
      $region27: #{decoder_forward.7} parent=23 // pred_region
        %p147 = scmp.lt.s32.totalorder %s16, 1
        %s148 = scalar_select %p147, %s16, 1
        %p149 = scmp.lt.s32.totalorder %s17, 0
        %s150 = scalar_select %p149, %s17, 0
        %s151 = smul.addr %s148, 32
        %s152 = sadd.s32 %s150, %s151
        %s153 = smul.addr %s152, 4
        %s154 = scalar_lea.vmem %s1, %s153
      $region28: #{decoder_forward.7} parent=23 // pred_fallthru
        _
    $region24: #{decoder_forward.7} parent=5 // pred_fallthru
      _
    %p155 = scmp.le.s32.totalorder 1, %s9
    %p156 = scmp.lt.s32.totalorder %s9, 3
    %p157 = pnand %p155, %p156
    %p158 = pneg %p157
    // Predicated region
    $region29: #{decoder_forward.7} parent=5 // pred_check
      _
    $region30: #{decoder_forward.7} parent=5 // pred_check_branch
      %160 = sbr.rel (%p157) target = $region32
    $region31: #{decoder_forward.7} parent=5 // pred_region
      %s161 = ssub.s32 %s9, 1
      %p162 = pneg %p42
      %p163 = pneg %p39
      %p164 = scmp.lt.s32.totalorder %s18, 1
      %s165 = scalar_select %p164, %s18, 1
      %p166 = scmp.lt.s32.totalorder %s19, 0
      %s167 = scalar_select %p166, %s19, 0
      %s168 = smul.addr %s165, 32
      %s169 = sadd.s32 %s167, %s168
      %s170 = smul.addr %s169, 4
      %s171 = scalar_lea.vmem %s1, %s170
      %p172 = pneg %p70
      %p173 = pneg %p67
      %p174 = pneg %p91
      %p175 = pneg %p88
      %p176 = pneg %p119
      %p177 = pneg %p116
      %p178 = scmp.lt.s32.totalorder %s18, 1
      %s179 = scalar_select %p178, %s18, 1
      %p180 = scmp.lt.s32.totalorder %s19, 0
      %s181 = scalar_select %p180, %s19, 0
      %s182 = smul.addr %s179, 24
      %s183 = sadd.s32 %s181, %s182
      %s184 = smul.addr %s183, 4
      %s185 = scalar_lea.vmem %s3, %s184
      %p186 = scmp.lt.s32.totalorder %s18, 1
      %s187 = scalar_select %p186, %s18, 1
      %p188 = scmp.lt.s32.totalorder %s19, 0
      %s189 = scalar_select %p188, %s19, 0
      %s190 = smul.addr %s187, 32
      %s191 = sadd.s32 %s189, %s190
      %s192 = smul.addr %s191, 4
      %s193 = scalar_lea.vmem %s1, %s192
      %p194 = scmp.lt.s32.totalorder %s18, 1
      %s195 = scalar_select %p194, %s18, 1
      %p196 = scmp.lt.s32.totalorder %s19, 0
      %s197 = scalar_select %p196, %s19, 0
      %s198 = smul.addr %s195, 24
      %s199 = sadd.s32 %s197, %s198
      %s200 = smul.addr %s199, 4
      %s201 = scalar_lea.vmem %s3, %s200
      %v203 = vld [vmem:[%s0] sm:$0xff]
      %v204 = vld [vmem:[%s0 + $0x8] sm:$0xff]
      %v205 = vld [vmem:[%s0 + $0x10] sm:$0xff]
      %v206 = vld [vmem:[%s0 + $0x18] sm:$0xff]
      %v207 = vld [vmem:[%s0 + $0x20] sm:$0xff]
      %v208 = vld [vmem:[%s0 + $0x28] sm:$0xff]
      %v209 = vld [vmem:[%s0 + $0x30] sm:$0xff]
      %v210 = vld [vmem:[%s0 + $0x38] sm:$0xff]
      %v211 = vld [vmem:[%s0 + $0x40] sm:$0xff]
      %v212 = vld [vmem:[%s0 + $0x48] sm:$0xff]
      %v213 = vld [vmem:[%s0 + $0x50] sm:$0xff]
      %v214 = vld [vmem:[%s0 + $0x58] sm:$0xff]
      %v215 = vld [vmem:[%s0 + $0x60] sm:$0xff]
      %v216 = vld [vmem:[%s0 + $0x68] sm:$0xff]
      %v217 = vld [vmem:[%s0 + $0x70] sm:$0xff]
      %v218 = vld [vmem:[%s0 + $0x78] sm:$0xff]
      %v219 = vld [vmem:[%s0 + $0x80] sm:$0xff]
      %v220 = vld [vmem:[%s0 + $0x88] sm:$0xff]
      %v221 = vld [vmem:[%s0 + $0x90] sm:$0xff]
      %v222 = vld [vmem:[%s0 + $0x98] sm:$0xff]
      %v223 = vld [vmem:[%s0 + $0xa0] sm:$0xff]
      %v224 = vld [vmem:[%s0 + $0xa8] sm:$0xff]
      %v225 = vld [vmem:[%s0 + $0xb0] sm:$0xff]
      %v226 = vld [vmem:[%s0 + $0xb8] sm:$0xff]
      %v227 = vld [vmem:[%s193] sm:$0xf]
      %v228 = vld [vmem:[%s193 + $0x4] sm:$0xf]
      %v229 = vld [vmem:[%s193 + $0x8] sm:$0xf]
      %v230 = vld [vmem:[%s193 + $0xc] sm:$0xf]
      %v231 = vld [vmem:[%s193 + $0x10] sm:$0xf]
      %v232 = vld [vmem:[%s193 + $0x14] sm:$0xf]
      %v233 = vld [vmem:[%s193 + $0x18] sm:$0xf]
      %v234 = vld [vmem:[%s193 + $0x1c] sm:$0xf]
      %v235 = vld [vmem:[%s193 + $0x20] sm:$0xf]
      %v236 = vld [vmem:[%s193 + $0x24] sm:$0xf]
      %v237 = vld [vmem:[%s193 + $0x28] sm:$0xf]
      %v238 = vld [vmem:[%s193 + $0x2c] sm:$0xf]
      %v239 = vld [vmem:[%s193 + $0x30] sm:$0xf]
      %v240 = vld [vmem:[%s193 + $0x34] sm:$0xf]
      %v241 = vld [vmem:[%s193 + $0x38] sm:$0xf]
      %v242 = vld [vmem:[%s193 + $0x3c] sm:$0xf]
      %v243 = vld [vmem:[%s193 + $0x40] sm:$0xf]
      %v244 = vld [vmem:[%s193 + $0x44] sm:$0xf]
      %v245 = vld [vmem:[%s193 + $0x48] sm:$0xf]
      %v246 = vld [vmem:[%s193 + $0x4c] sm:$0xf]
      %v247 = vld [vmem:[%s193 + $0x50] sm:$0xf]
      %v248 = vld [vmem:[%s193 + $0x54] sm:$0xf]
      %v249 = vld [vmem:[%s193 + $0x58] sm:$0xf]
      %v250 = vld [vmem:[%s193 + $0x5c] sm:$0xf]
      %v251 = vld [vmem:[%s193 + $0x60] sm:$0xf]
      %v252 = vld [vmem:[%s193 + $0x64] sm:$0xf]
      %v253 = vld [vmem:[%s193 + $0x68] sm:$0xf]
      %v254 = vld [vmem:[%s193 + $0x6c] sm:$0xf]
      %v255 = vld [vmem:[%s193 + $0x70] sm:$0xf]
      %v256 = vld [vmem:[%s193 + $0x74] sm:$0xf]
      %v257 = vld [vmem:[%s193 + $0x78] sm:$0xf]
      %v258 = vld [vmem:[%s193 + $0x7c] sm:$0xf]
      %v259 = vld [vmem:[%s2] sm:$0xff]
      %v260 = vld [vmem:[%s2 + $0x8] sm:$0xff]
      %v261 = vld [vmem:[%s2 + $0x10] sm:$0xff]
      %v262 = vld [vmem:[%s2 + $0x18] sm:$0xff]
      %v263 = vld [vmem:[%s2 + $0x20] sm:$0xff]
      %v264 = vld [vmem:[%s2 + $0x28] sm:$0xff]
      %v265 = vld [vmem:[%s2 + $0x30] sm:$0xff]
      %v266 = vld [vmem:[%s2 + $0x38] sm:$0xff]
      %v267 = vld [vmem:[%s2 + $0x40] sm:$0xff]
      %v268 = vld [vmem:[%s2 + $0x48] sm:$0xff]
      %v269 = vld [vmem:[%s2 + $0x50] sm:$0xff]
      %v270 = vld [vmem:[%s2 + $0x58] sm:$0xff]
      %v271 = vld [vmem:[%s2 + $0x60] sm:$0xff]
      %v272 = vld [vmem:[%s2 + $0x68] sm:$0xff]
      %v273 = vld [vmem:[%s2 + $0x70] sm:$0xff]
      %v274 = vld [vmem:[%s2 + $0x78] sm:$0xff]
      %v275 = vld [vmem:[%s2 + $0x80] sm:$0xff]
      %v276 = vld [vmem:[%s2 + $0x88] sm:$0xff]
      %v277 = vld [vmem:[%s2 + $0x90] sm:$0xff]
      %v278 = vld [vmem:[%s2 + $0x98] sm:$0xff]
      %v279 = vld [vmem:[%s2 + $0xa0] sm:$0xff]
      %v280 = vld [vmem:[%s2 + $0xa8] sm:$0xff]
      %v281 = vld [vmem:[%s2 + $0xb0] sm:$0xff]
      %v282 = vld [vmem:[%s2 + $0xb8] sm:$0xff]
      %284 = vset.pattern.permute.xlu0 0
      %285 = vperm.xlu0 %284, %v259
      %v286 = vpop.permute.xlu0 %285
      %289 = vset.pattern.permute.xlu0 0
      %290 = vperm.xlu0 %289, %v260
      %v291 = vpop.permute.xlu0 %290
      %294 = vset.pattern.permute.xlu0 0
      %295 = vperm.xlu0 %294, %v261
      %v296 = vpop.permute.xlu0 %295
      %299 = vset.pattern.permute.xlu0 0
      %300 = vperm.xlu0 %299, %v262
      %v301 = vpop.permute.xlu0 %300
      %304 = vset.pattern.permute.xlu0 0
      %305 = vperm.xlu0 %304, %v263
      %v306 = vpop.permute.xlu0 %305
      %309 = vset.pattern.permute.xlu0 0
      %310 = vperm.xlu0 %309, %v264
      %v311 = vpop.permute.xlu0 %310
      %314 = vset.pattern.permute.xlu0 0
      %315 = vperm.xlu0 %314, %v265
      %v316 = vpop.permute.xlu0 %315
      %319 = vset.pattern.permute.xlu0 0
      %320 = vperm.xlu0 %319, %v266
      %v321 = vpop.permute.xlu0 %320
      %324 = vset.pattern.permute.xlu0 0
      %325 = vperm.xlu0 %324, %v267
      %v326 = vpop.permute.xlu0 %325
      %329 = vset.pattern.permute.xlu0 0
      %330 = vperm.xlu0 %329, %v268
      %v331 = vpop.permute.xlu0 %330
      %334 = vset.pattern.permute.xlu0 0
      %335 = vperm.xlu0 %334, %v269
      %v336 = vpop.permute.xlu0 %335
      %339 = vset.pattern.permute.xlu0 0
      %340 = vperm.xlu0 %339, %v270
      %v341 = vpop.permute.xlu0 %340
      %344 = vset.pattern.permute.xlu0 0
      %345 = vperm.xlu0 %344, %v271
      %v346 = vpop.permute.xlu0 %345
      %349 = vset.pattern.permute.xlu0 0
      %350 = vperm.xlu0 %349, %v272
      %v351 = vpop.permute.xlu0 %350
      %354 = vset.pattern.permute.xlu0 0
      %355 = vperm.xlu0 %354, %v273
      %v356 = vpop.permute.xlu0 %355
      %359 = vset.pattern.permute.xlu0 0
      %360 = vperm.xlu0 %359, %v274
      %v361 = vpop.permute.xlu0 %360
      %364 = vset.pattern.permute.xlu0 0
      %365 = vperm.xlu0 %364, %v275
      %v366 = vpop.permute.xlu0 %365
      %369 = vset.pattern.permute.xlu0 0
      %370 = vperm.xlu0 %369, %v276
      %v371 = vpop.permute.xlu0 %370
      %374 = vset.pattern.permute.xlu0 0
      %375 = vperm.xlu0 %374, %v277
      %v376 = vpop.permute.xlu0 %375
      %379 = vset.pattern.permute.xlu0 0
      %380 = vperm.xlu0 %379, %v278
      %v381 = vpop.permute.xlu0 %380
      %384 = vset.pattern.permute.xlu0 0
      %385 = vperm.xlu0 %384, %v279
      %v386 = vpop.permute.xlu0 %385
      %389 = vset.pattern.permute.xlu0 0
      %390 = vperm.xlu0 %389, %v280
      %v391 = vpop.permute.xlu0 %390
      %394 = vset.pattern.permute.xlu0 0
      %395 = vperm.xlu0 %394, %v281
      %v396 = vpop.permute.xlu0 %395
      %399 = vset.pattern.permute.xlu0 0
      %400 = vperm.xlu0 %399, %v282
      %v401 = vpop.permute.xlu0 %400
      %v427 = vunpack.c.l.b16 %v203
      %v428 = vunpack.c.h.b16 %v203
      %v429 = vunpack.c.l.b16 %v204
      %v430 = vunpack.c.h.b16 %v204
      %v431 = vunpack.c.l.b16 %v205
      %v432 = vunpack.c.h.b16 %v205
      %v433 = vunpack.c.l.b16 %v206
      %v434 = vunpack.c.h.b16 %v206
      %v435 = vunpack.c.l.b16 %v207
      %v436 = vunpack.c.h.b16 %v207
      %v437 = vunpack.c.l.b16 %v208
      %v438 = vunpack.c.h.b16 %v208
      %v439 = vunpack.c.l.b16 %v209
      %v440 = vunpack.c.h.b16 %v209
      %v441 = vunpack.c.l.b16 %v210
      %v442 = vunpack.c.h.b16 %v210
      %v443 = vunpack.c.l.b16 %v211
      %v444 = vunpack.c.h.b16 %v211
      %v445 = vunpack.c.l.b16 %v212
      %v446 = vunpack.c.h.b16 %v212
      %v447 = vunpack.c.l.b16 %v213
      %v448 = vunpack.c.h.b16 %v213
      %v449 = vunpack.c.l.b16 %v214
      %v450 = vunpack.c.h.b16 %v214
      %v451 = vunpack.c.l.b16 %v215
      %v452 = vunpack.c.h.b16 %v215
      %v453 = vunpack.c.l.b16 %v216
      %v454 = vunpack.c.h.b16 %v216
      %v455 = vunpack.c.l.b16 %v217
      %v456 = vunpack.c.h.b16 %v217
      %v457 = vunpack.c.l.b16 %v218
      %v458 = vunpack.c.h.b16 %v218
      %v459 = vunpack.c.l.b16 %v219
      %v460 = vunpack.c.h.b16 %v219
      %v461 = vunpack.c.l.b16 %v220
      %v462 = vunpack.c.h.b16 %v220
      %v463 = vunpack.c.l.b16 %v221
      %v464 = vunpack.c.h.b16 %v221
      %v465 = vunpack.c.l.b16 %v222
      %v466 = vunpack.c.h.b16 %v222
      %v467 = vunpack.c.l.b16 %v223
      %v468 = vunpack.c.h.b16 %v223
      %v469 = vunpack.c.l.b16 %v224
      %v470 = vunpack.c.h.b16 %v224
      %v471 = vunpack.c.l.b16 %v225
      %v472 = vunpack.c.h.b16 %v225
      %v473 = vunpack.c.l.b16 %v226
      %v474 = vunpack.c.h.b16 %v226
      %v475 = vpack.c.b16 %v429, %v427
      %v476 = vpack.c.b16 %v430, %v428
      %v477 = vpack.c.b16 %v433, %v431
      %v478 = vpack.c.b16 %v434, %v432
      %v479 = vpack.c.b16 %v437, %v435
      %v480 = vpack.c.b16 %v438, %v436
      %v481 = vpack.c.b16 %v441, %v439
      %v482 = vpack.c.b16 %v442, %v440
      %v483 = vpack.c.b16 %v445, %v443
      %v484 = vpack.c.b16 %v446, %v444
      %v485 = vpack.c.b16 %v449, %v447
      %v486 = vpack.c.b16 %v450, %v448
      %v487 = vpack.c.b16 %v453, %v451
      %v488 = vpack.c.b16 %v454, %v452
      %v489 = vpack.c.b16 %v457, %v455
      %v490 = vpack.c.b16 %v458, %v456
      %v491 = vpack.c.b16 %v461, %v459
      %v492 = vpack.c.b16 %v462, %v460
      %v493 = vpack.c.b16 %v465, %v463
      %v494 = vpack.c.b16 %v466, %v464
      %v495 = vpack.c.b16 %v469, %v467
      %v496 = vpack.c.b16 %v470, %v468
      %v497 = vpack.c.b16 %v473, %v471
      %v498 = vpack.c.b16 %v474, %v472
      %v555 = vunpack.c.l.b16 %v227
      %v556 = vunpack.c.l.b16 %v228
      %v557 = vunpack.c.l.b16 %v229
      %v558 = vunpack.c.l.b16 %v230
      %v559 = vunpack.c.l.b16 %v231
      %v560 = vunpack.c.l.b16 %v232
      %v561 = vunpack.c.l.b16 %v233
      %v562 = vunpack.c.l.b16 %v234
      %v563 = vunpack.c.l.b16 %v235
      %v564 = vunpack.c.l.b16 %v236
      %v565 = vunpack.c.l.b16 %v237
      %v566 = vunpack.c.l.b16 %v238
      %v567 = vunpack.c.l.b16 %v239
      %v568 = vunpack.c.l.b16 %v240
      %v569 = vunpack.c.l.b16 %v241
      %v570 = vunpack.c.l.b16 %v242
      %v571 = vunpack.c.l.b16 %v243
      %v572 = vunpack.c.l.b16 %v244
      %v573 = vunpack.c.l.b16 %v245
      %v574 = vunpack.c.l.b16 %v246
      %v575 = vunpack.c.l.b16 %v247
      %v576 = vunpack.c.l.b16 %v248
      %v577 = vunpack.c.l.b16 %v249
      %v578 = vunpack.c.l.b16 %v250
      %v579 = vunpack.c.l.b16 %v251
      %v580 = vunpack.c.l.b16 %v252
      %v581 = vunpack.c.l.b16 %v253
      %v582 = vunpack.c.l.b16 %v254
      %v583 = vunpack.c.l.b16 %v255
      %v584 = vunpack.c.l.b16 %v256
      %v585 = vunpack.c.l.b16 %v257
      %v586 = vunpack.c.l.b16 %v258
      %v587 = vpack.c.b16 %v556, %v555
      %v588 = vpack.c.b16 %v558, %v557
      %v589 = vpack.c.b16 %v560, %v559
      %v590 = vpack.c.b16 %v562, %v561
      %v591 = vpack.c.b16 %v564, %v563
      %v592 = vpack.c.b16 %v566, %v565
      %v593 = vpack.c.b16 %v568, %v567
      %v594 = vpack.c.b16 %v570, %v569
      %v595 = vpack.c.b16 %v572, %v571
      %v596 = vpack.c.b16 %v574, %v573
      %v597 = vpack.c.b16 %v576, %v575
      %v598 = vpack.c.b16 %v578, %v577
      %v599 = vpack.c.b16 %v580, %v579
      %v600 = vpack.c.b16 %v582, %v581
      %v601 = vpack.c.b16 %v584, %v583
      %v602 = vpack.c.b16 %v586, %v585
      %619 = vmatprep.subr.bf16.mxu0 0
      %620 = vmatpush1.bf16.msra.mxu0 %v587
      %621 = vmatprep.subr.bf16.mxu0 0
      %622 = vmatpush1.bf16.msra.mxu0 %v588
      %623 = vmatprep.subr.bf16.mxu0 0
      %624 = vmatpush1.bf16.msra.mxu0 %v589
      %625 = vmatprep.subr.bf16.mxu0 0
      %626 = vmatpush1.bf16.msra.mxu0 %v590
      %627 = vmatprep.subr.bf16.mxu0 0
      %628 = vmatpush1.bf16.msra.mxu0 %v591
      %629 = vmatprep.subr.bf16.mxu0 0
      %630 = vmatpush1.bf16.msra.mxu0 %v592
      %631 = vmatprep.subr.bf16.mxu0 0
      %632 = vmatpush1.bf16.msra.mxu0 %v593
      %633 = vmatprep.subr.bf16.mxu0 0
      %634 = vmatpush1.bf16.msra.mxu0 %v594
      %635 = vmatprep.subr.bf16.mxu0 0
      %636 = vmatpush1.bf16.msra.mxu0 %v595
      %637 = vmatprep.subr.bf16.mxu0 0
      %638 = vmatpush1.bf16.msra.mxu0 %v596
      %639 = vmatprep.subr.bf16.mxu0 0
      %640 = vmatpush1.bf16.msra.mxu0 %v597
      %641 = vmatprep.subr.bf16.mxu0 0
      %642 = vmatpush1.bf16.msra.mxu0 %v598
      %643 = vmatprep.subr.bf16.mxu0 0
      %644 = vmatpush1.bf16.msra.mxu0 %v599
      %645 = vmatprep.subr.bf16.mxu0 0
      %646 = vmatpush1.bf16.msra.mxu0 %v600
      %647 = vmatprep.subr.bf16.mxu0 0
      %648 = vmatpush1.bf16.msra.mxu0 %v601
      %649 = vmatprep.subr.bf16.mxu0 0
      %650 = vmatpush1.bf16.msra.mxu0 %v602
      %651 = vmatprep.mubr.bf16.mxu0 %v476
      %652 = vmatmul.mubr.bf16.gmra.mrb[0].mxu0 %v475
      %v653 = vpop.f32.mrb[0].mxu0
      %v654 = vadd.f32 %v286, %v653
      %v655 = vpop.f32.mrb[0].mxu0
      %v656 = vpop.f32.mrb[0].mxu0
      %v657 = vadd.f32 %v291, %v656
      %v658 = vpop.f32.mrb[0].mxu0
      %659 = vmatprep.mubr.bf16.mxu0 %v478
      %660 = vmatmul.mubr.bf16.gmra.mrb[0].mxu0 %v477
      %v661 = vpop.f32.mrb[0].mxu0
      %v662 = vadd.f32 %v296, %v661
      %v663 = vpop.f32.mrb[0].mxu0
      %v664 = vpop.f32.mrb[0].mxu0
      %v665 = vadd.f32 %v301, %v664
      %v666 = vpop.f32.mrb[0].mxu0
      %667 = vmatprep.mubr.bf16.mxu0 %v480
      %668 = vmatmul.mubr.bf16.gmra.mrb[0].mxu0 %v479
      %v669 = vpop.f32.mrb[0].mxu0
      %v670 = vadd.f32 %v306, %v669
      %v671 = vpop.f32.mrb[0].mxu0
      %v672 = vpop.f32.mrb[0].mxu0
      %v673 = vadd.f32 %v311, %v672
      %v674 = vpop.f32.mrb[0].mxu0
      %675 = vmatprep.mubr.bf16.mxu0 %v482
      %676 = vmatmul.mubr.bf16.gmra.mrb[0].mxu0 %v481
      %v677 = vpop.f32.mrb[0].mxu0
      %v678 = vadd.f32 %v316, %v677
      %v679 = vpop.f32.mrb[0].mxu0
      %v680 = vpop.f32.mrb[0].mxu0
      %v681 = vadd.f32 %v321, %v680
      %v682 = vpop.f32.mrb[0].mxu0
      %683 = vmatprep.mubr.bf16.mxu0 %v484
      %684 = vmatmul.mubr.bf16.gmra.mrb[0].mxu0 %v483
      %v685 = vpop.f32.mrb[0].mxu0
      %v686 = vadd.f32 %v326, %v685
      %v687 = vpop.f32.mrb[0].mxu0
      %v688 = vpop.f32.mrb[0].mxu0
      %v689 = vadd.f32 %v331, %v688
      %v690 = vpop.f32.mrb[0].mxu0
      %691 = vmatprep.mubr.bf16.mxu0 %v486
      %692 = vmatmul.mubr.bf16.gmra.mrb[0].mxu0 %v485
      %v693 = vpop.f32.mrb[0].mxu0
      %v694 = vadd.f32 %v336, %v693
      %v695 = vpop.f32.mrb[0].mxu0
      %v696 = vpop.f32.mrb[0].mxu0
      %v697 = vadd.f32 %v341, %v696
      %v698 = vpop.f32.mrb[0].mxu0
      %699 = vmatprep.mubr.bf16.mxu0 %v488
      %700 = vmatmul.mubr.bf16.gmra.mrb[0].mxu0 %v487
      %v701 = vpop.f32.mrb[0].mxu0
      %v702 = vadd.f32 %v346, %v701
      %v703 = vpop.f32.mrb[0].mxu0
      %v704 = vpop.f32.mrb[0].mxu0
      %v705 = vadd.f32 %v351, %v704
      %v706 = vpop.f32.mrb[0].mxu0
      %707 = vmatprep.mubr.bf16.mxu0 %v490
      %708 = vmatmul.mubr.bf16.gmra.mrb[0].mxu0 %v489
      %v709 = vpop.f32.mrb[0].mxu0
      %v710 = vadd.f32 %v356, %v709
      %v711 = vpop.f32.mrb[0].mxu0
      %v712 = vpop.f32.mrb[0].mxu0
      %v713 = vadd.f32 %v361, %v712
      %v714 = vpop.f32.mrb[0].mxu0
      %715 = vmatprep.mubr.bf16.mxu0 %v492
      %716 = vmatmul.mubr.bf16.gmra.mrb[0].mxu0 %v491
      %v717 = vpop.f32.mrb[0].mxu0
      %v718 = vadd.f32 %v366, %v717
      %v719 = vpop.f32.mrb[0].mxu0
      %v720 = vpop.f32.mrb[0].mxu0
      %v721 = vadd.f32 %v371, %v720
      %v722 = vpop.f32.mrb[0].mxu0
      %723 = vmatprep.mubr.bf16.mxu0 %v494
      %724 = vmatmul.mubr.bf16.gmra.mrb[0].mxu0 %v493
      %v725 = vpop.f32.mrb[0].mxu0
      %v726 = vadd.f32 %v376, %v725
      %v727 = vpop.f32.mrb[0].mxu0
      %v728 = vpop.f32.mrb[0].mxu0
      %v729 = vadd.f32 %v381, %v728
      %v730 = vpop.f32.mrb[0].mxu0
      %731 = vmatprep.mubr.bf16.mxu0 %v496
      %732 = vmatmul.mubr.bf16.gmra.mrb[0].mxu0 %v495
      %v733 = vpop.f32.mrb[0].mxu0
      %v734 = vadd.f32 %v386, %v733
      %v735 = vpop.f32.mrb[0].mxu0
      %v736 = vpop.f32.mrb[0].mxu0
      %v737 = vadd.f32 %v391, %v736
      %v738 = vpop.f32.mrb[0].mxu0
      %739 = vmatprep.mubr.bf16.mxu0 %v498
      %740 = vmatmul.mubr.bf16.gmra.mrb[0].mxu0 %v497
      %v741 = vpop.f32.mrb[0].mxu0
      %v742 = vadd.f32 %v396, %v741
      %v743 = vpop.f32.mrb[0].mxu0
      %v744 = vpop.f32.mrb[0].mxu0
      %v745 = vadd.f32 %v401, %v744
      %v746 = vpop.f32.mrb[0].mxu0
      %747 = vdwg.mxu0
      %v748 = vpack.c.bf16 %v657, %v654
      %v749 = vpack.c.bf16 %v665, %v662
      %v750 = vpack.c.bf16 %v673, %v670
      %v751 = vpack.c.bf16 %v681, %v678
      %v752 = vpack.c.bf16 %v689, %v686
      %v753 = vpack.c.bf16 %v697, %v694
      %v754 = vpack.c.bf16 %v705, %v702
      %v755 = vpack.c.bf16 %v713, %v710
      %v756 = vpack.c.bf16 %v721, %v718
      %v757 = vpack.c.bf16 %v729, %v726
      %v758 = vpack.c.bf16 %v737, %v734
      %v759 = vpack.c.bf16 %v745, %v742
      %v772 = vunpack.c.l.b16 %v748
      %v773 = vunpack.c.h.b16 %v748
      %v774 = vunpack.c.l.b16 %v749
      %v775 = vunpack.c.h.b16 %v749
      %v776 = vunpack.c.l.b16 %v750
      %v777 = vunpack.c.h.b16 %v750
      %v778 = vunpack.c.l.b16 %v751
      %v779 = vunpack.c.h.b16 %v751
      %v780 = vunpack.c.l.b16 %v752
      %v781 = vunpack.c.h.b16 %v752
      %v782 = vunpack.c.l.b16 %v753
      %v783 = vunpack.c.h.b16 %v753
      %v784 = vunpack.c.l.b16 %v754
      %v785 = vunpack.c.h.b16 %v754
      %v786 = vunpack.c.l.b16 %v755
      %v787 = vunpack.c.h.b16 %v755
      %v788 = vunpack.c.l.b16 %v756
      %v789 = vunpack.c.h.b16 %v756
      %v790 = vunpack.c.l.b16 %v757
      %v791 = vunpack.c.h.b16 %v757
      %v792 = vunpack.c.l.b16 %v758
      %v793 = vunpack.c.h.b16 %v758
      %v794 = vunpack.c.l.b16 %v759
      %v795 = vunpack.c.h.b16 %v759
      %v796 = vpack.c.b16 %v772, %v772
      %v797 = vpack.c.b16 %v773, %v773
      %v798 = vpack.c.b16 %v774, %v774
      %v799 = vpack.c.b16 %v775, %v775
      %v800 = vpack.c.b16 %v776, %v776
      %v801 = vpack.c.b16 %v777, %v777
      %v802 = vpack.c.b16 %v778, %v778
      %v803 = vpack.c.b16 %v779, %v779
      %v804 = vpack.c.b16 %v780, %v780
      %v805 = vpack.c.b16 %v781, %v781
      %v806 = vpack.c.b16 %v782, %v782
      %v807 = vpack.c.b16 %v783, %v783
      %v808 = vpack.c.b16 %v784, %v784
      %v809 = vpack.c.b16 %v785, %v785
      %v810 = vpack.c.b16 %v786, %v786
      %v811 = vpack.c.b16 %v787, %v787
      %v812 = vpack.c.b16 %v788, %v788
      %v813 = vpack.c.b16 %v789, %v789
      %v814 = vpack.c.b16 %v790, %v790
      %v815 = vpack.c.b16 %v791, %v791
      %v816 = vpack.c.b16 %v792, %v792
      %v817 = vpack.c.b16 %v793, %v793
      %v818 = vpack.c.b16 %v794, %v794
      %v819 = vpack.c.b16 %v795, %v795
      %844 = vst [vmem:[%s201] sm:$0xf] %v796
      %845 = vst [vmem:[%s201 + $0x4] sm:$0xf] %v797
      %846 = vst [vmem:[%s201 + $0x8] sm:$0xf] %v798
      %847 = vst [vmem:[%s201 + $0xc] sm:$0xf] %v799
      %848 = vst [vmem:[%s201 + $0x10] sm:$0xf] %v800
      %849 = vst [vmem:[%s201 + $0x14] sm:$0xf] %v801
      %850 = vst [vmem:[%s201 + $0x18] sm:$0xf] %v802
      %851 = vst [vmem:[%s201 + $0x1c] sm:$0xf] %v803
      %852 = vst [vmem:[%s201 + $0x20] sm:$0xf] %v804
      %853 = vst [vmem:[%s201 + $0x24] sm:$0xf] %v805
      %854 = vst [vmem:[%s201 + $0x28] sm:$0xf] %v806
      %855 = vst [vmem:[%s201 + $0x2c] sm:$0xf] %v807
      %856 = vst [vmem:[%s201 + $0x30] sm:$0xf] %v808
      %857 = vst [vmem:[%s201 + $0x34] sm:$0xf] %v809
      %858 = vst [vmem:[%s201 + $0x38] sm:$0xf] %v810
      %859 = vst [vmem:[%s201 + $0x3c] sm:$0xf] %v811
      %860 = vst [vmem:[%s201 + $0x40] sm:$0xf] %v812
      %861 = vst [vmem:[%s201 + $0x44] sm:$0xf] %v813
      %862 = vst [vmem:[%s201 + $0x48] sm:$0xf] %v814
      %863 = vst [vmem:[%s201 + $0x4c] sm:$0xf] %v815
      %864 = vst [vmem:[%s201 + $0x50] sm:$0xf] %v816
      %865 = vst [vmem:[%s201 + $0x54] sm:$0xf] %v817
      %866 = vst [vmem:[%s201 + $0x58] sm:$0xf] %v818
      %867 = vst [vmem:[%s201 + $0x5c] sm:$0xf] %v819
      %p868 = scmp.lt.s32.totalorder %s18, 1
      %s869 = scalar_select %p868, %s18, 1
      %p870 = scmp.lt.s32.totalorder %s19, 0
      %s871 = scalar_select %p870, %s19, 0
      %s872 = smul.addr %s869, 24
      %s873 = sadd.s32 %s871, %s872
      %s874 = smul.addr %s873, 4
      %s875 = scalar_lea.vmem %s3, %s874
      // Predicated region
      $region33: #{decoder_forward.7} parent=31 // pred_check
        %p876 = pneg %p116
      $region34: #{decoder_forward.7} parent=31 // pred_check_branch
        %878 = sbr.rel (%p876) target = $region36
      $region35: #{decoder_forward.7} parent=31 // pred_region
        _
      $region36: #{decoder_forward.7} parent=31 // pred_fallthru
        _
    $region32: #{decoder_forward.7} parent=5 // pred_fallthru
      _
    %p879 = scmp.le.s32.totalorder 2, %s9
    // Predicated region
    $region37: #{decoder_forward.7} parent=5 // pred_check
      %p880 = pneg %p879
    $region38: #{decoder_forward.7} parent=5 // pred_check_branch
      %882 = sbr.rel (%p880) target = $region40
    $region39: #{decoder_forward.7} parent=5 // pred_region
      %s883 = ssub.s32 %s9, 2
      // Predicated region
      $region41: #{decoder_forward.7} parent=39 // pred_check
        %p884 = pneg %p122
      $region42: #{decoder_forward.7} parent=39 // pred_check_branch
        %886 = sbr.rel (%p884) target = $region44
      $region43: #{decoder_forward.7} parent=39 // pred_region
        %p887 = scmp.lt.s32.totalorder %s20, 1
        %s888 = scalar_select %p887, %s20, 1
        %p889 = scmp.lt.s32.totalorder %s21, 0
        %s890 = scalar_select %p889, %s21, 0
        %s891 = smul.addr %s888, 24
        %s892 = sadd.s32 %s890, %s891
        %s893 = smul.addr %s892, 4
        %s894 = scalar_lea.vmem %s3, %s893
      $region44: #{decoder_forward.7} parent=39 // pred_fallthru
        _
    $region40: #{decoder_forward.7} parent=5 // pred_fallthru
      _
  $region6: #{decoder_forward.7} parent=0 // loop_footer
    %s13 = sadd.s32 1, %s9
  $region7: #{decoder_forward.7} parent=0 // loop_footer_branch
    %8 = sbr.rel target = $region3
  $region8: #{decoder_forward.7} parent=0 // loop_exit
    _

// kernel: decoder_forward.8
$region0: #{decoder_forward.8}
  #allocation0 [shape = 'u32[]', space=smem, size = 0x4, offset = 0x4, fixed_abs, tag = 'smem constant byte address 0x4 - core index']
  #allocation1 [shape = 'u32[144,128]{1,0:T(1,128)}', space=vmem, size = 0x12000, scoped, tag = 'internal scratch']
  %s0 = inlined_call_operand.vmem [shape: bf16[2,48,16], index: 0, kind: input, shape index: {}]
  %s1 = inlined_call_operand.vmem [shape: f32[48,1], index: 1, kind: input, shape index: {}]
  %s2 = inlined_call_operand.vmem [shape: f32[48,1], index: 2, kind: input, shape index: {}]
  %s3 = inlined_call_operand.vmem [shape: f32[48,48], index: 3, kind: input, shape index: {}]
  %s4 = inlined_call_operand.vmem [shape: bf16[2,48,16], index: 4, kind: output, shape index: {}]
  %s5 = sld [smem:[#allocation0]]
  $region49: #{decoder_forward.8} parent=0
    _
  %s7 = ssub.s32 1, %s5
  %s8 = scalar_select 0, %s7, %s5
  loop: start=0, step=1, limit=4
  $region2: #{decoder_forward.8} parent=0 // loop_pre_header
    _
  $region3: #{decoder_forward.8} parent=0 // loop_header
    %s10 = sphi 0, %s14
    %p11 = scmp.ge.s32.totalorder %s10, 4
    %s20 = sphi 0, %s22
    %s23 = sphi 0, %s20
    %s24 = sphi 0, %s23
    %s40 = sphi 0, %s24
    %s44 = sphi 0, %s44
    %s46 = sphi 0, %s44
    %s47 = sphi 0, %s46
    %s61 = sphi 0, %s47
    %s65 = sphi 0, %s65
    %s67 = sphi 0, %s65
    %s68 = sphi 0, %s67
    %s82 = sphi 0, %s68
    %s86 = sphi 0, %s86
    %s88 = sphi 0, %s86
    %s89 = sphi 0, %s88
    %s103 = sphi 0, %s89
    %s109 = sphi 0, %s111
    %s112 = sphi 0, %s109
    %s113 = sphi 0, %s112
    %s129 = sphi 0, %s113
  $region4: #{decoder_forward.8} parent=0 // loop_header_branch
    %13 = sbr.rel (%p11) target = $region8
  $region5: #{decoder_forward.8} parent=0 // loop_body
    %s15 = ssub.s32 %s10, 1
    %s16 = ssub.s32 %s10, 2
    %s17 = sadd.s32 %s10, 1
    %s18 = ssub.s32 %s10, %s17
    %p19 = scmp.eq.s32.totalorder %s18, 0
    %s21 = sadd.s32 %s20, 1
    %s22 = scalar_select %p19, %s20, %s21
    %p25 = pneg %p19
    %p26 = scmp.eq.s32.totalorder %s10, 1
    %p27 = por %p25, %p26
    %p28 = scmp.ne.s32.totalorder %s20, %s23
    %p29 = scmp.eq.s32.totalorder %s10, 0
    %p30 = por %p28, %p29
    %p31 = scmp.ne.s32.totalorder %s20, %s23
    %p32 = scmp.eq.s32.totalorder %s15, 1
    %p33 = por %p31, %p32
    %p34 = scmp.ne.s32.totalorder %s23, %s24
    %p35 = scmp.eq.s32.totalorder %s15, 0
    %p36 = por %p34, %p35
    %p37 = scmp.ne.s32.totalorder %s23, %s24
    %p38 = scmp.eq.s32.totalorder %s16, 1
    %p39 = por %p37, %p38
    %p41 = scmp.ne.s32.totalorder %s24, %s40
    %p42 = scmp.eq.s32.totalorder %s16, 0
    %p43 = por %p41, %p42
    %s45 = sadd.s32 %s44, 1
    %p48 = scmp.eq.s32.totalorder %s10, 1
    %p49 = scmp.ne.s32.totalorder %s44, %s46
    %p50 = scmp.eq.s32.totalorder %s10, 0
    %p51 = por %p49, %p50
    %p52 = scmp.ne.s32.totalorder %s44, %s46
    %p53 = scmp.eq.s32.totalorder %s15, 1
    %p54 = por %p52, %p53
    %p55 = scmp.ne.s32.totalorder %s46, %s47
    %p56 = scmp.eq.s32.totalorder %s15, 0
    %p57 = por %p55, %p56
    %p58 = scmp.ne.s32.totalorder %s46, %s47
    %p59 = scmp.eq.s32.totalorder %s16, 1
    %p60 = por %p58, %p59
    %p62 = scmp.ne.s32.totalorder %s47, %s61
    %p63 = scmp.eq.s32.totalorder %s16, 0
    %p64 = por %p62, %p63
    %s66 = sadd.s32 %s65, 1
    %p69 = scmp.eq.s32.totalorder %s10, 1
    %p70 = scmp.ne.s32.totalorder %s65, %s67
    %p71 = scmp.eq.s32.totalorder %s10, 0
    %p72 = por %p70, %p71
    %p73 = scmp.ne.s32.totalorder %s65, %s67
    %p74 = scmp.eq.s32.totalorder %s15, 1
    %p75 = por %p73, %p74
    %p76 = scmp.ne.s32.totalorder %s67, %s68
    %p77 = scmp.eq.s32.totalorder %s15, 0
    %p78 = por %p76, %p77
    %p79 = scmp.ne.s32.totalorder %s67, %s68
    %p80 = scmp.eq.s32.totalorder %s16, 1
    %p81 = por %p79, %p80
    %p83 = scmp.ne.s32.totalorder %s68, %s82
    %p84 = scmp.eq.s32.totalorder %s16, 0
    %p85 = por %p83, %p84
    %s87 = sadd.s32 %s86, 1
    %p90 = scmp.eq.s32.totalorder %s10, 1
    %p91 = scmp.ne.s32.totalorder %s86, %s88
    %p92 = scmp.eq.s32.totalorder %s10, 0
    %p93 = por %p91, %p92
    %p94 = scmp.ne.s32.totalorder %s86, %s88
    %p95 = scmp.eq.s32.totalorder %s15, 1
    %p96 = por %p94, %p95
    %p97 = scmp.ne.s32.totalorder %s88, %s89
    %p98 = scmp.eq.s32.totalorder %s15, 0
    %p99 = por %p97, %p98
    %p100 = scmp.ne.s32.totalorder %s88, %s89
    %p101 = scmp.eq.s32.totalorder %s16, 1
    %p102 = por %p100, %p101
    %p104 = scmp.ne.s32.totalorder %s89, %s103
    %p105 = scmp.eq.s32.totalorder %s16, 0
    %p106 = por %p104, %p105
    %s107 = ssub.s32 %s10, %s17
    %p108 = scmp.eq.s32.totalorder %s107, 0
    %s110 = sadd.s32 %s109, 1
    %s111 = scalar_select %p108, %s109, %s110
    %p114 = pneg %p108
    %p115 = scmp.eq.s32.totalorder %s10, 1
    %p116 = por %p114, %p115
    %p117 = scmp.ne.s32.totalorder %s109, %s112
    %p118 = scmp.eq.s32.totalorder %s10, 0
    %p119 = por %p117, %p118
    %p120 = scmp.ne.s32.totalorder %s109, %s112
    %p121 = scmp.eq.s32.totalorder %s15, 1
    %p122 = por %p120, %p121
    %p123 = scmp.ne.s32.totalorder %s112, %s113
    %p124 = scmp.eq.s32.totalorder %s15, 0
    %p125 = por %p123, %p124
    %p126 = scmp.ne.s32.totalorder %s112, %s113
    %p127 = scmp.eq.s32.totalorder %s16, 1
    %p128 = por %p126, %p127
    %p130 = scmp.ne.s32.totalorder %s113, %s129
    %p131 = scmp.eq.s32.totalorder %s16, 0
    %p132 = por %p130, %p131
    %p133 = scmp.le.s32.totalorder 1, %s10
    %p134 = scmp.lt.s32.totalorder %s10, 3
    %p135 = pnand %p133, %p134
    %p136 = pneg %p135
    // Predicated region
    $region9: #{decoder_forward.8} parent=5 // pred_check
      _
    $region10: #{decoder_forward.8} parent=5 // pred_check_branch
      %138 = sbr.rel (%p135) target = $region12
    $region11: #{decoder_forward.8} parent=5 // pred_region
      %s139 = ssub.s32 %s10, 1
      // Predicated region
      $region13: #{decoder_forward.8} parent=11 // pred_check
        %p140 = pneg %p57
      $region14: #{decoder_forward.8} parent=11 // pred_check_branch
        %142 = sbr.rel (%p140) target = $region16
      $region15: #{decoder_forward.8} parent=11 // pred_region
        _
      $region16: #{decoder_forward.8} parent=11 // pred_fallthru
        _
      // Predicated region
      $region17: #{decoder_forward.8} parent=11 // pred_check
        %p143 = pneg %p78
      $region18: #{decoder_forward.8} parent=11 // pred_check_branch
        %145 = sbr.rel (%p143) target = $region20
      $region19: #{decoder_forward.8} parent=11 // pred_region
        _
      $region20: #{decoder_forward.8} parent=11 // pred_fallthru
        _
      // Predicated region
      $region21: #{decoder_forward.8} parent=11 // pred_check
        %p146 = pneg %p99
      $region22: #{decoder_forward.8} parent=11 // pred_check_branch
        %148 = sbr.rel (%p146) target = $region24
      $region23: #{decoder_forward.8} parent=11 // pred_region
        _
      $region24: #{decoder_forward.8} parent=11 // pred_fallthru
        _
    $region12: #{decoder_forward.8} parent=5 // pred_fallthru
      _
    %p149 = scmp.lt.s32.totalorder %s10, 2
    // Predicated region
    $region25: #{decoder_forward.8} parent=5 // pred_check
      %p150 = pneg %p149
    $region26: #{decoder_forward.8} parent=5 // pred_check_branch
      %152 = sbr.rel (%p150) target = $region28
    $region27: #{decoder_forward.8} parent=5 // pred_region
      // Predicated region
      $region29: #{decoder_forward.8} parent=27 // pred_check
        %p153 = pneg %p30
      $region30: #{decoder_forward.8} parent=27 // pred_check_branch
        %155 = sbr.rel (%p153) target = $region32
      $region31: #{decoder_forward.8} parent=27 // pred_region
        %p156 = scmp.lt.s32.totalorder %s10, 1
        %s157 = scalar_select %p156, %s10, 1
        %s158 = smul.addr %s157, 6
        %s159 = smul.addr %s158, 4
        %s160 = scalar_lea.vmem %s0, %s159
      $region32: #{decoder_forward.8} parent=27 // pred_fallthru
        _
    $region28: #{decoder_forward.8} parent=5 // pred_fallthru
      _
    %p161 = scmp.le.s32.totalorder 1, %s10
    %p162 = scmp.lt.s32.totalorder %s10, 3
    %p163 = pnand %p161, %p162
    %p164 = pneg %p163
    // Predicated region
    $region33: #{decoder_forward.8} parent=5 // pred_check
      _
    $region34: #{decoder_forward.8} parent=5 // pred_check_branch
      %166 = sbr.rel (%p163) target = $region36
    $region35: #{decoder_forward.8} parent=5 // pred_region
      %s167 = ssub.s32 %s10, 1
      %p168 = scmp.lt.s32.totalorder %s15, 1
      %s169 = scalar_select %p168, %s15, 1
      %s170 = smul.addr %s169, 6
      %s171 = smul.addr %s170, 4
      %s172 = scalar_lea.vmem %s0, %s171
      %p173 = pneg %p36
      %p174 = pneg %p33
      %p175 = pneg %p57
      %p176 = pneg %p54
      %p177 = pneg %p78
      %p178 = pneg %p75
      %p179 = pneg %p99
      %p180 = pneg %p96
      %p181 = pneg %p125
      %p182 = pneg %p122
      %p183 = scmp.lt.s32.totalorder %s15, 1
      %s184 = scalar_select %p183, %s15, 1
      %s185 = smul.addr %s184, 6
      %s186 = smul.addr %s185, 4
      %s187 = scalar_lea.vmem %s4, %s186
      %p188 = scmp.lt.s32.totalorder %s15, 1
      %s189 = scalar_select %p188, %s15, 1
      %s190 = smul.addr %s189, 6
      %s191 = smul.addr %s190, 4
      %s192 = scalar_lea.vmem %s0, %s191
      %p193 = scmp.lt.s32.totalorder %s15, 1
      %s194 = scalar_select %p193, %s15, 1
      %s195 = smul.addr %s194, 6
      %s196 = smul.addr %s195, 4
      %s197 = scalar_lea.vmem %s4, %s196
      %v198 = vld [vmem:[%s192] sm:$0xf]
      %v199 = vld [vmem:[%s192 + $0x4] sm:$0xf]
      %v200 = vld [vmem:[%s192 + $0x8] sm:$0xf]
      %v201 = vld [vmem:[%s192 + $0xc] sm:$0xf]
      %v202 = vld [vmem:[%s192 + $0x10] sm:$0xf]
      %v203 = vld [vmem:[%s192 + $0x14] sm:$0xf]
      %v204 = vunpack.c.l.bf16 %v198
      %v205 = vunpack.c.l.bf16 %v199
      %v206 = vunpack.c.l.bf16 %v200
      %v207 = vunpack.c.l.bf16 %v201
      %v208 = vunpack.c.l.bf16 %v202
      %v209 = vunpack.c.l.bf16 %v203
      %vm210 = vcmask 130048
      %v211 = vsel %vm210, %v204, 0.0
      %212 = vadd.xlane.f32.xlu0 %v211
      %v213 = vpop.xlane.xlu0 %212
      %v214 = vsel %vm210, %v205, 0.0
      %215 = vadd.xlane.f32.xlu0 %v214
      %v216 = vpop.xlane.xlu0 %215
      %v217 = vsel %vm210, %v206, 0.0
      %218 = vadd.xlane.f32.xlu0 %v217
      %v219 = vpop.xlane.xlu0 %218
      %v220 = vsel %vm210, %v207, 0.0
      %221 = vadd.xlane.f32.xlu0 %v220
      %v222 = vpop.xlane.xlu0 %221
      %v223 = vsel %vm210, %v208, 0.0
      %224 = vadd.xlane.f32.xlu0 %v223
      %v225 = vpop.xlane.xlu0 %224
      %v226 = vsel %vm210, %v209, 0.0
      %227 = vadd.xlane.f32.xlu0 %v226
      %v228 = vpop.xlane.xlu0 %227
      %v229 = vld [vmem:[%s3] sm:$0xff]
      %v230 = vld [vmem:[%s3 + $0x8] sm:$0xff]
      %v231 = vld [vmem:[%s3 + $0x10] sm:$0xff]
      %v232 = vld [vmem:[%s3 + $0x18] sm:$0xff]
      %v233 = vld [vmem:[%s3 + $0x20] sm:$0xff]
      %v234 = vld [vmem:[%s3 + $0x28] sm:$0xff]
      %vm235 = vcmask 392192
      %v237 = vsel %vm235, %v229, 0
      %v240 = vsel %vm235, %v230, 0
      %v243 = vsel %vm235, %v231, 0
      %v246 = vsel %vm235, %v232, 0
      %v249 = vsel %vm235, %v233, 0
      %v252 = vsel %vm235, %v234, 0
      %254 = vmatprep.subr.mxu0 0.0
      %255 = vmatpush1.msra.mxu0 %v213
      %256 = vmatprep.subr.mxu0 0.0
      %257 = vmatpush1.msra.mxu0 %v216
      %258 = vmatprep.subr.mxu0 0.0
      %259 = vmatpush1.msra.mxu0 %v219
      %260 = vmatprep.subr.mxu0 0.0
      %261 = vmatpush1.msra.mxu0 %v222
      %262 = vmatprep.subr.mxu0 0.0
      %263 = vmatpush1.msra.mxu0 %v225
      %264 = vmatprep.subr.mxu0 0.0
      %265 = vmatpush1.msra.mxu0 %v228
      %266 = vmatprep.subr.mxu0 0.0
      %267 = vmatpush1.msra.mxu0 0.0
      %268 = vmatprep.subr.mxu0 0.0
      %269 = vmatpush1.msra.mxu0 0.0
      %270 = vmatprep.subr.mxu0 0.0
      %271 = vmatpush1.msra.mxu0 0.0
      %272 = vmatprep.subr.mxu0 0.0
      %273 = vmatpush1.msra.mxu0 0.0
      %274 = vmatprep.subr.mxu0 0.0
      %275 = vmatpush1.msra.mxu0 0.0
      %276 = vmatprep.subr.mxu0 0.0
      %277 = vmatpush1.msra.mxu0 0.0
      %278 = vmatprep.subr.mxu0 0.0
      %279 = vmatpush1.msra.mxu0 0.0
      %280 = vmatprep.subr.mxu0 0.0
      %281 = vmatpush1.msra.mxu0 0.0
      %282 = vmatprep.subr.mxu0 0.0
      %283 = vmatpush1.msra.mxu0 0.0
      %284 = vmatprep.subr.mxu0 0.0
      %285 = vmatpush1.msra.mxu0 0.0
      %286 = vmatprep.subr.mxu0 0.0
      %287 = vmatpush1.msra.mxu0 0.0
      %288 = vmatprep.subr.mxu0 0.0
      %289 = vmatpush1.msra.mxu0 0.0
      %290 = vmatprep.subr.mxu0 0.0
      %291 = vmatpush1.msra.mxu0 0.0
      %292 = vmatprep.subr.mxu0 0.0
      %293 = vmatpush1.msra.mxu0 0.0
      %294 = vmatprep.subr.mxu0 0.0
      %295 = vmatpush1.msra.mxu0 0.0
      %296 = vmatprep.subr.mxu0 0.0
      %297 = vmatpush1.msra.mxu0 0.0
      %298 = vmatprep.subr.mxu0 0.0
      %299 = vmatpush1.msra.mxu0 0.0
      %300 = vmatprep.subr.mxu0 0.0
      %301 = vmatpush1.msra.mxu0 0.0
      %302 = vmatprep.subr.mxu0 0.0
      %303 = vmatpush1.msra.mxu0 0.0
      %304 = vmatprep.subr.mxu0 0.0
      %305 = vmatpush1.msra.mxu0 0.0
      %306 = vmatprep.subr.mxu0 0.0
      %307 = vmatpush1.msra.mxu0 0.0
      %308 = vmatprep.subr.mxu0 0.0
      %309 = vmatpush1.msra.mxu0 0.0
      %310 = vmatprep.subr.mxu0 0.0
      %311 = vmatpush1.msra.mxu0 0.0
      %312 = vmatprep.subr.mxu0 0.0
      %313 = vmatpush1.msra.mxu0 0.0
      %314 = vmatprep.subr.mxu0 0.0
      %315 = vmatpush1.msra.mxu0 0.0
      %316 = vmatprep.subr.mxu0 0.0
      %317 = vmatpush1.msra.mxu0 0.0
      %318 = vmatprep.mubr.f32.mxu0 0.0
      %319 = vmatmul.mubr.f32.gmra.mrb[0].mxu0 %v237
      %v320 = vpop.f32.mrb[0].mxu0
      %v321 = vadd.f32 0.0, %v320
      %v322 = vpop.f32.mrb[0].mxu0
      %323 = vmatprep.mubr.f32.mxu0 0.0
      %324 = vmatmul.mubr.f32.gmra.mrb[0].mxu0 %v240
      %v325 = vpop.f32.mrb[0].mxu0
      %v326 = vadd.f32 0.0, %v325
      %v327 = vpop.f32.mrb[0].mxu0
      %328 = vmatprep.mubr.f32.mxu0 0.0
      %329 = vmatmul.mubr.f32.gmra.mrb[0].mxu0 %v243
      %v330 = vpop.f32.mrb[0].mxu0
      %v331 = vadd.f32 0.0, %v330
      %v332 = vpop.f32.mrb[0].mxu0
      %333 = vmatprep.mubr.f32.mxu0 0.0
      %334 = vmatmul.mubr.f32.gmra.mrb[0].mxu0 %v246
      %v335 = vpop.f32.mrb[0].mxu0
      %v336 = vadd.f32 0.0, %v335
      %v337 = vpop.f32.mrb[0].mxu0
      %338 = vmatprep.mubr.f32.mxu0 0.0
      %339 = vmatmul.mubr.f32.gmra.mrb[0].mxu0 %v249
      %v340 = vpop.f32.mrb[0].mxu0
      %v341 = vadd.f32 0.0, %v340
      %v342 = vpop.f32.mrb[0].mxu0
      %343 = vmatprep.mubr.f32.mxu0 0.0
      %344 = vmatmul.mubr.f32.gmra.mrb[0].mxu0 %v252
      %v345 = vpop.f32.mrb[0].mxu0
      %v346 = vadd.f32 0.0, %v345
      %v347 = vpop.f32.mrb[0].mxu0
      %348 = vdwg.mxu0
      %v349 = vmul.f32 %v321, 0.010416667
      %v350 = vmul.f32 %v326, 0.010416667
      %v351 = vmul.f32 %v331, 0.010416667
      %v352 = vmul.f32 %v336, 0.010416667
      %v353 = vmul.f32 %v341, 0.010416667
      %v354 = vmul.f32 %v346, 0.010416667
      %356 = vset.pattern.permute.xlu0 0
      %357 = vperm.xlu0 %356, %v349
      %v358 = vpop.permute.xlu0 %357
      %361 = vset.pattern.permute.xlu0 0
      %362 = vperm.xlu0 %361, %v350
      %v363 = vpop.permute.xlu0 %362
      %366 = vset.pattern.permute.xlu0 0
      %367 = vperm.xlu0 %366, %v351
      %v368 = vpop.permute.xlu0 %367
      %371 = vset.pattern.permute.xlu0 0
      %372 = vperm.xlu0 %371, %v352
      %v373 = vpop.permute.xlu0 %372
      %376 = vset.pattern.permute.xlu0 0
      %377 = vperm.xlu0 %376, %v353
      %v378 = vpop.permute.xlu0 %377
      %381 = vset.pattern.permute.xlu0 0
      %382 = vperm.xlu0 %381, %v354
      %v383 = vpop.permute.xlu0 %382
      %v385 = vsub.f32 %v204, %v358
      %v386 = vsub.f32 %v205, %v363
      %v387 = vsub.f32 %v206, %v368
      %v388 = vsub.f32 %v207, %v373
      %v389 = vsub.f32 %v208, %v378
      %v390 = vsub.f32 %v209, %v383
      %v391 = vmul.f32 %v385, %v385
      %v392 = vmul.f32 %v386, %v386
      %v393 = vmul.f32 %v387, %v387
      %v394 = vmul.f32 %v388, %v388
      %v395 = vmul.f32 %v389, %v389
      %v396 = vmul.f32 %v390, %v390
      %v397 = vsel %vm210, %v391, 0.0
      %398 = vadd.xlane.f32.xlu0 %v397
      %v399 = vpop.xlane.xlu0 %398
      %v400 = vsel %vm210, %v392, 0.0
      %401 = vadd.xlane.f32.xlu0 %v400
      %v402 = vpop.xlane.xlu0 %401
      %v403 = vsel %vm210, %v393, 0.0
      %404 = vadd.xlane.f32.xlu0 %v403
      %v405 = vpop.xlane.xlu0 %404
      %v406 = vsel %vm210, %v394, 0.0
      %407 = vadd.xlane.f32.xlu0 %v406
      %v408 = vpop.xlane.xlu0 %407
      %v409 = vsel %vm210, %v395, 0.0
      %410 = vadd.xlane.f32.xlu0 %v409
      %v411 = vpop.xlane.xlu0 %410
      %v412 = vsel %vm210, %v396, 0.0
      %413 = vadd.xlane.f32.xlu0 %v412
      %v414 = vpop.xlane.xlu0 %413
      %415 = vmatprep.subr.mxu0 0.0
      %416 = vmatpush1.msra.mxu0 %v399
      %417 = vmatprep.subr.mxu0 0.0
      %418 = vmatpush1.msra.mxu0 %v402
      %419 = vmatprep.subr.mxu0 0.0
      %420 = vmatpush1.msra.mxu0 %v405
      %421 = vmatprep.subr.mxu0 0.0
      %422 = vmatpush1.msra.mxu0 %v408
      %423 = vmatprep.subr.mxu0 0.0
      %424 = vmatpush1.msra.mxu0 %v411
      %425 = vmatprep.subr.mxu0 0.0
      %426 = vmatpush1.msra.mxu0 %v414
      %427 = vmatprep.subr.mxu0 0.0
      %428 = vmatpush1.msra.mxu0 0.0
      %429 = vmatprep.subr.mxu0 0.0
      %430 = vmatpush1.msra.mxu0 0.0
      %431 = vmatprep.subr.mxu0 0.0
      %432 = vmatpush1.msra.mxu0 0.0
      %433 = vmatprep.subr.mxu0 0.0
      %434 = vmatpush1.msra.mxu0 0.0
      %435 = vmatprep.subr.mxu0 0.0
      %436 = vmatpush1.msra.mxu0 0.0
      %437 = vmatprep.subr.mxu0 0.0
      %438 = vmatpush1.msra.mxu0 0.0
      %439 = vmatprep.subr.mxu0 0.0
      %440 = vmatpush1.msra.mxu0 0.0
      %441 = vmatprep.subr.mxu0 0.0
      %442 = vmatpush1.msra.mxu0 0.0
      %443 = vmatprep.subr.mxu0 0.0
      %444 = vmatpush1.msra.mxu0 0.0
      %445 = vmatprep.subr.mxu0 0.0
      %446 = vmatpush1.msra.mxu0 0.0
      %447 = vmatprep.subr.mxu0 0.0
      %448 = vmatpush1.msra.mxu0 0.0
      %449 = vmatprep.subr.mxu0 0.0
      %450 = vmatpush1.msra.mxu0 0.0
      %451 = vmatprep.subr.mxu0 0.0
      %452 = vmatpush1.msra.mxu0 0.0
      %453 = vmatprep.subr.mxu0 0.0
      %454 = vmatpush1.msra.mxu0 0.0
      %455 = vmatprep.subr.mxu0 0.0
      %456 = vmatpush1.msra.mxu0 0.0
      %457 = vmatprep.subr.mxu0 0.0
      %458 = vmatpush1.msra.mxu0 0.0
      %459 = vmatprep.subr.mxu0 0.0
      %460 = vmatpush1.msra.mxu0 0.0
      %461 = vmatprep.subr.mxu0 0.0
      %462 = vmatpush1.msra.mxu0 0.0
      %463 = vmatprep.subr.mxu0 0.0
      %464 = vmatpush1.msra.mxu0 0.0
      %465 = vmatprep.subr.mxu0 0.0
      %466 = vmatpush1.msra.mxu0 0.0
      %467 = vmatprep.subr.mxu0 0.0
      %468 = vmatpush1.msra.mxu0 0.0
      %469 = vmatprep.subr.mxu0 0.0
      %470 = vmatpush1.msra.mxu0 0.0
      %471 = vmatprep.subr.mxu0 0.0
      %472 = vmatpush1.msra.mxu0 0.0
      %473 = vmatprep.subr.mxu0 0.0
      %474 = vmatpush1.msra.mxu0 0.0
      %475 = vmatprep.subr.mxu0 0.0
      %476 = vmatpush1.msra.mxu0 0.0
      %477 = vmatprep.subr.mxu0 0.0
      %478 = vmatpush1.msra.mxu0 0.0
      %479 = vmatprep.mubr.f32.mxu0 0.0
      %480 = vmatmul.mubr.f32.gmra.mrb[0].mxu0 %v237
      %v481 = vpop.f32.mrb[0].mxu0
      %v482 = vadd.f32 0.0, %v481
      %v483 = vpop.f32.mrb[0].mxu0
      %484 = vmatprep.mubr.f32.mxu0 0.0
      %485 = vmatmul.mubr.f32.gmra.mrb[0].mxu0 %v240
      %v486 = vpop.f32.mrb[0].mxu0
      %v487 = vadd.f32 0.0, %v486
      %v488 = vpop.f32.mrb[0].mxu0
      %489 = vmatprep.mubr.f32.mxu0 0.0
      %490 = vmatmul.mubr.f32.gmra.mrb[0].mxu0 %v243
      %v491 = vpop.f32.mrb[0].mxu0
      %v492 = vadd.f32 0.0, %v491
      %v493 = vpop.f32.mrb[0].mxu0
      %494 = vmatprep.mubr.f32.mxu0 0.0
      %495 = vmatmul.mubr.f32.gmra.mrb[0].mxu0 %v246
      %v496 = vpop.f32.mrb[0].mxu0
      %v497 = vadd.f32 0.0, %v496
      %v498 = vpop.f32.mrb[0].mxu0
      %499 = vmatprep.mubr.f32.mxu0 0.0
      %500 = vmatmul.mubr.f32.gmra.mrb[0].mxu0 %v249
      %v501 = vpop.f32.mrb[0].mxu0
      %v502 = vadd.f32 0.0, %v501
      %v503 = vpop.f32.mrb[0].mxu0
      %504 = vmatprep.mubr.f32.mxu0 0.0
      %505 = vmatmul.mubr.f32.gmra.mrb[0].mxu0 %v252
      %v506 = vpop.f32.mrb[0].mxu0
      %v507 = vadd.f32 0.0, %v506
      %v508 = vpop.f32.mrb[0].mxu0
      %509 = vdwg.mxu0
      %v510 = vmul.f32 %v482, 0.010416667
      %v511 = vmul.f32 %v487, 0.010416667
      %v512 = vmul.f32 %v492, 0.010416667
      %v513 = vmul.f32 %v497, 0.010416667
      %v514 = vmul.f32 %v502, 0.010416667
      %v515 = vmul.f32 %v507, 0.010416667
      %v516 = vadd.f32 %v510, 1e-05
      %v517 = vadd.f32 %v511, 1e-05
      %v518 = vadd.f32 %v512, 1e-05
      %v519 = vadd.f32 %v513, 1e-05
      %v520 = vadd.f32 %v514, 1e-05
      %v521 = vadd.f32 %v515, 1e-05
      %v522 = vrsqrt.pop %v516
      %v523 = vrsqrt.pop %v517
      %v524 = vrsqrt.pop %v518
      %v525 = vrsqrt.pop %v519
      %v526 = vrsqrt.pop %v520
      %v527 = vrsqrt.pop %v521
      %529 = vset.pattern.permute.xlu0 0
      %530 = vperm.xlu0 %529, %v522
      %v531 = vpop.permute.xlu0 %530
      %534 = vset.pattern.permute.xlu0 0
      %535 = vperm.xlu0 %534, %v523
      %v536 = vpop.permute.xlu0 %535
      %539 = vset.pattern.permute.xlu0 0
      %540 = vperm.xlu0 %539, %v524
      %v541 = vpop.permute.xlu0 %540
      %544 = vset.pattern.permute.xlu0 0
      %545 = vperm.xlu0 %544, %v525
      %v546 = vpop.permute.xlu0 %545
      %549 = vset.pattern.permute.xlu0 0
      %550 = vperm.xlu0 %549, %v526
      %v551 = vpop.permute.xlu0 %550
      %554 = vset.pattern.permute.xlu0 0
      %555 = vperm.xlu0 %554, %v527
      %v556 = vpop.permute.xlu0 %555
      %v558 = vmul.f32 %v385, %v531
      %v559 = vmul.f32 %v386, %v536
      %v560 = vmul.f32 %v387, %v541
      %v561 = vmul.f32 %v388, %v546
      %v562 = vmul.f32 %v389, %v551
      %v563 = vmul.f32 %v390, %v556
      %v564 = vld [vmem:[%s1] sm:$0xff]
      %v565 = vld [vmem:[%s1 + $0x8] sm:$0xff]
      %v566 = vld [vmem:[%s1 + $0x10] sm:$0xff]
      %v567 = vld [vmem:[%s1 + $0x18] sm:$0xff]
      %v568 = vld [vmem:[%s1 + $0x20] sm:$0xff]
      %v569 = vld [vmem:[%s1 + $0x28] sm:$0xff]
      %571 = vset.pattern.permute.xlu0 0
      %572 = vperm.xlu0 %571, %v564
      %v573 = vpop.permute.xlu0 %572
      %576 = vset.pattern.permute.xlu0 0
      %577 = vperm.xlu0 %576, %v565
      %v578 = vpop.permute.xlu0 %577
      %581 = vset.pattern.permute.xlu0 0
      %582 = vperm.xlu0 %581, %v566
      %v583 = vpop.permute.xlu0 %582
      %586 = vset.pattern.permute.xlu0 0
      %587 = vperm.xlu0 %586, %v567
      %v588 = vpop.permute.xlu0 %587
      %591 = vset.pattern.permute.xlu0 0
      %592 = vperm.xlu0 %591, %v568
      %v593 = vpop.permute.xlu0 %592
      %596 = vset.pattern.permute.xlu0 0
      %597 = vperm.xlu0 %596, %v569
      %v598 = vpop.permute.xlu0 %597
      %v600 = vmul.f32 %v558, %v573
      %v601 = vmul.f32 %v559, %v578
      %v602 = vmul.f32 %v560, %v583
      %v603 = vmul.f32 %v561, %v588
      %v604 = vmul.f32 %v562, %v593
      %v605 = vmul.f32 %v563, %v598
      %v606 = vld [vmem:[%s2] sm:$0xff]
      %v607 = vld [vmem:[%s2 + $0x8] sm:$0xff]
      %v608 = vld [vmem:[%s2 + $0x10] sm:$0xff]
      %v609 = vld [vmem:[%s2 + $0x18] sm:$0xff]
      %v610 = vld [vmem:[%s2 + $0x20] sm:$0xff]
      %v611 = vld [vmem:[%s2 + $0x28] sm:$0xff]
      %613 = vset.pattern.permute.xlu0 0
      %614 = vperm.xlu0 %613, %v606
      %v615 = vpop.permute.xlu0 %614
      %618 = vset.pattern.permute.xlu0 0
      %619 = vperm.xlu0 %618, %v607
      %v620 = vpop.permute.xlu0 %619
      %623 = vset.pattern.permute.xlu0 0
      %624 = vperm.xlu0 %623, %v608
      %v625 = vpop.permute.xlu0 %624
      %628 = vset.pattern.permute.xlu0 0
      %629 = vperm.xlu0 %628, %v609
      %v630 = vpop.permute.xlu0 %629
      %633 = vset.pattern.permute.xlu0 0
      %634 = vperm.xlu0 %633, %v610
      %v635 = vpop.permute.xlu0 %634
      %638 = vset.pattern.permute.xlu0 0
      %639 = vperm.xlu0 %638, %v611
      %v640 = vpop.permute.xlu0 %639
      %v642 = vadd.f32 %v600, %v615
      %v643 = vadd.f32 %v601, %v620
      %v644 = vadd.f32 %v602, %v625
      %v645 = vadd.f32 %v603, %v630
      %v646 = vadd.f32 %v604, %v635
      %v647 = vadd.f32 %v605, %v640
      %vm648 = vcmp.ge.f32.partialorder %v642, 0.0
      %vm649 = vcmp.ge.f32.partialorder %v643, 0.0
      %vm650 = vcmp.ge.f32.partialorder %v644, 0.0
      %vm651 = vcmp.ge.f32.partialorder %v645, 0.0
      %vm652 = vcmp.ge.f32.partialorder %v646, 0.0
      %vm653 = vcmp.ge.f32.partialorder %v647, 0.0
      %v654 = vmul.f32 %v642, 0.01
      %v655 = vmul.f32 %v643, 0.01
      %v656 = vmul.f32 %v644, 0.01
      %v657 = vmul.f32 %v645, 0.01
      %v658 = vmul.f32 %v646, 0.01
      %v659 = vmul.f32 %v647, 0.01
      %v660 = vsel %vm648, %v642, %v654
      %v661 = vsel %vm649, %v643, %v655
      %v662 = vsel %vm650, %v644, %v656
      %v663 = vsel %vm651, %v645, %v657
      %v664 = vsel %vm652, %v646, %v658
      %v665 = vsel %vm653, %v647, %v659
      %v666 = vpack.c.bf16 %v661, %v660
      %v667 = vpack.c.bf16 %v663, %v662
      %v668 = vpack.c.bf16 %v665, %v664
      %v672 = vunpack.c.l.b16 %v666
      %v673 = vunpack.c.h.b16 %v666
      %v674 = vunpack.c.l.b16 %v667
      %v675 = vunpack.c.h.b16 %v667
      %v676 = vunpack.c.l.b16 %v668
      %v677 = vunpack.c.h.b16 %v668
      %v678 = vpack.c.b16 %v672, %v672
      %v679 = vpack.c.b16 %v673, %v673
      %v680 = vpack.c.b16 %v674, %v674
      %v681 = vpack.c.b16 %v675, %v675
      %v682 = vpack.c.b16 %v676, %v676
      %v683 = vpack.c.b16 %v677, %v677
      %vm690 = vcmask 125952
      %691 = vst.msk [vmem:[%s197] sm:$0xf] %vm690, %v678
      %692 = vst.msk [vmem:[%s197 + $0x4] sm:$0xf] %vm690, %v679
      %693 = vst.msk [vmem:[%s197 + $0x8] sm:$0xf] %vm690, %v680
      %694 = vst.msk [vmem:[%s197 + $0xc] sm:$0xf] %vm690, %v681
      %695 = vst.msk [vmem:[%s197 + $0x10] sm:$0xf] %vm690, %v682
      %696 = vst.msk [vmem:[%s197 + $0x14] sm:$0xf] %vm690, %v683
      %p697 = scmp.lt.s32.totalorder %s15, 1
      %s698 = scalar_select %p697, %s15, 1
      %s699 = smul.addr %s698, 6
      %s700 = smul.addr %s699, 4
      %s701 = scalar_lea.vmem %s4, %s700
      // Predicated region
      $region37: #{decoder_forward.8} parent=35 // pred_check
        %p702 = pneg %p122
      $region38: #{decoder_forward.8} parent=35 // pred_check_branch
        %704 = sbr.rel (%p702) target = $region40
      $region39: #{decoder_forward.8} parent=35 // pred_region
        _
      $region40: #{decoder_forward.8} parent=35 // pred_fallthru
        _
    $region36: #{decoder_forward.8} parent=5 // pred_fallthru
      _
    %p705 = scmp.le.s32.totalorder 2, %s10
    // Predicated region
    $region41: #{decoder_forward.8} parent=5 // pred_check
      %p706 = pneg %p705
    $region42: #{decoder_forward.8} parent=5 // pred_check_branch
      %708 = sbr.rel (%p706) target = $region44
    $region43: #{decoder_forward.8} parent=5 // pred_region
      %s709 = ssub.s32 %s10, 2
      // Predicated region
      $region45: #{decoder_forward.8} parent=43 // pred_check
        %p710 = pneg %p128
      $region46: #{decoder_forward.8} parent=43 // pred_check_branch
        %712 = sbr.rel (%p710) target = $region48
      $region47: #{decoder_forward.8} parent=43 // pred_region
        %p713 = scmp.lt.s32.totalorder %s16, 1
        %s714 = scalar_select %p713, %s16, 1
        %s715 = smul.addr %s714, 6
        %s716 = smul.addr %s715, 4
        %s717 = scalar_lea.vmem %s4, %s716
      $region48: #{decoder_forward.8} parent=43 // pred_fallthru
        _
    $region44: #{decoder_forward.8} parent=5 // pred_fallthru
      _
  $region6: #{decoder_forward.8} parent=0 // loop_footer
    %s14 = sadd.s32 1, %s10
  $region7: #{decoder_forward.8} parent=0 // loop_footer_branch
    %9 = sbr.rel target = $region3
  $region8: #{decoder_forward.8} parent=0 // loop_exit
    _

// kernel: decoder_forward.9
$region0: #{decoder_forward.9}
  #allocation0 [shape = 'u32[]', space=smem, size = 0x4, offset = 0x4, fixed_abs, tag = 'smem constant byte address 0x4 - core index']
  #allocation1 [shape = 'u32[144,128]{1,0:T(1,128)}', space=vmem, size = 0x12000, scoped, tag = 'internal scratch']
  %s0 = inlined_call_operand.vmem [shape: bf16[128,192], index: 0, kind: input, shape index: {}]
  %s1 = inlined_call_operand.vmem [shape: bf16[2,192,128], index: 1, kind: input, shape index: {}]
  %s2 = inlined_call_operand.vmem [shape: f32[128,1], index: 2, kind: input, shape index: {}]
  %s3 = inlined_call_operand.vmem [shape: bf16[2,128,128], index: 3, kind: output, shape index: {}]
  %s4 = sld [smem:[#allocation0]]
  $region45: #{decoder_forward.9} parent=0
    _
  %s6 = ssub.s32 1, %s4
  %s7 = scalar_select 0, %s6, %s4
  loop: start=0, step=1, limit=4
  $region2: #{decoder_forward.9} parent=0 // loop_pre_header
    _
  $region3: #{decoder_forward.9} parent=0 // loop_header
    %s9 = sphi 0, %s13
    %p10 = scmp.ge.s32.totalorder %s9, 4
    %s16 = sphi 0, %s28
    %s17 = sphi 0, %s24
    %s18 = sphi 0, %s16
    %s19 = sphi 0, %s17
    %s20 = sphi 0, %s18
    %s21 = sphi 0, %s19
    %s29 = sphi 0, %s29
    %s31 = sphi 0, %s29
    %s32 = sphi 0, %s31
    %s46 = sphi 0, %s32
    %s54 = sphi 0, %s56
    %s57 = sphi 0, %s54
    %s58 = sphi 0, %s57
    %s74 = sphi 0, %s58
    %s78 = sphi 0, %s78
    %s80 = sphi 0, %s78
    %s81 = sphi 0, %s80
    %s95 = sphi 0, %s81
    %s103 = sphi 0, %s105
    %s106 = sphi 0, %s103
    %s107 = sphi 0, %s106
    %s123 = sphi 0, %s107
  $region4: #{decoder_forward.9} parent=0 // loop_header_branch
    %12 = sbr.rel (%p10) target = $region8
  $region5: #{decoder_forward.9} parent=0 // loop_body
    %s14 = ssub.s32 %s9, 1
    %s15 = ssub.s32 %s9, 2
    %s22 = sadd.s32 1, %s17
    %p23 = scmp.ge.s32.totalorder %s22, 1
    %s24 = scalar_select %p23, 0, %s22
    %s25 = sadd.s32 1, %s16
    %s26 = scalar_select %p23, %s25, %s16
    %p27 = scmp.ge.s32.totalorder %s26, 2
    %s28 = scalar_select %p27, 0, %s26
    %s30 = sadd.s32 %s29, 1
    %p33 = scmp.eq.s32.totalorder %s9, 1
    %p34 = scmp.ne.s32.totalorder %s29, %s31
    %p35 = scmp.eq.s32.totalorder %s9, 0
    %p36 = por %p34, %p35
    %p37 = scmp.ne.s32.totalorder %s29, %s31
    %p38 = scmp.eq.s32.totalorder %s14, 1
    %p39 = por %p37, %p38
    %p40 = scmp.ne.s32.totalorder %s31, %s32
    %p41 = scmp.eq.s32.totalorder %s14, 0
    %p42 = por %p40, %p41
    %p43 = scmp.ne.s32.totalorder %s31, %s32
    %p44 = scmp.eq.s32.totalorder %s15, 1
    %p45 = por %p43, %p44
    %p47 = scmp.ne.s32.totalorder %s32, %s46
    %p48 = scmp.eq.s32.totalorder %s15, 0
    %p49 = por %p47, %p48
    %s50 = ssub.s32 %s16, %s28
    %s51 = ssub.s32 %s17, %s24
    %s52 = sor.u32 %s50, %s51
    %p53 = scmp.eq.s32.totalorder %s52, 0
    %s55 = sadd.s32 %s54, 1
    %s56 = scalar_select %p53, %s54, %s55
    %p59 = pneg %p53
    %p60 = scmp.eq.s32.totalorder %s9, 1
    %p61 = por %p59, %p60
    %p62 = scmp.ne.s32.totalorder %s54, %s57
    %p63 = scmp.eq.s32.totalorder %s9, 0
    %p64 = por %p62, %p63
    %p65 = scmp.ne.s32.totalorder %s54, %s57
    %p66 = scmp.eq.s32.totalorder %s14, 1
    %p67 = por %p65, %p66
    %p68 = scmp.ne.s32.totalorder %s57, %s58
    %p69 = scmp.eq.s32.totalorder %s14, 0
    %p70 = por %p68, %p69
    %p71 = scmp.ne.s32.totalorder %s57, %s58
    %p72 = scmp.eq.s32.totalorder %s15, 1
    %p73 = por %p71, %p72
    %p75 = scmp.ne.s32.totalorder %s58, %s74
    %p76 = scmp.eq.s32.totalorder %s15, 0
    %p77 = por %p75, %p76
    %s79 = sadd.s32 %s78, 1
    %p82 = scmp.eq.s32.totalorder %s9, 1
    %p83 = scmp.ne.s32.totalorder %s78, %s80
    %p84 = scmp.eq.s32.totalorder %s9, 0
    %p85 = por %p83, %p84
    %p86 = scmp.ne.s32.totalorder %s78, %s80
    %p87 = scmp.eq.s32.totalorder %s14, 1
    %p88 = por %p86, %p87
    %p89 = scmp.ne.s32.totalorder %s80, %s81
    %p90 = scmp.eq.s32.totalorder %s14, 0
    %p91 = por %p89, %p90
    %p92 = scmp.ne.s32.totalorder %s80, %s81
    %p93 = scmp.eq.s32.totalorder %s15, 1
    %p94 = por %p92, %p93
    %p96 = scmp.ne.s32.totalorder %s81, %s95
    %p97 = scmp.eq.s32.totalorder %s15, 0
    %p98 = por %p96, %p97
    %s99 = ssub.s32 %s16, %s28
    %s100 = ssub.s32 %s17, %s24
    %s101 = sor.u32 %s99, %s100
    %p102 = scmp.eq.s32.totalorder %s101, 0
    %s104 = sadd.s32 %s103, 1
    %s105 = scalar_select %p102, %s103, %s104
    %p108 = pneg %p102
    %p109 = scmp.eq.s32.totalorder %s9, 1
    %p110 = por %p108, %p109
    %p111 = scmp.ne.s32.totalorder %s103, %s106
    %p112 = scmp.eq.s32.totalorder %s9, 0
    %p113 = por %p111, %p112
    %p114 = scmp.ne.s32.totalorder %s103, %s106
    %p115 = scmp.eq.s32.totalorder %s14, 1
    %p116 = por %p114, %p115
    %p117 = scmp.ne.s32.totalorder %s106, %s107
    %p118 = scmp.eq.s32.totalorder %s14, 0
    %p119 = por %p117, %p118
    %p120 = scmp.ne.s32.totalorder %s106, %s107
    %p121 = scmp.eq.s32.totalorder %s15, 1
    %p122 = por %p120, %p121
    %p124 = scmp.ne.s32.totalorder %s107, %s123
    %p125 = scmp.eq.s32.totalorder %s15, 0
    %p126 = por %p124, %p125
    %p127 = scmp.le.s32.totalorder 1, %s9
    %p128 = scmp.lt.s32.totalorder %s9, 3
    %p129 = pnand %p127, %p128
    %p130 = pneg %p129
    // Predicated region
    $region9: #{decoder_forward.9} parent=5 // pred_check
      _
    $region10: #{decoder_forward.9} parent=5 // pred_check_branch
      %132 = sbr.rel (%p129) target = $region12
    $region11: #{decoder_forward.9} parent=5 // pred_region
      %s133 = ssub.s32 %s9, 1
      // Predicated region
      $region13: #{decoder_forward.9} parent=11 // pred_check
        %p134 = pneg %p42
      $region14: #{decoder_forward.9} parent=11 // pred_check_branch
        %136 = sbr.rel (%p134) target = $region16
      $region15: #{decoder_forward.9} parent=11 // pred_region
        _
      $region16: #{decoder_forward.9} parent=11 // pred_fallthru
        _
      // Predicated region
      $region17: #{decoder_forward.9} parent=11 // pred_check
        %p137 = pneg %p91
      $region18: #{decoder_forward.9} parent=11 // pred_check_branch
        %139 = sbr.rel (%p137) target = $region20
      $region19: #{decoder_forward.9} parent=11 // pred_region
        _
      $region20: #{decoder_forward.9} parent=11 // pred_fallthru
        _
    $region12: #{decoder_forward.9} parent=5 // pred_fallthru
      _
    %p140 = scmp.lt.s32.totalorder %s9, 2
    // Predicated region
    $region21: #{decoder_forward.9} parent=5 // pred_check
      %p141 = pneg %p140
    $region22: #{decoder_forward.9} parent=5 // pred_check_branch
      %143 = sbr.rel (%p141) target = $region24
    $region23: #{decoder_forward.9} parent=5 // pred_region
      // Predicated region
      $region25: #{decoder_forward.9} parent=23 // pred_check
        %p144 = pneg %p64
      $region26: #{decoder_forward.9} parent=23 // pred_check_branch
        %146 = sbr.rel (%p144) target = $region28
      $region27: #{decoder_forward.9} parent=23 // pred_region
        %p147 = scmp.lt.s32.totalorder %s16, 1
        %s148 = scalar_select %p147, %s16, 1
        %p149 = scmp.lt.s32.totalorder %s17, 0
        %s150 = scalar_select %p149, %s17, 0
        %s151 = smul.addr %s148, 24
        %s152 = sadd.s32 %s150, %s151
        %s153 = smul.addr %s152, 4
        %s154 = scalar_lea.vmem %s1, %s153
      $region28: #{decoder_forward.9} parent=23 // pred_fallthru
        _
    $region24: #{decoder_forward.9} parent=5 // pred_fallthru
      _
    %p155 = scmp.le.s32.totalorder 1, %s9
    %p156 = scmp.lt.s32.totalorder %s9, 3
    %p157 = pnand %p155, %p156
    %p158 = pneg %p157
    // Predicated region
    $region29: #{decoder_forward.9} parent=5 // pred_check
      _
    $region30: #{decoder_forward.9} parent=5 // pred_check_branch
      %160 = sbr.rel (%p157) target = $region32
    $region31: #{decoder_forward.9} parent=5 // pred_region
      %s161 = ssub.s32 %s9, 1
      %p162 = pneg %p42
      %p163 = pneg %p39
      %p164 = scmp.lt.s32.totalorder %s18, 1
      %s165 = scalar_select %p164, %s18, 1
      %p166 = scmp.lt.s32.totalorder %s19, 0
      %s167 = scalar_select %p166, %s19, 0
      %s168 = smul.addr %s165, 24
      %s169 = sadd.s32 %s167, %s168
      %s170 = smul.addr %s169, 4
      %s171 = scalar_lea.vmem %s1, %s170
      %p172 = pneg %p70
      %p173 = pneg %p67
      %p174 = pneg %p91
      %p175 = pneg %p88
      %p176 = pneg %p119
      %p177 = pneg %p116
      %p178 = scmp.lt.s32.totalorder %s18, 1
      %s179 = scalar_select %p178, %s18, 1
      %p180 = scmp.lt.s32.totalorder %s19, 0
      %s181 = scalar_select %p180, %s19, 0
      %s182 = smul.addr %s179, 16
      %s183 = sadd.s32 %s181, %s182
      %s184 = smul.addr %s183, 4
      %s185 = scalar_lea.vmem %s3, %s184
      %p186 = scmp.lt.s32.totalorder %s18, 1
      %s187 = scalar_select %p186, %s18, 1
      %p188 = scmp.lt.s32.totalorder %s19, 0
      %s189 = scalar_select %p188, %s19, 0
      %s190 = smul.addr %s187, 24
      %s191 = sadd.s32 %s189, %s190
      %s192 = smul.addr %s191, 4
      %s193 = scalar_lea.vmem %s1, %s192
      %p194 = scmp.lt.s32.totalorder %s18, 1
      %s195 = scalar_select %p194, %s18, 1
      %p196 = scmp.lt.s32.totalorder %s19, 0
      %s197 = scalar_select %p196, %s19, 0
      %s198 = smul.addr %s195, 16
      %s199 = sadd.s32 %s197, %s198
      %s200 = smul.addr %s199, 4
      %s201 = scalar_lea.vmem %s3, %s200
      %v203 = vld [vmem:[%s0] sm:$0xff]
      %v204 = vld [vmem:[%s0 + $0x8] sm:$0xff]
      %v205 = vld [vmem:[%s0 + $0x10] sm:$0xff]
      %v206 = vld [vmem:[%s0 + $0x18] sm:$0xff]
      %v207 = vld [vmem:[%s0 + $0x20] sm:$0xff]
      %v208 = vld [vmem:[%s0 + $0x28] sm:$0xff]
      %v209 = vld [vmem:[%s0 + $0x30] sm:$0xff]
      %v210 = vld [vmem:[%s0 + $0x38] sm:$0xff]
      %v211 = vld [vmem:[%s0 + $0x40] sm:$0xff]
      %v212 = vld [vmem:[%s0 + $0x48] sm:$0xff]
      %v213 = vld [vmem:[%s0 + $0x50] sm:$0xff]
      %v214 = vld [vmem:[%s0 + $0x58] sm:$0xff]
      %v215 = vld [vmem:[%s0 + $0x60] sm:$0xff]
      %v216 = vld [vmem:[%s0 + $0x68] sm:$0xff]
      %v217 = vld [vmem:[%s0 + $0x70] sm:$0xff]
      %v218 = vld [vmem:[%s0 + $0x78] sm:$0xff]
      %v219 = vld [vmem:[%s193] sm:$0xf]
      %v220 = vld [vmem:[%s193 + $0x4] sm:$0xf]
      %v221 = vld [vmem:[%s193 + $0x8] sm:$0xf]
      %v222 = vld [vmem:[%s193 + $0xc] sm:$0xf]
      %v223 = vld [vmem:[%s193 + $0x10] sm:$0xf]
      %v224 = vld [vmem:[%s193 + $0x14] sm:$0xf]
      %v225 = vld [vmem:[%s193 + $0x18] sm:$0xf]
      %v226 = vld [vmem:[%s193 + $0x1c] sm:$0xf]
      %v227 = vld [vmem:[%s193 + $0x20] sm:$0xf]
      %v228 = vld [vmem:[%s193 + $0x24] sm:$0xf]
      %v229 = vld [vmem:[%s193 + $0x28] sm:$0xf]
      %v230 = vld [vmem:[%s193 + $0x2c] sm:$0xf]
      %v231 = vld [vmem:[%s193 + $0x30] sm:$0xf]
      %v232 = vld [vmem:[%s193 + $0x34] sm:$0xf]
      %v233 = vld [vmem:[%s193 + $0x38] sm:$0xf]
      %v234 = vld [vmem:[%s193 + $0x3c] sm:$0xf]
      %v235 = vld [vmem:[%s193 + $0x40] sm:$0xf]
      %v236 = vld [vmem:[%s193 + $0x44] sm:$0xf]
      %v237 = vld [vmem:[%s193 + $0x48] sm:$0xf]
      %v238 = vld [vmem:[%s193 + $0x4c] sm:$0xf]
      %v239 = vld [vmem:[%s193 + $0x50] sm:$0xf]
      %v240 = vld [vmem:[%s193 + $0x54] sm:$0xf]
      %v241 = vld [vmem:[%s193 + $0x58] sm:$0xf]
      %v242 = vld [vmem:[%s193 + $0x5c] sm:$0xf]
      %v243 = vld [vmem:[%s2] sm:$0xff]
      %v244 = vld [vmem:[%s2 + $0x8] sm:$0xff]
      %v245 = vld [vmem:[%s2 + $0x10] sm:$0xff]
      %v246 = vld [vmem:[%s2 + $0x18] sm:$0xff]
      %v247 = vld [vmem:[%s2 + $0x20] sm:$0xff]
      %v248 = vld [vmem:[%s2 + $0x28] sm:$0xff]
      %v249 = vld [vmem:[%s2 + $0x30] sm:$0xff]
      %v250 = vld [vmem:[%s2 + $0x38] sm:$0xff]
      %v251 = vld [vmem:[%s2 + $0x40] sm:$0xff]
      %v252 = vld [vmem:[%s2 + $0x48] sm:$0xff]
      %v253 = vld [vmem:[%s2 + $0x50] sm:$0xff]
      %v254 = vld [vmem:[%s2 + $0x58] sm:$0xff]
      %v255 = vld [vmem:[%s2 + $0x60] sm:$0xff]
      %v256 = vld [vmem:[%s2 + $0x68] sm:$0xff]
      %v257 = vld [vmem:[%s2 + $0x70] sm:$0xff]
      %v258 = vld [vmem:[%s2 + $0x78] sm:$0xff]
      %260 = vset.pattern.permute.xlu0 0
      %261 = vperm.xlu0 %260, %v243
      %v262 = vpop.permute.xlu0 %261
      %265 = vset.pattern.permute.xlu0 0
      %266 = vperm.xlu0 %265, %v244
      %v267 = vpop.permute.xlu0 %266
      %270 = vset.pattern.permute.xlu0 0
      %271 = vperm.xlu0 %270, %v245
      %v272 = vpop.permute.xlu0 %271
      %275 = vset.pattern.permute.xlu0 0
      %276 = vperm.xlu0 %275, %v246
      %v277 = vpop.permute.xlu0 %276
      %280 = vset.pattern.permute.xlu0 0
      %281 = vperm.xlu0 %280, %v247
      %v282 = vpop.permute.xlu0 %281
      %285 = vset.pattern.permute.xlu0 0
      %286 = vperm.xlu0 %285, %v248
      %v287 = vpop.permute.xlu0 %286
      %290 = vset.pattern.permute.xlu0 0
      %291 = vperm.xlu0 %290, %v249
      %v292 = vpop.permute.xlu0 %291
      %295 = vset.pattern.permute.xlu0 0
      %296 = vperm.xlu0 %295, %v250
      %v297 = vpop.permute.xlu0 %296
      %300 = vset.pattern.permute.xlu0 0
      %301 = vperm.xlu0 %300, %v251
      %v302 = vpop.permute.xlu0 %301
      %305 = vset.pattern.permute.xlu0 0
      %306 = vperm.xlu0 %305, %v252
      %v307 = vpop.permute.xlu0 %306
      %310 = vset.pattern.permute.xlu0 0
      %311 = vperm.xlu0 %310, %v253
      %v312 = vpop.permute.xlu0 %311
      %315 = vset.pattern.permute.xlu0 0
      %316 = vperm.xlu0 %315, %v254
      %v317 = vpop.permute.xlu0 %316
      %320 = vset.pattern.permute.xlu0 0
      %321 = vperm.xlu0 %320, %v255
      %v322 = vpop.permute.xlu0 %321
      %325 = vset.pattern.permute.xlu0 0
      %326 = vperm.xlu0 %325, %v256
      %v327 = vpop.permute.xlu0 %326
      %330 = vset.pattern.permute.xlu0 0
      %331 = vperm.xlu0 %330, %v257
      %v332 = vpop.permute.xlu0 %331
      %335 = vset.pattern.permute.xlu0 0
      %336 = vperm.xlu0 %335, %v258
      %v337 = vpop.permute.xlu0 %336
      %v355 = vunpack.c.l.b16 %v203
      %v356 = vunpack.c.h.b16 %v203
      %v357 = vunpack.c.l.b16 %v204
      %v358 = vunpack.c.h.b16 %v204
      %v359 = vunpack.c.l.b16 %v205
      %v360 = vunpack.c.h.b16 %v205
      %v361 = vunpack.c.l.b16 %v206
      %v362 = vunpack.c.h.b16 %v206
      %v363 = vunpack.c.l.b16 %v207
      %v364 = vunpack.c.h.b16 %v207
      %v365 = vunpack.c.l.b16 %v208
      %v366 = vunpack.c.h.b16 %v208
      %v367 = vunpack.c.l.b16 %v209
      %v368 = vunpack.c.h.b16 %v209
      %v369 = vunpack.c.l.b16 %v210
      %v370 = vunpack.c.h.b16 %v210
      %v371 = vunpack.c.l.b16 %v211
      %v372 = vunpack.c.h.b16 %v211
      %v373 = vunpack.c.l.b16 %v212
      %v374 = vunpack.c.h.b16 %v212
      %v375 = vunpack.c.l.b16 %v213
      %v376 = vunpack.c.h.b16 %v213
      %v377 = vunpack.c.l.b16 %v214
      %v378 = vunpack.c.h.b16 %v214
      %v379 = vunpack.c.l.b16 %v215
      %v380 = vunpack.c.h.b16 %v215
      %v381 = vunpack.c.l.b16 %v216
      %v382 = vunpack.c.h.b16 %v216
      %v383 = vunpack.c.l.b16 %v217
      %v384 = vunpack.c.h.b16 %v217
      %v385 = vunpack.c.l.b16 %v218
      %v386 = vunpack.c.h.b16 %v218
      %v387 = vpack.c.b16 %v357, %v355
      %v388 = vpack.c.b16 %v358, %v356
      %v389 = vpack.c.b16 %v361, %v359
      %v390 = vpack.c.b16 %v362, %v360
      %v391 = vpack.c.b16 %v365, %v363
      %v392 = vpack.c.b16 %v366, %v364
      %v393 = vpack.c.b16 %v369, %v367
      %v394 = vpack.c.b16 %v370, %v368
      %v395 = vpack.c.b16 %v373, %v371
      %v396 = vpack.c.b16 %v374, %v372
      %v397 = vpack.c.b16 %v377, %v375
      %v398 = vpack.c.b16 %v378, %v376
      %v399 = vpack.c.b16 %v381, %v379
      %v400 = vpack.c.b16 %v382, %v380
      %v401 = vpack.c.b16 %v385, %v383
      %v402 = vpack.c.b16 %v386, %v384
      %v435 = vunpack.c.l.b16 %v219
      %v436 = vunpack.c.l.b16 %v220
      %v437 = vunpack.c.l.b16 %v221
      %v438 = vunpack.c.l.b16 %v222
      %v439 = vunpack.c.l.b16 %v223
      %v440 = vunpack.c.l.b16 %v224
      %v441 = vunpack.c.l.b16 %v225
      %v442 = vunpack.c.l.b16 %v226
      %v443 = vunpack.c.l.b16 %v227
      %v444 = vunpack.c.l.b16 %v228
      %v445 = vunpack.c.l.b16 %v229
      %v446 = vunpack.c.l.b16 %v230
      %v447 = vunpack.c.l.b16 %v231
      %v448 = vunpack.c.l.b16 %v232
      %v449 = vunpack.c.l.b16 %v233
      %v450 = vunpack.c.l.b16 %v234
      %v451 = vunpack.c.l.b16 %v235
      %v452 = vunpack.c.l.b16 %v236
      %v453 = vunpack.c.l.b16 %v237
      %v454 = vunpack.c.l.b16 %v238
      %v455 = vunpack.c.l.b16 %v239
      %v456 = vunpack.c.l.b16 %v240
      %v457 = vunpack.c.l.b16 %v241
      %v458 = vunpack.c.l.b16 %v242
      %v459 = vpack.c.b16 %v436, %v435
      %v460 = vpack.c.b16 %v438, %v437
      %v461 = vpack.c.b16 %v440, %v439
      %v462 = vpack.c.b16 %v442, %v441
      %v463 = vpack.c.b16 %v444, %v443
      %v464 = vpack.c.b16 %v446, %v445
      %v465 = vpack.c.b16 %v448, %v447
      %v466 = vpack.c.b16 %v450, %v449
      %v467 = vpack.c.b16 %v452, %v451
      %v468 = vpack.c.b16 %v454, %v453
      %v469 = vpack.c.b16 %v456, %v455
      %v470 = vpack.c.b16 %v458, %v457
      %vm483 = vcmask 523264
      %v485 = vsel %vm483, %v388, 0
      %v488 = vsel %vm483, %v390, 0
      %v491 = vsel %vm483, %v392, 0
      %v494 = vsel %vm483, %v394, 0
      %v497 = vsel %vm483, %v396, 0
      %v500 = vsel %vm483, %v398, 0
      %v503 = vsel %vm483, %v400, 0
      %v506 = vsel %vm483, %v402, 0
      %508 = vmatprep.subr.bf16.mxu0 0
      %509 = vmatpush1.bf16.msra.mxu0 %v459
      %510 = vmatprep.subr.bf16.mxu0 0
      %511 = vmatpush1.bf16.msra.mxu0 %v460
      %512 = vmatprep.subr.bf16.mxu0 0
      %513 = vmatpush1.bf16.msra.mxu0 %v461
      %514 = vmatprep.subr.bf16.mxu0 0
      %515 = vmatpush1.bf16.msra.mxu0 %v462
      %516 = vmatprep.subr.bf16.mxu0 0
      %517 = vmatpush1.bf16.msra.mxu0 %v463
      %518 = vmatprep.subr.bf16.mxu0 0
      %519 = vmatpush1.bf16.msra.mxu0 %v464
      %520 = vmatprep.subr.bf16.mxu0 0
      %521 = vmatpush1.bf16.msra.mxu0 %v465
      %522 = vmatprep.subr.bf16.mxu0 0
      %523 = vmatpush1.bf16.msra.mxu0 %v466
      %524 = vmatprep.subr.bf16.mxu0 0
      %525 = vmatpush1.bf16.msra.mxu0 %v467
      %526 = vmatprep.subr.bf16.mxu0 0
      %527 = vmatpush1.bf16.msra.mxu0 %v468
      %528 = vmatprep.subr.bf16.mxu0 0
      %529 = vmatpush1.bf16.msra.mxu0 %v469
      %530 = vmatprep.subr.bf16.mxu0 0
      %531 = vmatpush1.bf16.msra.mxu0 %v470
      %532 = vmatprep.subr.bf16.mxu0 0
      %533 = vmatpush1.bf16.msra.mxu0 0
      %534 = vmatprep.subr.bf16.mxu0 0
      %535 = vmatpush1.bf16.msra.mxu0 0
      %536 = vmatprep.subr.bf16.mxu0 0
      %537 = vmatpush1.bf16.msra.mxu0 0
      %538 = vmatprep.subr.bf16.mxu0 0
      %539 = vmatpush1.bf16.msra.mxu0 0
      %540 = vmatprep.mubr.bf16.mxu0 %v485
      %541 = vmatmul.mubr.bf16.gmra.mrb[0].mxu0 %v387
      %v542 = vpop.f32.mrb[0].mxu0
      %v543 = vadd.f32 %v262, %v542
      %v544 = vpop.f32.mrb[0].mxu0
      %v545 = vpop.f32.mrb[0].mxu0
      %v546 = vadd.f32 %v267, %v545
      %v547 = vpop.f32.mrb[0].mxu0
      %548 = vmatprep.mubr.bf16.mxu0 %v488
      %549 = vmatmul.mubr.bf16.gmra.mrb[0].mxu0 %v389
      %v550 = vpop.f32.mrb[0].mxu0
      %v551 = vadd.f32 %v272, %v550
      %v552 = vpop.f32.mrb[0].mxu0
      %v553 = vpop.f32.mrb[0].mxu0
      %v554 = vadd.f32 %v277, %v553
      %v555 = vpop.f32.mrb[0].mxu0
      %556 = vmatprep.mubr.bf16.mxu0 %v491
      %557 = vmatmul.mubr.bf16.gmra.mrb[0].mxu0 %v391
      %v558 = vpop.f32.mrb[0].mxu0
      %v559 = vadd.f32 %v282, %v558
      %v560 = vpop.f32.mrb[0].mxu0
      %v561 = vpop.f32.mrb[0].mxu0
      %v562 = vadd.f32 %v287, %v561
      %v563 = vpop.f32.mrb[0].mxu0
      %564 = vmatprep.mubr.bf16.mxu0 %v494
      %565 = vmatmul.mubr.bf16.gmra.mrb[0].mxu0 %v393
      %v566 = vpop.f32.mrb[0].mxu0
      %v567 = vadd.f32 %v292, %v566
      %v568 = vpop.f32.mrb[0].mxu0
      %v569 = vpop.f32.mrb[0].mxu0
      %v570 = vadd.f32 %v297, %v569
      %v571 = vpop.f32.mrb[0].mxu0
      %572 = vmatprep.mubr.bf16.mxu0 %v497
      %573 = vmatmul.mubr.bf16.gmra.mrb[0].mxu0 %v395
      %v574 = vpop.f32.mrb[0].mxu0
      %v575 = vadd.f32 %v302, %v574
      %v576 = vpop.f32.mrb[0].mxu0
      %v577 = vpop.f32.mrb[0].mxu0
      %v578 = vadd.f32 %v307, %v577
      %v579 = vpop.f32.mrb[0].mxu0
      %580 = vmatprep.mubr.bf16.mxu0 %v500
      %581 = vmatmul.mubr.bf16.gmra.mrb[0].mxu0 %v397
      %v582 = vpop.f32.mrb[0].mxu0
      %v583 = vadd.f32 %v312, %v582
      %v584 = vpop.f32.mrb[0].mxu0
      %v585 = vpop.f32.mrb[0].mxu0
      %v586 = vadd.f32 %v317, %v585
      %v587 = vpop.f32.mrb[0].mxu0
      %588 = vmatprep.mubr.bf16.mxu0 %v503
      %589 = vmatmul.mubr.bf16.gmra.mrb[0].mxu0 %v399
      %v590 = vpop.f32.mrb[0].mxu0
      %v591 = vadd.f32 %v322, %v590
      %v592 = vpop.f32.mrb[0].mxu0
      %v593 = vpop.f32.mrb[0].mxu0
      %v594 = vadd.f32 %v327, %v593
      %v595 = vpop.f32.mrb[0].mxu0
      %596 = vmatprep.mubr.bf16.mxu0 %v506
      %597 = vmatmul.mubr.bf16.gmra.mrb[0].mxu0 %v401
      %v598 = vpop.f32.mrb[0].mxu0
      %v599 = vadd.f32 %v332, %v598
      %v600 = vpop.f32.mrb[0].mxu0
      %v601 = vpop.f32.mrb[0].mxu0
      %v602 = vadd.f32 %v337, %v601
      %v603 = vpop.f32.mrb[0].mxu0
      %604 = vdwg.mxu0
      %v605 = vpack.c.bf16 %v546, %v543
      %v606 = vpack.c.bf16 %v554, %v551
      %v607 = vpack.c.bf16 %v562, %v559
      %v608 = vpack.c.bf16 %v570, %v567
      %v609 = vpack.c.bf16 %v578, %v575
      %v610 = vpack.c.bf16 %v586, %v583
      %v611 = vpack.c.bf16 %v594, %v591
      %v612 = vpack.c.bf16 %v602, %v599
      %v621 = vunpack.c.l.b16 %v605
      %v622 = vunpack.c.h.b16 %v605
      %v623 = vunpack.c.l.b16 %v606
      %v624 = vunpack.c.h.b16 %v606
      %v625 = vunpack.c.l.b16 %v607
      %v626 = vunpack.c.h.b16 %v607
      %v627 = vunpack.c.l.b16 %v608
      %v628 = vunpack.c.h.b16 %v608
      %v629 = vunpack.c.l.b16 %v609
      %v630 = vunpack.c.h.b16 %v609
      %v631 = vunpack.c.l.b16 %v610
      %v632 = vunpack.c.h.b16 %v610
      %v633 = vunpack.c.l.b16 %v611
      %v634 = vunpack.c.h.b16 %v611
      %v635 = vunpack.c.l.b16 %v612
      %v636 = vunpack.c.h.b16 %v612
      %v637 = vpack.c.b16 %v621, %v621
      %v638 = vpack.c.b16 %v622, %v622
      %v639 = vpack.c.b16 %v623, %v623
      %v640 = vpack.c.b16 %v624, %v624
      %v641 = vpack.c.b16 %v625, %v625
      %v642 = vpack.c.b16 %v626, %v626
      %v643 = vpack.c.b16 %v627, %v627
      %v644 = vpack.c.b16 %v628, %v628
      %v645 = vpack.c.b16 %v629, %v629
      %v646 = vpack.c.b16 %v630, %v630
      %v647 = vpack.c.b16 %v631, %v631
      %v648 = vpack.c.b16 %v632, %v632
      %v649 = vpack.c.b16 %v633, %v633
      %v650 = vpack.c.b16 %v634, %v634
      %v651 = vpack.c.b16 %v635, %v635
      %v652 = vpack.c.b16 %v636, %v636
      %669 = vst [vmem:[%s201] sm:$0xf] %v637
      %670 = vst [vmem:[%s201 + $0x4] sm:$0xf] %v638
      %671 = vst [vmem:[%s201 + $0x8] sm:$0xf] %v639
      %672 = vst [vmem:[%s201 + $0xc] sm:$0xf] %v640
      %673 = vst [vmem:[%s201 + $0x10] sm:$0xf] %v641
      %674 = vst [vmem:[%s201 + $0x14] sm:$0xf] %v642
      %675 = vst [vmem:[%s201 + $0x18] sm:$0xf] %v643
      %676 = vst [vmem:[%s201 + $0x1c] sm:$0xf] %v644
      %677 = vst [vmem:[%s201 + $0x20] sm:$0xf] %v645
      %678 = vst [vmem:[%s201 + $0x24] sm:$0xf] %v646
      %679 = vst [vmem:[%s201 + $0x28] sm:$0xf] %v647
      %680 = vst [vmem:[%s201 + $0x2c] sm:$0xf] %v648
      %681 = vst [vmem:[%s201 + $0x30] sm:$0xf] %v649
      %682 = vst [vmem:[%s201 + $0x34] sm:$0xf] %v650
      %683 = vst [vmem:[%s201 + $0x38] sm:$0xf] %v651
      %684 = vst [vmem:[%s201 + $0x3c] sm:$0xf] %v652
      %p685 = scmp.lt.s32.totalorder %s18, 1
      %s686 = scalar_select %p685, %s18, 1
      %p687 = scmp.lt.s32.totalorder %s19, 0
      %s688 = scalar_select %p687, %s19, 0
      %s689 = smul.addr %s686, 16
      %s690 = sadd.s32 %s688, %s689
      %s691 = smul.addr %s690, 4
      %s692 = scalar_lea.vmem %s3, %s691
      // Predicated region
      $region33: #{decoder_forward.9} parent=31 // pred_check
        %p693 = pneg %p116
      $region34: #{decoder_forward.9} parent=31 // pred_check_branch
        %695 = sbr.rel (%p693) target = $region36
      $region35: #{decoder_forward.9} parent=31 // pred_region
        _
      $region36: #{decoder_forward.9} parent=31 // pred_fallthru
        _
    $region32: #{decoder_forward.9} parent=5 // pred_fallthru
      _
    %p696 = scmp.le.s32.totalorder 2, %s9
    // Predicated region
    $region37: #{decoder_forward.9} parent=5 // pred_check
      %p697 = pneg %p696
    $region38: #{decoder_forward.9} parent=5 // pred_check_branch
      %699 = sbr.rel (%p697) target = $region40
    $region39: #{decoder_forward.9} parent=5 // pred_region
      %s700 = ssub.s32 %s9, 2
      // Predicated region
      $region41: #{decoder_forward.9} parent=39 // pred_check
        %p701 = pneg %p122
      $region42: #{decoder_forward.9} parent=39 // pred_check_branch
        %703 = sbr.rel (%p701) target = $region44
      $region43: #{decoder_forward.9} parent=39 // pred_region
        %p704 = scmp.lt.s32.totalorder %s20, 1
        %s705 = scalar_select %p704, %s20, 1
        %p706 = scmp.lt.s32.totalorder %s21, 0
        %s707 = scalar_select %p706, %s21, 0
        %s708 = smul.addr %s705, 16
        %s709 = sadd.s32 %s707, %s708
        %s710 = smul.addr %s709, 4
        %s711 = scalar_lea.vmem %s3, %s710
      $region44: #{decoder_forward.9} parent=39 // pred_fallthru
        _
    $region40: #{decoder_forward.9} parent=5 // pred_fallthru
      _
  $region6: #{decoder_forward.9} parent=0 // loop_footer
    %s13 = sadd.s32 1, %s9
  $region7: #{decoder_forward.9} parent=0 // loop_footer_branch
    %8 = sbr.rel target = $region3
  $region8: #{decoder_forward.9} parent=0 // loop_exit
    _

// kernel: decoder_forward.10
$region0: #{decoder_forward.10}
  #allocation0 [shape = 'u32[]', space=smem, size = 0x4, offset = 0x4, fixed_abs, tag = 'smem constant byte address 0x4 - core index']
  #allocation1 [shape = 'u32[144,128]{1,0:T(1,128)}', space=vmem, size = 0x12000, scoped, tag = 'internal scratch']
  %s0 = inlined_call_operand.vmem [shape: bf16[2,32,64], index: 0, kind: input, shape index: {}]
  %s1 = inlined_call_operand.vmem [shape: f32[32,1], index: 1, kind: input, shape index: {}]
  %s2 = inlined_call_operand.vmem [shape: f32[32,1], index: 2, kind: input, shape index: {}]
  %s3 = inlined_call_operand.vmem [shape: f32[32,32], index: 3, kind: input, shape index: {}]
  %s4 = inlined_call_operand.vmem [shape: bf16[2,32,64], index: 4, kind: output, shape index: {}]
  %s5 = sld [smem:[#allocation0]]
  $region49: #{decoder_forward.10} parent=0
    _
  %s7 = ssub.s32 1, %s5
  %s8 = scalar_select 0, %s7, %s5
  loop: start=0, step=1, limit=4
  $region2: #{decoder_forward.10} parent=0 // loop_pre_header
    _
  $region3: #{decoder_forward.10} parent=0 // loop_header
    %s10 = sphi 0, %s14
    %p11 = scmp.ge.s32.totalorder %s10, 4
    %s20 = sphi 0, %s22
    %s23 = sphi 0, %s20
    %s24 = sphi 0, %s23
    %s40 = sphi 0, %s24
    %s44 = sphi 0, %s44
    %s46 = sphi 0, %s44
    %s47 = sphi 0, %s46
    %s61 = sphi 0, %s47
    %s65 = sphi 0, %s65
    %s67 = sphi 0, %s65
    %s68 = sphi 0, %s67
    %s82 = sphi 0, %s68
    %s86 = sphi 0, %s86
    %s88 = sphi 0, %s86
    %s89 = sphi 0, %s88
    %s103 = sphi 0, %s89
    %s109 = sphi 0, %s111
    %s112 = sphi 0, %s109
    %s113 = sphi 0, %s112
    %s129 = sphi 0, %s113
  $region4: #{decoder_forward.10} parent=0 // loop_header_branch
    %13 = sbr.rel (%p11) target = $region8
  $region5: #{decoder_forward.10} parent=0 // loop_body
    %s15 = ssub.s32 %s10, 1
    %s16 = ssub.s32 %s10, 2
    %s17 = sadd.s32 %s10, 1
    %s18 = ssub.s32 %s10, %s17
    %p19 = scmp.eq.s32.totalorder %s18, 0
    %s21 = sadd.s32 %s20, 1
    %s22 = scalar_select %p19, %s20, %s21
    %p25 = pneg %p19
    %p26 = scmp.eq.s32.totalorder %s10, 1
    %p27 = por %p25, %p26
    %p28 = scmp.ne.s32.totalorder %s20, %s23
    %p29 = scmp.eq.s32.totalorder %s10, 0
    %p30 = por %p28, %p29
    %p31 = scmp.ne.s32.totalorder %s20, %s23
    %p32 = scmp.eq.s32.totalorder %s15, 1
    %p33 = por %p31, %p32
    %p34 = scmp.ne.s32.totalorder %s23, %s24
    %p35 = scmp.eq.s32.totalorder %s15, 0
    %p36 = por %p34, %p35
    %p37 = scmp.ne.s32.totalorder %s23, %s24
    %p38 = scmp.eq.s32.totalorder %s16, 1
    %p39 = por %p37, %p38
    %p41 = scmp.ne.s32.totalorder %s24, %s40
    %p42 = scmp.eq.s32.totalorder %s16, 0
    %p43 = por %p41, %p42
    %s45 = sadd.s32 %s44, 1
    %p48 = scmp.eq.s32.totalorder %s10, 1
    %p49 = scmp.ne.s32.totalorder %s44, %s46
    %p50 = scmp.eq.s32.totalorder %s10, 0
    %p51 = por %p49, %p50
    %p52 = scmp.ne.s32.totalorder %s44, %s46
    %p53 = scmp.eq.s32.totalorder %s15, 1
    %p54 = por %p52, %p53
    %p55 = scmp.ne.s32.totalorder %s46, %s47
    %p56 = scmp.eq.s32.totalorder %s15, 0
    %p57 = por %p55, %p56
    %p58 = scmp.ne.s32.totalorder %s46, %s47
    %p59 = scmp.eq.s32.totalorder %s16, 1
    %p60 = por %p58, %p59
    %p62 = scmp.ne.s32.totalorder %s47, %s61
    %p63 = scmp.eq.s32.totalorder %s16, 0
    %p64 = por %p62, %p63
    %s66 = sadd.s32 %s65, 1
    %p69 = scmp.eq.s32.totalorder %s10, 1
    %p70 = scmp.ne.s32.totalorder %s65, %s67
    %p71 = scmp.eq.s32.totalorder %s10, 0
    %p72 = por %p70, %p71
    %p73 = scmp.ne.s32.totalorder %s65, %s67
    %p74 = scmp.eq.s32.totalorder %s15, 1
    %p75 = por %p73, %p74
    %p76 = scmp.ne.s32.totalorder %s67, %s68
    %p77 = scmp.eq.s32.totalorder %s15, 0
    %p78 = por %p76, %p77
    %p79 = scmp.ne.s32.totalorder %s67, %s68
    %p80 = scmp.eq.s32.totalorder %s16, 1
    %p81 = por %p79, %p80
    %p83 = scmp.ne.s32.totalorder %s68, %s82
    %p84 = scmp.eq.s32.totalorder %s16, 0
    %p85 = por %p83, %p84
    %s87 = sadd.s32 %s86, 1
    %p90 = scmp.eq.s32.totalorder %s10, 1
    %p91 = scmp.ne.s32.totalorder %s86, %s88
    %p92 = scmp.eq.s32.totalorder %s10, 0
    %p93 = por %p91, %p92
    %p94 = scmp.ne.s32.totalorder %s86, %s88
    %p95 = scmp.eq.s32.totalorder %s15, 1
    %p96 = por %p94, %p95
    %p97 = scmp.ne.s32.totalorder %s88, %s89
    %p98 = scmp.eq.s32.totalorder %s15, 0
    %p99 = por %p97, %p98
    %p100 = scmp.ne.s32.totalorder %s88, %s89
    %p101 = scmp.eq.s32.totalorder %s16, 1
    %p102 = por %p100, %p101
    %p104 = scmp.ne.s32.totalorder %s89, %s103
    %p105 = scmp.eq.s32.totalorder %s16, 0
    %p106 = por %p104, %p105
    %s107 = ssub.s32 %s10, %s17
    %p108 = scmp.eq.s32.totalorder %s107, 0
    %s110 = sadd.s32 %s109, 1
    %s111 = scalar_select %p108, %s109, %s110
    %p114 = pneg %p108
    %p115 = scmp.eq.s32.totalorder %s10, 1
    %p116 = por %p114, %p115
    %p117 = scmp.ne.s32.totalorder %s109, %s112
    %p118 = scmp.eq.s32.totalorder %s10, 0
    %p119 = por %p117, %p118
    %p120 = scmp.ne.s32.totalorder %s109, %s112
    %p121 = scmp.eq.s32.totalorder %s15, 1
    %p122 = por %p120, %p121
    %p123 = scmp.ne.s32.totalorder %s112, %s113
    %p124 = scmp.eq.s32.totalorder %s15, 0
    %p125 = por %p123, %p124
    %p126 = scmp.ne.s32.totalorder %s112, %s113
    %p127 = scmp.eq.s32.totalorder %s16, 1
    %p128 = por %p126, %p127
    %p130 = scmp.ne.s32.totalorder %s113, %s129
    %p131 = scmp.eq.s32.totalorder %s16, 0
    %p132 = por %p130, %p131
    %p133 = scmp.le.s32.totalorder 1, %s10
    %p134 = scmp.lt.s32.totalorder %s10, 3
    %p135 = pnand %p133, %p134
    %p136 = pneg %p135
    // Predicated region
    $region9: #{decoder_forward.10} parent=5 // pred_check
      _
    $region10: #{decoder_forward.10} parent=5 // pred_check_branch
      %138 = sbr.rel (%p135) target = $region12
    $region11: #{decoder_forward.10} parent=5 // pred_region
      %s139 = ssub.s32 %s10, 1
      // Predicated region
      $region13: #{decoder_forward.10} parent=11 // pred_check
        %p140 = pneg %p57
      $region14: #{decoder_forward.10} parent=11 // pred_check_branch
        %142 = sbr.rel (%p140) target = $region16
      $region15: #{decoder_forward.10} parent=11 // pred_region
        _
      $region16: #{decoder_forward.10} parent=11 // pred_fallthru
        _
      // Predicated region
      $region17: #{decoder_forward.10} parent=11 // pred_check
        %p143 = pneg %p78
      $region18: #{decoder_forward.10} parent=11 // pred_check_branch
        %145 = sbr.rel (%p143) target = $region20
      $region19: #{decoder_forward.10} parent=11 // pred_region
        _
      $region20: #{decoder_forward.10} parent=11 // pred_fallthru
        _
      // Predicated region
      $region21: #{decoder_forward.10} parent=11 // pred_check
        %p146 = pneg %p99
      $region22: #{decoder_forward.10} parent=11 // pred_check_branch
        %148 = sbr.rel (%p146) target = $region24
      $region23: #{decoder_forward.10} parent=11 // pred_region
        _
      $region24: #{decoder_forward.10} parent=11 // pred_fallthru
        _
    $region12: #{decoder_forward.10} parent=5 // pred_fallthru
      _
    %p149 = scmp.lt.s32.totalorder %s10, 2
    // Predicated region
    $region25: #{decoder_forward.10} parent=5 // pred_check
      %p150 = pneg %p149
    $region26: #{decoder_forward.10} parent=5 // pred_check_branch
      %152 = sbr.rel (%p150) target = $region28
    $region27: #{decoder_forward.10} parent=5 // pred_region
      // Predicated region
      $region29: #{decoder_forward.10} parent=27 // pred_check
        %p153 = pneg %p30
      $region30: #{decoder_forward.10} parent=27 // pred_check_branch
        %155 = sbr.rel (%p153) target = $region32
      $region31: #{decoder_forward.10} parent=27 // pred_region
        %p156 = scmp.lt.s32.totalorder %s10, 1
        %s157 = scalar_select %p156, %s10, 1
        %s158 = smul.addr %s157, 4
        %s159 = smul.addr %s158, 4
        %s160 = scalar_lea.vmem %s0, %s159
      $region32: #{decoder_forward.10} parent=27 // pred_fallthru
        _
    $region28: #{decoder_forward.10} parent=5 // pred_fallthru
      _
    %p161 = scmp.le.s32.totalorder 1, %s10
    %p162 = scmp.lt.s32.totalorder %s10, 3
    %p163 = pnand %p161, %p162
    %p164 = pneg %p163
    // Predicated region
    $region33: #{decoder_forward.10} parent=5 // pred_check
      _
    $region34: #{decoder_forward.10} parent=5 // pred_check_branch
      %166 = sbr.rel (%p163) target = $region36
    $region35: #{decoder_forward.10} parent=5 // pred_region
      %s167 = ssub.s32 %s10, 1
      %p168 = scmp.lt.s32.totalorder %s15, 1
      %s169 = scalar_select %p168, %s15, 1
      %s170 = smul.addr %s169, 4
      %s171 = smul.addr %s170, 4
      %s172 = scalar_lea.vmem %s0, %s171
      %p173 = pneg %p36
      %p174 = pneg %p33
      %p175 = pneg %p57
      %p176 = pneg %p54
      %p177 = pneg %p78
      %p178 = pneg %p75
      %p179 = pneg %p99
      %p180 = pneg %p96
      %p181 = pneg %p125
      %p182 = pneg %p122
      %p183 = scmp.lt.s32.totalorder %s15, 1
      %s184 = scalar_select %p183, %s15, 1
      %s185 = smul.addr %s184, 4
      %s186 = smul.addr %s185, 4
      %s187 = scalar_lea.vmem %s4, %s186
      %p188 = scmp.lt.s32.totalorder %s15, 1
      %s189 = scalar_select %p188, %s15, 1
      %s190 = smul.addr %s189, 4
      %s191 = smul.addr %s190, 4
      %s192 = scalar_lea.vmem %s0, %s191
      %p193 = scmp.lt.s32.totalorder %s15, 1
      %s194 = scalar_select %p193, %s15, 1
      %s195 = smul.addr %s194, 4
      %s196 = smul.addr %s195, 4
      %s197 = scalar_lea.vmem %s4, %s196
      %v198 = vld [vmem:[%s192] sm:$0xf]
      %v199 = vld [vmem:[%s192 + $0x4] sm:$0xf]
      %v200 = vld [vmem:[%s192 + $0x8] sm:$0xf]
      %v201 = vld [vmem:[%s192 + $0xc] sm:$0xf]
      %v202 = vunpack.c.l.bf16 %v198
      %v203 = vunpack.c.l.bf16 %v199
      %v204 = vunpack.c.l.bf16 %v200
      %v205 = vunpack.c.l.bf16 %v201
      %vm206 = vcmask 523264
      %v207 = vsel %vm206, %v202, 0.0
      %208 = vadd.xlane.f32.xlu0 %v207
      %v209 = vpop.xlane.xlu0 %208
      %v210 = vsel %vm206, %v203, 0.0
      %211 = vadd.xlane.f32.xlu0 %v210
      %v212 = vpop.xlane.xlu0 %211
      %v213 = vsel %vm206, %v204, 0.0
      %214 = vadd.xlane.f32.xlu0 %v213
      %v215 = vpop.xlane.xlu0 %214
      %v216 = vsel %vm206, %v205, 0.0
      %217 = vadd.xlane.f32.xlu0 %v216
      %v218 = vpop.xlane.xlu0 %217
      %v219 = vld [vmem:[%s3] sm:$0xff]
      %v220 = vld [vmem:[%s3 + $0x8] sm:$0xff]
      %v221 = vld [vmem:[%s3 + $0x10] sm:$0xff]
      %v222 = vld [vmem:[%s3 + $0x18] sm:$0xff]
      %vm223 = vcmask 261120
      %v225 = vsel %vm223, %v219, 0
      %v228 = vsel %vm223, %v220, 0
      %v231 = vsel %vm223, %v221, 0
      %v234 = vsel %vm223, %v222, 0
      %236 = vmatprep.subr.mxu0 0.0
      %237 = vmatpush1.msra.mxu0 %v209
      %238 = vmatprep.subr.mxu0 0.0
      %239 = vmatpush1.msra.mxu0 %v212
      %240 = vmatprep.subr.mxu0 0.0
      %241 = vmatpush1.msra.mxu0 %v215
      %242 = vmatprep.subr.mxu0 0.0
      %243 = vmatpush1.msra.mxu0 %v218
      %244 = vmatprep.subr.mxu0 0.0
      %245 = vmatpush1.msra.mxu0 0.0
      %246 = vmatprep.subr.mxu0 0.0
      %247 = vmatpush1.msra.mxu0 0.0
      %248 = vmatprep.subr.mxu0 0.0
      %249 = vmatpush1.msra.mxu0 0.0
      %250 = vmatprep.subr.mxu0 0.0
      %251 = vmatpush1.msra.mxu0 0.0
      %252 = vmatprep.subr.mxu0 0.0
      %253 = vmatpush1.msra.mxu0 0.0
      %254 = vmatprep.subr.mxu0 0.0
      %255 = vmatpush1.msra.mxu0 0.0
      %256 = vmatprep.subr.mxu0 0.0
      %257 = vmatpush1.msra.mxu0 0.0
      %258 = vmatprep.subr.mxu0 0.0
      %259 = vmatpush1.msra.mxu0 0.0
      %260 = vmatprep.subr.mxu0 0.0
      %261 = vmatpush1.msra.mxu0 0.0
      %262 = vmatprep.subr.mxu0 0.0
      %263 = vmatpush1.msra.mxu0 0.0
      %264 = vmatprep.subr.mxu0 0.0
      %265 = vmatpush1.msra.mxu0 0.0
      %266 = vmatprep.subr.mxu0 0.0
      %267 = vmatpush1.msra.mxu0 0.0
      %268 = vmatprep.subr.mxu0 0.0
      %269 = vmatpush1.msra.mxu0 0.0
      %270 = vmatprep.subr.mxu0 0.0
      %271 = vmatpush1.msra.mxu0 0.0
      %272 = vmatprep.subr.mxu0 0.0
      %273 = vmatpush1.msra.mxu0 0.0
      %274 = vmatprep.subr.mxu0 0.0
      %275 = vmatpush1.msra.mxu0 0.0
      %276 = vmatprep.subr.mxu0 0.0
      %277 = vmatpush1.msra.mxu0 0.0
      %278 = vmatprep.subr.mxu0 0.0
      %279 = vmatpush1.msra.mxu0 0.0
      %280 = vmatprep.subr.mxu0 0.0
      %281 = vmatpush1.msra.mxu0 0.0
      %282 = vmatprep.subr.mxu0 0.0
      %283 = vmatpush1.msra.mxu0 0.0
      %284 = vmatprep.subr.mxu0 0.0
      %285 = vmatpush1.msra.mxu0 0.0
      %286 = vmatprep.subr.mxu0 0.0
      %287 = vmatpush1.msra.mxu0 0.0
      %288 = vmatprep.subr.mxu0 0.0
      %289 = vmatpush1.msra.mxu0 0.0
      %290 = vmatprep.subr.mxu0 0.0
      %291 = vmatpush1.msra.mxu0 0.0
      %292 = vmatprep.subr.mxu0 0.0
      %293 = vmatpush1.msra.mxu0 0.0
      %294 = vmatprep.subr.mxu0 0.0
      %295 = vmatpush1.msra.mxu0 0.0
      %296 = vmatprep.subr.mxu0 0.0
      %297 = vmatpush1.msra.mxu0 0.0
      %298 = vmatprep.subr.mxu0 0.0
      %299 = vmatpush1.msra.mxu0 0.0
      %300 = vmatprep.mubr.f32.mxu0 0.0
      %301 = vmatmul.mubr.f32.gmra.mrb[0].mxu0 %v225
      %v302 = vpop.f32.mrb[0].mxu0
      %v303 = vadd.f32 0.0, %v302
      %v304 = vpop.f32.mrb[0].mxu0
      %305 = vmatprep.mubr.f32.mxu0 0.0
      %306 = vmatmul.mubr.f32.gmra.mrb[0].mxu0 %v228
      %v307 = vpop.f32.mrb[0].mxu0
      %v308 = vadd.f32 0.0, %v307
      %v309 = vpop.f32.mrb[0].mxu0
      %310 = vmatprep.mubr.f32.mxu0 0.0
      %311 = vmatmul.mubr.f32.gmra.mrb[0].mxu0 %v231
      %v312 = vpop.f32.mrb[0].mxu0
      %v313 = vadd.f32 0.0, %v312
      %v314 = vpop.f32.mrb[0].mxu0
      %315 = vmatprep.mubr.f32.mxu0 0.0
      %316 = vmatmul.mubr.f32.gmra.mrb[0].mxu0 %v234
      %v317 = vpop.f32.mrb[0].mxu0
      %v318 = vadd.f32 0.0, %v317
      %v319 = vpop.f32.mrb[0].mxu0
      %320 = vdwg.mxu0
      %v321 = vmul.f32 %v303, 0.00390625
      %v322 = vmul.f32 %v308, 0.00390625
      %v323 = vmul.f32 %v313, 0.00390625
      %v324 = vmul.f32 %v318, 0.00390625
      %326 = vset.pattern.permute.xlu0 0
      %327 = vperm.xlu0 %326, %v321
      %v328 = vpop.permute.xlu0 %327
      %331 = vset.pattern.permute.xlu0 0
      %332 = vperm.xlu0 %331, %v322
      %v333 = vpop.permute.xlu0 %332
      %336 = vset.pattern.permute.xlu0 0
      %337 = vperm.xlu0 %336, %v323
      %v338 = vpop.permute.xlu0 %337
      %341 = vset.pattern.permute.xlu0 0
      %342 = vperm.xlu0 %341, %v324
      %v343 = vpop.permute.xlu0 %342
      %v345 = vsub.f32 %v202, %v328
      %v346 = vsub.f32 %v203, %v333
      %v347 = vsub.f32 %v204, %v338
      %v348 = vsub.f32 %v205, %v343
      %v349 = vmul.f32 %v345, %v345
      %v350 = vmul.f32 %v346, %v346
      %v351 = vmul.f32 %v347, %v347
      %v352 = vmul.f32 %v348, %v348
      %v353 = vsel %vm206, %v349, 0.0
      %354 = vadd.xlane.f32.xlu0 %v353
      %v355 = vpop.xlane.xlu0 %354
      %v356 = vsel %vm206, %v350, 0.0
      %357 = vadd.xlane.f32.xlu0 %v356
      %v358 = vpop.xlane.xlu0 %357
      %v359 = vsel %vm206, %v351, 0.0
      %360 = vadd.xlane.f32.xlu0 %v359
      %v361 = vpop.xlane.xlu0 %360
      %v362 = vsel %vm206, %v352, 0.0
      %363 = vadd.xlane.f32.xlu0 %v362
      %v364 = vpop.xlane.xlu0 %363
      %365 = vmatprep.subr.mxu0 0.0
      %366 = vmatpush1.msra.mxu0 %v355
      %367 = vmatprep.subr.mxu0 0.0
      %368 = vmatpush1.msra.mxu0 %v358
      %369 = vmatprep.subr.mxu0 0.0
      %370 = vmatpush1.msra.mxu0 %v361
      %371 = vmatprep.subr.mxu0 0.0
      %372 = vmatpush1.msra.mxu0 %v364
      %373 = vmatprep.subr.mxu0 0.0
      %374 = vmatpush1.msra.mxu0 0.0
      %375 = vmatprep.subr.mxu0 0.0
      %376 = vmatpush1.msra.mxu0 0.0
      %377 = vmatprep.subr.mxu0 0.0
      %378 = vmatpush1.msra.mxu0 0.0
      %379 = vmatprep.subr.mxu0 0.0
      %380 = vmatpush1.msra.mxu0 0.0
      %381 = vmatprep.subr.mxu0 0.0
      %382 = vmatpush1.msra.mxu0 0.0
      %383 = vmatprep.subr.mxu0 0.0
      %384 = vmatpush1.msra.mxu0 0.0
      %385 = vmatprep.subr.mxu0 0.0
      %386 = vmatpush1.msra.mxu0 0.0
      %387 = vmatprep.subr.mxu0 0.0
      %388 = vmatpush1.msra.mxu0 0.0
      %389 = vmatprep.subr.mxu0 0.0
      %390 = vmatpush1.msra.mxu0 0.0
      %391 = vmatprep.subr.mxu0 0.0
      %392 = vmatpush1.msra.mxu0 0.0
      %393 = vmatprep.subr.mxu0 0.0
      %394 = vmatpush1.msra.mxu0 0.0
      %395 = vmatprep.subr.mxu0 0.0
      %396 = vmatpush1.msra.mxu0 0.0
      %397 = vmatprep.subr.mxu0 0.0
      %398 = vmatpush1.msra.mxu0 0.0
      %399 = vmatprep.subr.mxu0 0.0
      %400 = vmatpush1.msra.mxu0 0.0
      %401 = vmatprep.subr.mxu0 0.0
      %402 = vmatpush1.msra.mxu0 0.0
      %403 = vmatprep.subr.mxu0 0.0
      %404 = vmatpush1.msra.mxu0 0.0
      %405 = vmatprep.subr.mxu0 0.0
      %406 = vmatpush1.msra.mxu0 0.0
      %407 = vmatprep.subr.mxu0 0.0
      %408 = vmatpush1.msra.mxu0 0.0
      %409 = vmatprep.subr.mxu0 0.0
      %410 = vmatpush1.msra.mxu0 0.0
      %411 = vmatprep.subr.mxu0 0.0
      %412 = vmatpush1.msra.mxu0 0.0
      %413 = vmatprep.subr.mxu0 0.0
      %414 = vmatpush1.msra.mxu0 0.0
      %415 = vmatprep.subr.mxu0 0.0
      %416 = vmatpush1.msra.mxu0 0.0
      %417 = vmatprep.subr.mxu0 0.0
      %418 = vmatpush1.msra.mxu0 0.0
      %419 = vmatprep.subr.mxu0 0.0
      %420 = vmatpush1.msra.mxu0 0.0
      %421 = vmatprep.subr.mxu0 0.0
      %422 = vmatpush1.msra.mxu0 0.0
      %423 = vmatprep.subr.mxu0 0.0
      %424 = vmatpush1.msra.mxu0 0.0
      %425 = vmatprep.subr.mxu0 0.0
      %426 = vmatpush1.msra.mxu0 0.0
      %427 = vmatprep.subr.mxu0 0.0
      %428 = vmatpush1.msra.mxu0 0.0
      %429 = vmatprep.mubr.f32.mxu0 0.0
      %430 = vmatmul.mubr.f32.gmra.mrb[0].mxu0 %v225
      %v431 = vpop.f32.mrb[0].mxu0
      %v432 = vadd.f32 0.0, %v431
      %v433 = vpop.f32.mrb[0].mxu0
      %434 = vmatprep.mubr.f32.mxu0 0.0
      %435 = vmatmul.mubr.f32.gmra.mrb[0].mxu0 %v228
      %v436 = vpop.f32.mrb[0].mxu0
      %v437 = vadd.f32 0.0, %v436
      %v438 = vpop.f32.mrb[0].mxu0
      %439 = vmatprep.mubr.f32.mxu0 0.0
      %440 = vmatmul.mubr.f32.gmra.mrb[0].mxu0 %v231
      %v441 = vpop.f32.mrb[0].mxu0
      %v442 = vadd.f32 0.0, %v441
      %v443 = vpop.f32.mrb[0].mxu0
      %444 = vmatprep.mubr.f32.mxu0 0.0
      %445 = vmatmul.mubr.f32.gmra.mrb[0].mxu0 %v234
      %v446 = vpop.f32.mrb[0].mxu0
      %v447 = vadd.f32 0.0, %v446
      %v448 = vpop.f32.mrb[0].mxu0
      %449 = vdwg.mxu0
      %v450 = vmul.f32 %v432, 0.00390625
      %v451 = vmul.f32 %v437, 0.00390625
      %v452 = vmul.f32 %v442, 0.00390625
      %v453 = vmul.f32 %v447, 0.00390625
      %v454 = vadd.f32 %v450, 1e-05
      %v455 = vadd.f32 %v451, 1e-05
      %v456 = vadd.f32 %v452, 1e-05
      %v457 = vadd.f32 %v453, 1e-05
      %v458 = vrsqrt.pop %v454
      %v459 = vrsqrt.pop %v455
      %v460 = vrsqrt.pop %v456
      %v461 = vrsqrt.pop %v457
      %463 = vset.pattern.permute.xlu0 0
      %464 = vperm.xlu0 %463, %v458
      %v465 = vpop.permute.xlu0 %464
      %468 = vset.pattern.permute.xlu0 0
      %469 = vperm.xlu0 %468, %v459
      %v470 = vpop.permute.xlu0 %469
      %473 = vset.pattern.permute.xlu0 0
      %474 = vperm.xlu0 %473, %v460
      %v475 = vpop.permute.xlu0 %474
      %478 = vset.pattern.permute.xlu0 0
      %479 = vperm.xlu0 %478, %v461
      %v480 = vpop.permute.xlu0 %479
      %v482 = vmul.f32 %v345, %v465
      %v483 = vmul.f32 %v346, %v470
      %v484 = vmul.f32 %v347, %v475
      %v485 = vmul.f32 %v348, %v480
      %v486 = vld [vmem:[%s1] sm:$0xff]
      %v487 = vld [vmem:[%s1 + $0x8] sm:$0xff]
      %v488 = vld [vmem:[%s1 + $0x10] sm:$0xff]
      %v489 = vld [vmem:[%s1 + $0x18] sm:$0xff]
      %491 = vset.pattern.permute.xlu0 0
      %492 = vperm.xlu0 %491, %v486
      %v493 = vpop.permute.xlu0 %492
      %496 = vset.pattern.permute.xlu0 0
      %497 = vperm.xlu0 %496, %v487
      %v498 = vpop.permute.xlu0 %497
      %501 = vset.pattern.permute.xlu0 0
      %502 = vperm.xlu0 %501, %v488
      %v503 = vpop.permute.xlu0 %502
      %506 = vset.pattern.permute.xlu0 0
      %507 = vperm.xlu0 %506, %v489
      %v508 = vpop.permute.xlu0 %507
      %v510 = vmul.f32 %v482, %v493
      %v511 = vmul.f32 %v483, %v498
      %v512 = vmul.f32 %v484, %v503
      %v513 = vmul.f32 %v485, %v508
      %v514 = vld [vmem:[%s2] sm:$0xff]
      %v515 = vld [vmem:[%s2 + $0x8] sm:$0xff]
      %v516 = vld [vmem:[%s2 + $0x10] sm:$0xff]
      %v517 = vld [vmem:[%s2 + $0x18] sm:$0xff]
      %519 = vset.pattern.permute.xlu0 0
      %520 = vperm.xlu0 %519, %v514
      %v521 = vpop.permute.xlu0 %520
      %524 = vset.pattern.permute.xlu0 0
      %525 = vperm.xlu0 %524, %v515
      %v526 = vpop.permute.xlu0 %525
      %529 = vset.pattern.permute.xlu0 0
      %530 = vperm.xlu0 %529, %v516
      %v531 = vpop.permute.xlu0 %530
      %534 = vset.pattern.permute.xlu0 0
      %535 = vperm.xlu0 %534, %v517
      %v536 = vpop.permute.xlu0 %535
      %v538 = vadd.f32 %v510, %v521
      %v539 = vadd.f32 %v511, %v526
      %v540 = vadd.f32 %v512, %v531
      %v541 = vadd.f32 %v513, %v536
      %vm542 = vcmp.ge.f32.partialorder %v538, 0.0
      %vm543 = vcmp.ge.f32.partialorder %v539, 0.0
      %vm544 = vcmp.ge.f32.partialorder %v540, 0.0
      %vm545 = vcmp.ge.f32.partialorder %v541, 0.0
      %v546 = vmul.f32 %v538, 0.01
      %v547 = vmul.f32 %v539, 0.01
      %v548 = vmul.f32 %v540, 0.01
      %v549 = vmul.f32 %v541, 0.01
      %v550 = vsel %vm542, %v538, %v546
      %v551 = vsel %vm543, %v539, %v547
      %v552 = vsel %vm544, %v540, %v548
      %v553 = vsel %vm545, %v541, %v549
      %v554 = vpack.c.bf16 %v551, %v550
      %v555 = vpack.c.bf16 %v553, %v552
      %v558 = vunpack.c.l.b16 %v554
      %v559 = vunpack.c.h.b16 %v554
      %v560 = vunpack.c.l.b16 %v555
      %v561 = vunpack.c.h.b16 %v555
      %v562 = vpack.c.b16 %v558, %v558
      %v563 = vpack.c.b16 %v559, %v559
      %v564 = vpack.c.b16 %v560, %v560
      %v565 = vpack.c.b16 %v561, %v561
      %vm570 = vcmask 519168
      %571 = vst.msk [vmem:[%s197] sm:$0xf] %vm570, %v562
      %572 = vst.msk [vmem:[%s197 + $0x4] sm:$0xf] %vm570, %v563
      %573 = vst.msk [vmem:[%s197 + $0x8] sm:$0xf] %vm570, %v564
      %574 = vst.msk [vmem:[%s197 + $0xc] sm:$0xf] %vm570, %v565
      %p575 = scmp.lt.s32.totalorder %s15, 1
      %s576 = scalar_select %p575, %s15, 1
      %s577 = smul.addr %s576, 4
      %s578 = smul.addr %s577, 4
      %s579 = scalar_lea.vmem %s4, %s578
      // Predicated region
      $region37: #{decoder_forward.10} parent=35 // pred_check
        %p580 = pneg %p122
      $region38: #{decoder_forward.10} parent=35 // pred_check_branch
        %582 = sbr.rel (%p580) target = $region40
      $region39: #{decoder_forward.10} parent=35 // pred_region
        _
      $region40: #{decoder_forward.10} parent=35 // pred_fallthru
        _
    $region36: #{decoder_forward.10} parent=5 // pred_fallthru
      _
    %p583 = scmp.le.s32.totalorder 2, %s10
    // Predicated region
    $region41: #{decoder_forward.10} parent=5 // pred_check
      %p584 = pneg %p583
    $region42: #{decoder_forward.10} parent=5 // pred_check_branch
      %586 = sbr.rel (%p584) target = $region44
    $region43: #{decoder_forward.10} parent=5 // pred_region
      %s587 = ssub.s32 %s10, 2
      // Predicated region
      $region45: #{decoder_forward.10} parent=43 // pred_check
        %p588 = pneg %p128
      $region46: #{decoder_forward.10} parent=43 // pred_check_branch
        %590 = sbr.rel (%p588) target = $region48
      $region47: #{decoder_forward.10} parent=43 // pred_region
        %p591 = scmp.lt.s32.totalorder %s16, 1
        %s592 = scalar_select %p591, %s16, 1
        %s593 = smul.addr %s592, 4
        %s594 = smul.addr %s593, 4
        %s595 = scalar_lea.vmem %s4, %s594
      $region48: #{decoder_forward.10} parent=43 // pred_fallthru
        _
    $region44: #{decoder_forward.10} parent=5 // pred_fallthru
      _
  $region6: #{decoder_forward.10} parent=0 // loop_footer
    %s14 = sadd.s32 1, %s10
  $region7: #{decoder_forward.10} parent=0 // loop_footer_branch
    %9 = sbr.rel target = $region3
  $region8: #{decoder_forward.10} parent=0 // loop_exit
    _

// kernel: decoder_forward.11
$region0: #{decoder_forward.11}
  #allocation0 [shape = 'u32[]', space=smem, size = 0x4, offset = 0x4, fixed_abs, tag = 'smem constant byte address 0x4 - core index']
  #allocation1 [shape = 'u32[144,128]{1,0:T(1,128)}', space=vmem, size = 0x12000, scoped, tag = 'internal scratch']
  %s0 = inlined_call_operand.vmem [shape: bf16[64,128], index: 0, kind: input, shape index: {}]
  %s1 = inlined_call_operand.vmem [shape: bf16[2,128,128], index: 1, kind: input, shape index: {}]
  %s2 = inlined_call_operand.vmem [shape: f32[64,1], index: 2, kind: input, shape index: {}]
  %s3 = inlined_call_operand.vmem [shape: bf16[2,64,128], index: 3, kind: output, shape index: {}]
  %s4 = sld [smem:[#allocation0]]
  $region45: #{decoder_forward.11} parent=0
    _
  %s6 = ssub.s32 1, %s4
  %s7 = scalar_select 0, %s6, %s4
  loop: start=0, step=1, limit=4
  $region2: #{decoder_forward.11} parent=0 // loop_pre_header
    _
  $region3: #{decoder_forward.11} parent=0 // loop_header
    %s9 = sphi 0, %s13
    %p10 = scmp.ge.s32.totalorder %s9, 4
    %s16 = sphi 0, %s28
    %s17 = sphi 0, %s24
    %s18 = sphi 0, %s16
    %s19 = sphi 0, %s17
    %s20 = sphi 0, %s18
    %s21 = sphi 0, %s19
    %s29 = sphi 0, %s29
    %s31 = sphi 0, %s29
    %s32 = sphi 0, %s31
    %s46 = sphi 0, %s32
    %s54 = sphi 0, %s56
    %s57 = sphi 0, %s54
    %s58 = sphi 0, %s57
    %s74 = sphi 0, %s58
    %s78 = sphi 0, %s78
    %s80 = sphi 0, %s78
    %s81 = sphi 0, %s80
    %s95 = sphi 0, %s81
    %s103 = sphi 0, %s105
    %s106 = sphi 0, %s103
    %s107 = sphi 0, %s106
    %s123 = sphi 0, %s107
  $region4: #{decoder_forward.11} parent=0 // loop_header_branch
    %12 = sbr.rel (%p10) target = $region8
  $region5: #{decoder_forward.11} parent=0 // loop_body
    %s14 = ssub.s32 %s9, 1
    %s15 = ssub.s32 %s9, 2
    %s22 = sadd.s32 1, %s17
    %p23 = scmp.ge.s32.totalorder %s22, 1
    %s24 = scalar_select %p23, 0, %s22
    %s25 = sadd.s32 1, %s16
    %s26 = scalar_select %p23, %s25, %s16
    %p27 = scmp.ge.s32.totalorder %s26, 2
    %s28 = scalar_select %p27, 0, %s26
    %s30 = sadd.s32 %s29, 1
    %p33 = scmp.eq.s32.totalorder %s9, 1
    %p34 = scmp.ne.s32.totalorder %s29, %s31
    %p35 = scmp.eq.s32.totalorder %s9, 0
    %p36 = por %p34, %p35
    %p37 = scmp.ne.s32.totalorder %s29, %s31
    %p38 = scmp.eq.s32.totalorder %s14, 1
    %p39 = por %p37, %p38
    %p40 = scmp.ne.s32.totalorder %s31, %s32
    %p41 = scmp.eq.s32.totalorder %s14, 0
    %p42 = por %p40, %p41
    %p43 = scmp.ne.s32.totalorder %s31, %s32
    %p44 = scmp.eq.s32.totalorder %s15, 1
    %p45 = por %p43, %p44
    %p47 = scmp.ne.s32.totalorder %s32, %s46
    %p48 = scmp.eq.s32.totalorder %s15, 0
    %p49 = por %p47, %p48
    %s50 = ssub.s32 %s16, %s28
    %s51 = ssub.s32 %s17, %s24
    %s52 = sor.u32 %s50, %s51
    %p53 = scmp.eq.s32.totalorder %s52, 0
    %s55 = sadd.s32 %s54, 1
    %s56 = scalar_select %p53, %s54, %s55
    %p59 = pneg %p53
    %p60 = scmp.eq.s32.totalorder %s9, 1
    %p61 = por %p59, %p60
    %p62 = scmp.ne.s32.totalorder %s54, %s57
    %p63 = scmp.eq.s32.totalorder %s9, 0
    %p64 = por %p62, %p63
    %p65 = scmp.ne.s32.totalorder %s54, %s57
    %p66 = scmp.eq.s32.totalorder %s14, 1
    %p67 = por %p65, %p66
    %p68 = scmp.ne.s32.totalorder %s57, %s58
    %p69 = scmp.eq.s32.totalorder %s14, 0
    %p70 = por %p68, %p69
    %p71 = scmp.ne.s32.totalorder %s57, %s58
    %p72 = scmp.eq.s32.totalorder %s15, 1
    %p73 = por %p71, %p72
    %p75 = scmp.ne.s32.totalorder %s58, %s74
    %p76 = scmp.eq.s32.totalorder %s15, 0
    %p77 = por %p75, %p76
    %s79 = sadd.s32 %s78, 1
    %p82 = scmp.eq.s32.totalorder %s9, 1
    %p83 = scmp.ne.s32.totalorder %s78, %s80
    %p84 = scmp.eq.s32.totalorder %s9, 0
    %p85 = por %p83, %p84
    %p86 = scmp.ne.s32.totalorder %s78, %s80
    %p87 = scmp.eq.s32.totalorder %s14, 1
    %p88 = por %p86, %p87
    %p89 = scmp.ne.s32.totalorder %s80, %s81
    %p90 = scmp.eq.s32.totalorder %s14, 0
    %p91 = por %p89, %p90
    %p92 = scmp.ne.s32.totalorder %s80, %s81
    %p93 = scmp.eq.s32.totalorder %s15, 1
    %p94 = por %p92, %p93
    %p96 = scmp.ne.s32.totalorder %s81, %s95
    %p97 = scmp.eq.s32.totalorder %s15, 0
    %p98 = por %p96, %p97
    %s99 = ssub.s32 %s16, %s28
    %s100 = ssub.s32 %s17, %s24
    %s101 = sor.u32 %s99, %s100
    %p102 = scmp.eq.s32.totalorder %s101, 0
    %s104 = sadd.s32 %s103, 1
    %s105 = scalar_select %p102, %s103, %s104
    %p108 = pneg %p102
    %p109 = scmp.eq.s32.totalorder %s9, 1
    %p110 = por %p108, %p109
    %p111 = scmp.ne.s32.totalorder %s103, %s106
    %p112 = scmp.eq.s32.totalorder %s9, 0
    %p113 = por %p111, %p112
    %p114 = scmp.ne.s32.totalorder %s103, %s106
    %p115 = scmp.eq.s32.totalorder %s14, 1
    %p116 = por %p114, %p115
    %p117 = scmp.ne.s32.totalorder %s106, %s107
    %p118 = scmp.eq.s32.totalorder %s14, 0
    %p119 = por %p117, %p118
    %p120 = scmp.ne.s32.totalorder %s106, %s107
    %p121 = scmp.eq.s32.totalorder %s15, 1
    %p122 = por %p120, %p121
    %p124 = scmp.ne.s32.totalorder %s107, %s123
    %p125 = scmp.eq.s32.totalorder %s15, 0
    %p126 = por %p124, %p125
    %p127 = scmp.le.s32.totalorder 1, %s9
    %p128 = scmp.lt.s32.totalorder %s9, 3
    %p129 = pnand %p127, %p128
    %p130 = pneg %p129
    // Predicated region
    $region9: #{decoder_forward.11} parent=5 // pred_check
      _
    $region10: #{decoder_forward.11} parent=5 // pred_check_branch
      %132 = sbr.rel (%p129) target = $region12
    $region11: #{decoder_forward.11} parent=5 // pred_region
      %s133 = ssub.s32 %s9, 1
      // Predicated region
      $region13: #{decoder_forward.11} parent=11 // pred_check
        %p134 = pneg %p42
      $region14: #{decoder_forward.11} parent=11 // pred_check_branch
        %136 = sbr.rel (%p134) target = $region16
      $region15: #{decoder_forward.11} parent=11 // pred_region
        _
      $region16: #{decoder_forward.11} parent=11 // pred_fallthru
        _
      // Predicated region
      $region17: #{decoder_forward.11} parent=11 // pred_check
        %p137 = pneg %p91
      $region18: #{decoder_forward.11} parent=11 // pred_check_branch
        %139 = sbr.rel (%p137) target = $region20
      $region19: #{decoder_forward.11} parent=11 // pred_region
        _
      $region20: #{decoder_forward.11} parent=11 // pred_fallthru
        _
    $region12: #{decoder_forward.11} parent=5 // pred_fallthru
      _
    %p140 = scmp.lt.s32.totalorder %s9, 2
    // Predicated region
    $region21: #{decoder_forward.11} parent=5 // pred_check
      %p141 = pneg %p140
    $region22: #{decoder_forward.11} parent=5 // pred_check_branch
      %143 = sbr.rel (%p141) target = $region24
    $region23: #{decoder_forward.11} parent=5 // pred_region
      // Predicated region
      $region25: #{decoder_forward.11} parent=23 // pred_check
        %p144 = pneg %p64
      $region26: #{decoder_forward.11} parent=23 // pred_check_branch
        %146 = sbr.rel (%p144) target = $region28
      $region27: #{decoder_forward.11} parent=23 // pred_region
        %p147 = scmp.lt.s32.totalorder %s16, 1
        %s148 = scalar_select %p147, %s16, 1
        %p149 = scmp.lt.s32.totalorder %s17, 0
        %s150 = scalar_select %p149, %s17, 0
        %s151 = smul.addr %s148, 16
        %s152 = sadd.s32 %s150, %s151
        %s153 = smul.addr %s152, 4
        %s154 = scalar_lea.vmem %s1, %s153
      $region28: #{decoder_forward.11} parent=23 // pred_fallthru
        _
    $region24: #{decoder_forward.11} parent=5 // pred_fallthru
      _
    %p155 = scmp.le.s32.totalorder 1, %s9
    %p156 = scmp.lt.s32.totalorder %s9, 3
    %p157 = pnand %p155, %p156
    %p158 = pneg %p157
    // Predicated region
    $region29: #{decoder_forward.11} parent=5 // pred_check
      _
    $region30: #{decoder_forward.11} parent=5 // pred_check_branch
      %160 = sbr.rel (%p157) target = $region32
    $region31: #{decoder_forward.11} parent=5 // pred_region
      %s161 = ssub.s32 %s9, 1
      %p162 = pneg %p42
      %p163 = pneg %p39
      %p164 = scmp.lt.s32.totalorder %s18, 1
      %s165 = scalar_select %p164, %s18, 1
      %p166 = scmp.lt.s32.totalorder %s19, 0
      %s167 = scalar_select %p166, %s19, 0
      %s168 = smul.addr %s165, 16
      %s169 = sadd.s32 %s167, %s168
      %s170 = smul.addr %s169, 4
      %s171 = scalar_lea.vmem %s1, %s170
      %p172 = pneg %p70
      %p173 = pneg %p67
      %p174 = pneg %p91
      %p175 = pneg %p88
      %p176 = pneg %p119
      %p177 = pneg %p116
      %p178 = scmp.lt.s32.totalorder %s18, 1
      %s179 = scalar_select %p178, %s18, 1
      %p180 = scmp.lt.s32.totalorder %s19, 0
      %s181 = scalar_select %p180, %s19, 0
      %s182 = smul.addr %s179, 8
      %s183 = sadd.s32 %s181, %s182
      %s184 = smul.addr %s183, 4
      %s185 = scalar_lea.vmem %s3, %s184
      %p186 = scmp.lt.s32.totalorder %s18, 1
      %s187 = scalar_select %p186, %s18, 1
      %p188 = scmp.lt.s32.totalorder %s19, 0
      %s189 = scalar_select %p188, %s19, 0
      %s190 = smul.addr %s187, 16
      %s191 = sadd.s32 %s189, %s190
      %s192 = smul.addr %s191, 4
      %s193 = scalar_lea.vmem %s1, %s192
      %p194 = scmp.lt.s32.totalorder %s18, 1
      %s195 = scalar_select %p194, %s18, 1
      %p196 = scmp.lt.s32.totalorder %s19, 0
      %s197 = scalar_select %p196, %s19, 0
      %s198 = smul.addr %s195, 8
      %s199 = sadd.s32 %s197, %s198
      %s200 = smul.addr %s199, 4
      %s201 = scalar_lea.vmem %s3, %s200
      %v203 = vld [vmem:[%s0] sm:$0xf]
      %v204 = vld [vmem:[%s0 + $0x4] sm:$0xf]
      %v205 = vld [vmem:[%s0 + $0x8] sm:$0xf]
      %v206 = vld [vmem:[%s0 + $0xc] sm:$0xf]
      %v207 = vld [vmem:[%s0 + $0x10] sm:$0xf]
      %v208 = vld [vmem:[%s0 + $0x14] sm:$0xf]
      %v209 = vld [vmem:[%s0 + $0x18] sm:$0xf]
      %v210 = vld [vmem:[%s0 + $0x1c] sm:$0xf]
      %v211 = vld [vmem:[%s193] sm:$0xf]
      %v212 = vld [vmem:[%s193 + $0x4] sm:$0xf]
      %v213 = vld [vmem:[%s193 + $0x8] sm:$0xf]
      %v214 = vld [vmem:[%s193 + $0xc] sm:$0xf]
      %v215 = vld [vmem:[%s193 + $0x10] sm:$0xf]
      %v216 = vld [vmem:[%s193 + $0x14] sm:$0xf]
      %v217 = vld [vmem:[%s193 + $0x18] sm:$0xf]
      %v218 = vld [vmem:[%s193 + $0x1c] sm:$0xf]
      %v219 = vld [vmem:[%s193 + $0x20] sm:$0xf]
      %v220 = vld [vmem:[%s193 + $0x24] sm:$0xf]
      %v221 = vld [vmem:[%s193 + $0x28] sm:$0xf]
      %v222 = vld [vmem:[%s193 + $0x2c] sm:$0xf]
      %v223 = vld [vmem:[%s193 + $0x30] sm:$0xf]
      %v224 = vld [vmem:[%s193 + $0x34] sm:$0xf]
      %v225 = vld [vmem:[%s193 + $0x38] sm:$0xf]
      %v226 = vld [vmem:[%s193 + $0x3c] sm:$0xf]
      %v227 = vld [vmem:[%s2] sm:$0xff]
      %v228 = vld [vmem:[%s2 + $0x8] sm:$0xff]
      %v229 = vld [vmem:[%s2 + $0x10] sm:$0xff]
      %v230 = vld [vmem:[%s2 + $0x18] sm:$0xff]
      %v231 = vld [vmem:[%s2 + $0x20] sm:$0xff]
      %v232 = vld [vmem:[%s2 + $0x28] sm:$0xff]
      %v233 = vld [vmem:[%s2 + $0x30] sm:$0xff]
      %v234 = vld [vmem:[%s2 + $0x38] sm:$0xff]
      %236 = vset.pattern.permute.xlu0 0
      %237 = vperm.xlu0 %236, %v227
      %v238 = vpop.permute.xlu0 %237
      %241 = vset.pattern.permute.xlu0 0
      %242 = vperm.xlu0 %241, %v228
      %v243 = vpop.permute.xlu0 %242
      %246 = vset.pattern.permute.xlu0 0
      %247 = vperm.xlu0 %246, %v229
      %v248 = vpop.permute.xlu0 %247
      %251 = vset.pattern.permute.xlu0 0
      %252 = vperm.xlu0 %251, %v230
      %v253 = vpop.permute.xlu0 %252
      %256 = vset.pattern.permute.xlu0 0
      %257 = vperm.xlu0 %256, %v231
      %v258 = vpop.permute.xlu0 %257
      %261 = vset.pattern.permute.xlu0 0
      %262 = vperm.xlu0 %261, %v232
      %v263 = vpop.permute.xlu0 %262
      %266 = vset.pattern.permute.xlu0 0
      %267 = vperm.xlu0 %266, %v233
      %v268 = vpop.permute.xlu0 %267
      %271 = vset.pattern.permute.xlu0 0
      %272 = vperm.xlu0 %271, %v234
      %v273 = vpop.permute.xlu0 %272
      %v283 = vunpack.c.l.b16 %v203
      %v284 = vunpack.c.l.b16 %v204
      %v285 = vunpack.c.l.b16 %v205
      %v286 = vunpack.c.l.b16 %v206
      %v287 = vunpack.c.l.b16 %v207
      %v288 = vunpack.c.l.b16 %v208
      %v289 = vunpack.c.l.b16 %v209
      %v290 = vunpack.c.l.b16 %v210
      %v291 = vpack.c.b16 %v284, %v283
      %v292 = vpack.c.b16 %v286, %v285
      %v293 = vpack.c.b16 %v288, %v287
      %v294 = vpack.c.b16 %v290, %v289
      %v315 = vunpack.c.l.b16 %v211
      %v316 = vunpack.c.l.b16 %v212
      %v317 = vunpack.c.l.b16 %v213
      %v318 = vunpack.c.l.b16 %v214
      %v319 = vunpack.c.l.b16 %v215
      %v320 = vunpack.c.l.b16 %v216
      %v321 = vunpack.c.l.b16 %v217
      %v322 = vunpack.c.l.b16 %v218
      %v323 = vunpack.c.l.b16 %v219
      %v324 = vunpack.c.l.b16 %v220
      %v325 = vunpack.c.l.b16 %v221
      %v326 = vunpack.c.l.b16 %v222
      %v327 = vunpack.c.l.b16 %v223
      %v328 = vunpack.c.l.b16 %v224
      %v329 = vunpack.c.l.b16 %v225
      %v330 = vunpack.c.l.b16 %v226
      %v331 = vpack.c.b16 %v316, %v315
      %v332 = vpack.c.b16 %v318, %v317
      %v333 = vpack.c.b16 %v320, %v319
      %v334 = vpack.c.b16 %v322, %v321
      %v335 = vpack.c.b16 %v324, %v323
      %v336 = vpack.c.b16 %v326, %v325
      %v337 = vpack.c.b16 %v328, %v327
      %v338 = vpack.c.b16 %v330, %v329
      %347 = vmatprep.subr.bf16.mxu0 0
      %348 = vmatpush1.bf16.msra.mxu0 %v331
      %349 = vmatprep.subr.bf16.mxu0 0
      %350 = vmatpush1.bf16.msra.mxu0 %v332
      %351 = vmatprep.subr.bf16.mxu0 0
      %352 = vmatpush1.bf16.msra.mxu0 %v333
      %353 = vmatprep.subr.bf16.mxu0 0
      %354 = vmatpush1.bf16.msra.mxu0 %v334
      %355 = vmatprep.subr.bf16.mxu0 0
      %356 = vmatpush1.bf16.msra.mxu0 %v335
      %357 = vmatprep.subr.bf16.mxu0 0
      %358 = vmatpush1.bf16.msra.mxu0 %v336
      %359 = vmatprep.subr.bf16.mxu0 0
      %360 = vmatpush1.bf16.msra.mxu0 %v337
      %361 = vmatprep.subr.bf16.mxu0 0
      %362 = vmatpush1.bf16.msra.mxu0 %v338
      %363 = vmatprep.subr.bf16.mxu0 0
      %364 = vmatpush1.bf16.msra.mxu0 0
      %365 = vmatprep.subr.bf16.mxu0 0
      %366 = vmatpush1.bf16.msra.mxu0 0
      %367 = vmatprep.subr.bf16.mxu0 0
      %368 = vmatpush1.bf16.msra.mxu0 0
      %369 = vmatprep.subr.bf16.mxu0 0
      %370 = vmatpush1.bf16.msra.mxu0 0
      %371 = vmatprep.subr.bf16.mxu0 0
      %372 = vmatpush1.bf16.msra.mxu0 0
      %373 = vmatprep.subr.bf16.mxu0 0
      %374 = vmatpush1.bf16.msra.mxu0 0
      %375 = vmatprep.subr.bf16.mxu0 0
      %376 = vmatpush1.bf16.msra.mxu0 0
      %377 = vmatprep.subr.bf16.mxu0 0
      %378 = vmatpush1.bf16.msra.mxu0 0
      %379 = vmatprep.mubr.bf16.mxu0 0
      %380 = vmatmul.mubr.bf16.gmra.mrb[0].mxu0 %v291
      %v381 = vpop.f32.mrb[0].mxu0
      %v382 = vadd.f32 %v238, %v381
      %v383 = vpop.f32.mrb[0].mxu0
      %v384 = vpop.f32.mrb[0].mxu0
      %v385 = vadd.f32 %v243, %v384
      %v386 = vpop.f32.mrb[0].mxu0
      %387 = vmatprep.mubr.bf16.mxu0 0
      %388 = vmatmul.mubr.bf16.gmra.mrb[0].mxu0 %v292
      %v389 = vpop.f32.mrb[0].mxu0
      %v390 = vadd.f32 %v248, %v389
      %v391 = vpop.f32.mrb[0].mxu0
      %v392 = vpop.f32.mrb[0].mxu0
      %v393 = vadd.f32 %v253, %v392
      %v394 = vpop.f32.mrb[0].mxu0
      %395 = vmatprep.mubr.bf16.mxu0 0
      %396 = vmatmul.mubr.bf16.gmra.mrb[0].mxu0 %v293
      %v397 = vpop.f32.mrb[0].mxu0
      %v398 = vadd.f32 %v258, %v397
      %v399 = vpop.f32.mrb[0].mxu0
      %v400 = vpop.f32.mrb[0].mxu0
      %v401 = vadd.f32 %v263, %v400
      %v402 = vpop.f32.mrb[0].mxu0
      %403 = vmatprep.mubr.bf16.mxu0 0
      %404 = vmatmul.mubr.bf16.gmra.mrb[0].mxu0 %v294
      %v405 = vpop.f32.mrb[0].mxu0
      %v406 = vadd.f32 %v268, %v405
      %v407 = vpop.f32.mrb[0].mxu0
      %v408 = vpop.f32.mrb[0].mxu0
      %v409 = vadd.f32 %v273, %v408
      %v410 = vpop.f32.mrb[0].mxu0
      %411 = vdwg.mxu0
      %v412 = vpack.c.bf16 %v385, %v382
      %v413 = vpack.c.bf16 %v393, %v390
      %v414 = vpack.c.bf16 %v401, %v398
      %v415 = vpack.c.bf16 %v409, %v406
      %v420 = vunpack.c.l.b16 %v412
      %v421 = vunpack.c.h.b16 %v412
      %v422 = vunpack.c.l.b16 %v413
      %v423 = vunpack.c.h.b16 %v413
      %v424 = vunpack.c.l.b16 %v414
      %v425 = vunpack.c.h.b16 %v414
      %v426 = vunpack.c.l.b16 %v415
      %v427 = vunpack.c.h.b16 %v415
      %v428 = vpack.c.b16 %v420, %v420
      %v429 = vpack.c.b16 %v421, %v421
      %v430 = vpack.c.b16 %v422, %v422
      %v431 = vpack.c.b16 %v423, %v423
      %v432 = vpack.c.b16 %v424, %v424
      %v433 = vpack.c.b16 %v425, %v425
      %v434 = vpack.c.b16 %v426, %v426
      %v435 = vpack.c.b16 %v427, %v427
      %444 = vst [vmem:[%s201] sm:$0xf] %v428
      %445 = vst [vmem:[%s201 + $0x4] sm:$0xf] %v429
      %446 = vst [vmem:[%s201 + $0x8] sm:$0xf] %v430
      %447 = vst [vmem:[%s201 + $0xc] sm:$0xf] %v431
      %448 = vst [vmem:[%s201 + $0x10] sm:$0xf] %v432
      %449 = vst [vmem:[%s201 + $0x14] sm:$0xf] %v433
      %450 = vst [vmem:[%s201 + $0x18] sm:$0xf] %v434
      %451 = vst [vmem:[%s201 + $0x1c] sm:$0xf] %v435
      %p452 = scmp.lt.s32.totalorder %s18, 1
      %s453 = scalar_select %p452, %s18, 1
      %p454 = scmp.lt.s32.totalorder %s19, 0
      %s455 = scalar_select %p454, %s19, 0
      %s456 = smul.addr %s453, 8
      %s457 = sadd.s32 %s455, %s456
      %s458 = smul.addr %s457, 4
      %s459 = scalar_lea.vmem %s3, %s458
      // Predicated region
      $region33: #{decoder_forward.11} parent=31 // pred_check
        %p460 = pneg %p116
      $region34: #{decoder_forward.11} parent=31 // pred_check_branch
        %462 = sbr.rel (%p460) target = $region36
      $region35: #{decoder_forward.11} parent=31 // pred_region
        _
      $region36: #{decoder_forward.11} parent=31 // pred_fallthru
        _
    $region32: #{decoder_forward.11} parent=5 // pred_fallthru
      _
    %p463 = scmp.le.s32.totalorder 2, %s9
    // Predicated region
    $region37: #{decoder_forward.11} parent=5 // pred_check
      %p464 = pneg %p463
    $region38: #{decoder_forward.11} parent=5 // pred_check_branch
      %466 = sbr.rel (%p464) target = $region40
    $region39: #{decoder_forward.11} parent=5 // pred_region
      %s467 = ssub.s32 %s9, 2
      // Predicated region
      $region41: #{decoder_forward.11} parent=39 // pred_check
        %p468 = pneg %p122
      $region42: #{decoder_forward.11} parent=39 // pred_check_branch
        %470 = sbr.rel (%p468) target = $region44
      $region43: #{decoder_forward.11} parent=39 // pred_region
        %p471 = scmp.lt.s32.totalorder %s20, 1
        %s472 = scalar_select %p471, %s20, 1
        %p473 = scmp.lt.s32.totalorder %s21, 0
        %s474 = scalar_select %p473, %s21, 0
        %s475 = smul.addr %s472, 8
        %s476 = sadd.s32 %s474, %s475
        %s477 = smul.addr %s476, 4
        %s478 = scalar_lea.vmem %s3, %s477
      $region44: #{decoder_forward.11} parent=39 // pred_fallthru
        _
    $region40: #{decoder_forward.11} parent=5 // pred_fallthru
      _
  $region6: #{decoder_forward.11} parent=0 // loop_footer
    %s13 = sadd.s32 1, %s9
  $region7: #{decoder_forward.11} parent=0 // loop_footer_branch
    %8 = sbr.rel target = $region3
  $region8: #{decoder_forward.11} parent=0 // loop_exit
    _

// kernel: decoder_forward.12
$region0: #{decoder_forward.12}
  #allocation0 [shape = 'u32[]', space=smem, size = 0x4, offset = 0x4, fixed_abs, tag = 'smem constant byte address 0x4 - core index']
  #allocation1 [shape = 'u32[144,128]{1,0:T(1,128)}', space=vmem, size = 0x12000, scoped, tag = 'internal scratch']
  %s0 = inlined_call_operand.vmem [shape: bf16[2,16,256], index: 0, kind: input, shape index: {}]
  %s1 = inlined_call_operand.vmem [shape: f32[16,1], index: 1, kind: input, shape index: {}]
  %s2 = inlined_call_operand.vmem [shape: f32[16,1], index: 2, kind: input, shape index: {}]
  %s3 = inlined_call_operand.vmem [shape: f32[16,16], index: 3, kind: input, shape index: {}]
  %s4 = inlined_call_operand.vmem [shape: bf16[2,16,256], index: 4, kind: output, shape index: {}]
  %s5 = sld [smem:[#allocation0]]
  $region49: #{decoder_forward.12} parent=0
    _
  %s7 = ssub.s32 1, %s5
  %s8 = scalar_select 0, %s7, %s5
  loop: start=0, step=1, limit=4
  $region2: #{decoder_forward.12} parent=0 // loop_pre_header
    _
  $region3: #{decoder_forward.12} parent=0 // loop_header
    %s10 = sphi 0, %s14
    %p11 = scmp.ge.s32.totalorder %s10, 4
    %s20 = sphi 0, %s22
    %s23 = sphi 0, %s20
    %s24 = sphi 0, %s23
    %s40 = sphi 0, %s24
    %s44 = sphi 0, %s44
    %s46 = sphi 0, %s44
    %s47 = sphi 0, %s46
    %s61 = sphi 0, %s47
    %s65 = sphi 0, %s65
    %s67 = sphi 0, %s65
    %s68 = sphi 0, %s67
    %s82 = sphi 0, %s68
    %s86 = sphi 0, %s86
    %s88 = sphi 0, %s86
    %s89 = sphi 0, %s88
    %s103 = sphi 0, %s89
    %s109 = sphi 0, %s111
    %s112 = sphi 0, %s109
    %s113 = sphi 0, %s112
    %s129 = sphi 0, %s113
  $region4: #{decoder_forward.12} parent=0 // loop_header_branch
    %13 = sbr.rel (%p11) target = $region8
  $region5: #{decoder_forward.12} parent=0 // loop_body
    %s15 = ssub.s32 %s10, 1
    %s16 = ssub.s32 %s10, 2
    %s17 = sadd.s32 %s10, 1
    %s18 = ssub.s32 %s10, %s17
    %p19 = scmp.eq.s32.totalorder %s18, 0
    %s21 = sadd.s32 %s20, 1
    %s22 = scalar_select %p19, %s20, %s21
    %p25 = pneg %p19
    %p26 = scmp.eq.s32.totalorder %s10, 1
    %p27 = por %p25, %p26
    %p28 = scmp.ne.s32.totalorder %s20, %s23
    %p29 = scmp.eq.s32.totalorder %s10, 0
    %p30 = por %p28, %p29
    %p31 = scmp.ne.s32.totalorder %s20, %s23
    %p32 = scmp.eq.s32.totalorder %s15, 1
    %p33 = por %p31, %p32
    %p34 = scmp.ne.s32.totalorder %s23, %s24
    %p35 = scmp.eq.s32.totalorder %s15, 0
    %p36 = por %p34, %p35
    %p37 = scmp.ne.s32.totalorder %s23, %s24
    %p38 = scmp.eq.s32.totalorder %s16, 1
    %p39 = por %p37, %p38
    %p41 = scmp.ne.s32.totalorder %s24, %s40
    %p42 = scmp.eq.s32.totalorder %s16, 0
    %p43 = por %p41, %p42
    %s45 = sadd.s32 %s44, 1
    %p48 = scmp.eq.s32.totalorder %s10, 1
    %p49 = scmp.ne.s32.totalorder %s44, %s46
    %p50 = scmp.eq.s32.totalorder %s10, 0
    %p51 = por %p49, %p50
    %p52 = scmp.ne.s32.totalorder %s44, %s46
    %p53 = scmp.eq.s32.totalorder %s15, 1
    %p54 = por %p52, %p53
    %p55 = scmp.ne.s32.totalorder %s46, %s47
    %p56 = scmp.eq.s32.totalorder %s15, 0
    %p57 = por %p55, %p56
    %p58 = scmp.ne.s32.totalorder %s46, %s47
    %p59 = scmp.eq.s32.totalorder %s16, 1
    %p60 = por %p58, %p59
    %p62 = scmp.ne.s32.totalorder %s47, %s61
    %p63 = scmp.eq.s32.totalorder %s16, 0
    %p64 = por %p62, %p63
    %s66 = sadd.s32 %s65, 1
    %p69 = scmp.eq.s32.totalorder %s10, 1
    %p70 = scmp.ne.s32.totalorder %s65, %s67
    %p71 = scmp.eq.s32.totalorder %s10, 0
    %p72 = por %p70, %p71
    %p73 = scmp.ne.s32.totalorder %s65, %s67
    %p74 = scmp.eq.s32.totalorder %s15, 1
    %p75 = por %p73, %p74
    %p76 = scmp.ne.s32.totalorder %s67, %s68
    %p77 = scmp.eq.s32.totalorder %s15, 0
    %p78 = por %p76, %p77
    %p79 = scmp.ne.s32.totalorder %s67, %s68
    %p80 = scmp.eq.s32.totalorder %s16, 1
    %p81 = por %p79, %p80
    %p83 = scmp.ne.s32.totalorder %s68, %s82
    %p84 = scmp.eq.s32.totalorder %s16, 0
    %p85 = por %p83, %p84
    %s87 = sadd.s32 %s86, 1
    %p90 = scmp.eq.s32.totalorder %s10, 1
    %p91 = scmp.ne.s32.totalorder %s86, %s88
    %p92 = scmp.eq.s32.totalorder %s10, 0
    %p93 = por %p91, %p92
    %p94 = scmp.ne.s32.totalorder %s86, %s88
    %p95 = scmp.eq.s32.totalorder %s15, 1
    %p96 = por %p94, %p95
    %p97 = scmp.ne.s32.totalorder %s88, %s89
    %p98 = scmp.eq.s32.totalorder %s15, 0
    %p99 = por %p97, %p98
    %p100 = scmp.ne.s32.totalorder %s88, %s89
    %p101 = scmp.eq.s32.totalorder %s16, 1
    %p102 = por %p100, %p101
    %p104 = scmp.ne.s32.totalorder %s89, %s103
    %p105 = scmp.eq.s32.totalorder %s16, 0
    %p106 = por %p104, %p105
    %s107 = ssub.s32 %s10, %s17
    %p108 = scmp.eq.s32.totalorder %s107, 0
    %s110 = sadd.s32 %s109, 1
    %s111 = scalar_select %p108, %s109, %s110
    %p114 = pneg %p108
    %p115 = scmp.eq.s32.totalorder %s10, 1
    %p116 = por %p114, %p115
    %p117 = scmp.ne.s32.totalorder %s109, %s112
    %p118 = scmp.eq.s32.totalorder %s10, 0
    %p119 = por %p117, %p118
    %p120 = scmp.ne.s32.totalorder %s109, %s112
    %p121 = scmp.eq.s32.totalorder %s15, 1
    %p122 = por %p120, %p121
    %p123 = scmp.ne.s32.totalorder %s112, %s113
    %p124 = scmp.eq.s32.totalorder %s15, 0
    %p125 = por %p123, %p124
    %p126 = scmp.ne.s32.totalorder %s112, %s113
    %p127 = scmp.eq.s32.totalorder %s16, 1
    %p128 = por %p126, %p127
    %p130 = scmp.ne.s32.totalorder %s113, %s129
    %p131 = scmp.eq.s32.totalorder %s16, 0
    %p132 = por %p130, %p131
    %p133 = scmp.le.s32.totalorder 1, %s10
    %p134 = scmp.lt.s32.totalorder %s10, 3
    %p135 = pnand %p133, %p134
    %p136 = pneg %p135
    // Predicated region
    $region9: #{decoder_forward.12} parent=5 // pred_check
      _
    $region10: #{decoder_forward.12} parent=5 // pred_check_branch
      %138 = sbr.rel (%p135) target = $region12
    $region11: #{decoder_forward.12} parent=5 // pred_region
      %s139 = ssub.s32 %s10, 1
      // Predicated region
      $region13: #{decoder_forward.12} parent=11 // pred_check
        %p140 = pneg %p57
      $region14: #{decoder_forward.12} parent=11 // pred_check_branch
        %142 = sbr.rel (%p140) target = $region16
      $region15: #{decoder_forward.12} parent=11 // pred_region
        _
      $region16: #{decoder_forward.12} parent=11 // pred_fallthru
        _
      // Predicated region
      $region17: #{decoder_forward.12} parent=11 // pred_check
        %p143 = pneg %p78
      $region18: #{decoder_forward.12} parent=11 // pred_check_branch
        %145 = sbr.rel (%p143) target = $region20
      $region19: #{decoder_forward.12} parent=11 // pred_region
        _
      $region20: #{decoder_forward.12} parent=11 // pred_fallthru
        _
      // Predicated region
      $region21: #{decoder_forward.12} parent=11 // pred_check
        %p146 = pneg %p99
      $region22: #{decoder_forward.12} parent=11 // pred_check_branch
        %148 = sbr.rel (%p146) target = $region24
      $region23: #{decoder_forward.12} parent=11 // pred_region
        _
      $region24: #{decoder_forward.12} parent=11 // pred_fallthru
        _
    $region12: #{decoder_forward.12} parent=5 // pred_fallthru
      _
    %p149 = scmp.lt.s32.totalorder %s10, 2
    // Predicated region
    $region25: #{decoder_forward.12} parent=5 // pred_check
      %p150 = pneg %p149
    $region26: #{decoder_forward.12} parent=5 // pred_check_branch
      %152 = sbr.rel (%p150) target = $region28
    $region27: #{decoder_forward.12} parent=5 // pred_region
      // Predicated region
      $region29: #{decoder_forward.12} parent=27 // pred_check
        %p153 = pneg %p30
      $region30: #{decoder_forward.12} parent=27 // pred_check_branch
        %155 = sbr.rel (%p153) target = $region32
      $region31: #{decoder_forward.12} parent=27 // pred_region
        %p156 = scmp.lt.s32.totalorder %s10, 1
        %s157 = scalar_select %p156, %s10, 1
        %s158 = smul.addr %s157, 4
        %s159 = smul.addr %s158, 4
        %s160 = scalar_lea.vmem %s0, %s159
      $region32: #{decoder_forward.12} parent=27 // pred_fallthru
        _
    $region28: #{decoder_forward.12} parent=5 // pred_fallthru
      _
    %p161 = scmp.le.s32.totalorder 1, %s10
    %p162 = scmp.lt.s32.totalorder %s10, 3
    %p163 = pnand %p161, %p162
    %p164 = pneg %p163
    // Predicated region
    $region33: #{decoder_forward.12} parent=5 // pred_check
      _
    $region34: #{decoder_forward.12} parent=5 // pred_check_branch
      %166 = sbr.rel (%p163) target = $region36
    $region35: #{decoder_forward.12} parent=5 // pred_region
      %s167 = ssub.s32 %s10, 1
      %p168 = scmp.lt.s32.totalorder %s15, 1
      %s169 = scalar_select %p168, %s15, 1
      %s170 = smul.addr %s169, 4
      %s171 = smul.addr %s170, 4
      %s172 = scalar_lea.vmem %s0, %s171
      %p173 = pneg %p36
      %p174 = pneg %p33
      %p175 = pneg %p57
      %p176 = pneg %p54
      %p177 = pneg %p78
      %p178 = pneg %p75
      %p179 = pneg %p99
      %p180 = pneg %p96
      %p181 = pneg %p125
      %p182 = pneg %p122
      %p183 = scmp.lt.s32.totalorder %s15, 1
      %s184 = scalar_select %p183, %s15, 1
      %s185 = smul.addr %s184, 4
      %s186 = smul.addr %s185, 4
      %s187 = scalar_lea.vmem %s4, %s186
      %p188 = scmp.lt.s32.totalorder %s15, 1
      %s189 = scalar_select %p188, %s15, 1
      %s190 = smul.addr %s189, 4
      %s191 = smul.addr %s190, 4
      %s192 = scalar_lea.vmem %s0, %s191
      %p193 = scmp.lt.s32.totalorder %s15, 1
      %s194 = scalar_select %p193, %s15, 1
      %s195 = smul.addr %s194, 4
      %s196 = smul.addr %s195, 4
      %s197 = scalar_lea.vmem %s4, %s196
      %v198 = vld [vmem:[%s192] sm:$0xff]
      %v199 = vld [vmem:[%s192 + $0x8] sm:$0xff]
      %v200 = vunpack.c.l.bf16 %v198
      %v201 = vunpack.c.h.bf16 %v198
      %v202 = vunpack.c.l.bf16 %v199
      %v203 = vunpack.c.h.bf16 %v199
      %v204 = vadd.f32 %v200, %v201
      %205 = vadd.xlane.f32.xlu0 %v204
      %v206 = vpop.xlane.xlu0 %205
      %v207 = vadd.f32 %v202, %v203
      %208 = vadd.xlane.f32.xlu0 %v207
      %v209 = vpop.xlane.xlu0 %208
      %v210 = vld [vmem:[%s3] sm:$0xff]
      %v211 = vld [vmem:[%s3 + $0x8] sm:$0xff]
      %vm212 = vcmask 130048
      %v214 = vsel %vm212, %v210, 0
      %v217 = vsel %vm212, %v211, 0
      %219 = vmatprep.subr.mxu0 0.0
      %220 = vmatpush1.msra.mxu0 %v206
      %221 = vmatprep.subr.mxu0 0.0
      %222 = vmatpush1.msra.mxu0 %v209
      %223 = vmatprep.subr.mxu0 0.0
      %224 = vmatpush1.msra.mxu0 0.0
      %225 = vmatprep.subr.mxu0 0.0
      %226 = vmatpush1.msra.mxu0 0.0
      %227 = vmatprep.subr.mxu0 0.0
      %228 = vmatpush1.msra.mxu0 0.0
      %229 = vmatprep.subr.mxu0 0.0
      %230 = vmatpush1.msra.mxu0 0.0
      %231 = vmatprep.subr.mxu0 0.0
      %232 = vmatpush1.msra.mxu0 0.0
      %233 = vmatprep.subr.mxu0 0.0
      %234 = vmatpush1.msra.mxu0 0.0
      %235 = vmatprep.subr.mxu0 0.0
      %236 = vmatpush1.msra.mxu0 0.0
      %237 = vmatprep.subr.mxu0 0.0
      %238 = vmatpush1.msra.mxu0 0.0
      %239 = vmatprep.subr.mxu0 0.0
      %240 = vmatpush1.msra.mxu0 0.0
      %241 = vmatprep.subr.mxu0 0.0
      %242 = vmatpush1.msra.mxu0 0.0
      %243 = vmatprep.subr.mxu0 0.0
      %244 = vmatpush1.msra.mxu0 0.0
      %245 = vmatprep.subr.mxu0 0.0
      %246 = vmatpush1.msra.mxu0 0.0
      %247 = vmatprep.subr.mxu0 0.0
      %248 = vmatpush1.msra.mxu0 0.0
      %249 = vmatprep.subr.mxu0 0.0
      %250 = vmatpush1.msra.mxu0 0.0
      %251 = vmatprep.subr.mxu0 0.0
      %252 = vmatpush1.msra.mxu0 0.0
      %253 = vmatprep.subr.mxu0 0.0
      %254 = vmatpush1.msra.mxu0 0.0
      %255 = vmatprep.subr.mxu0 0.0
      %256 = vmatpush1.msra.mxu0 0.0
      %257 = vmatprep.subr.mxu0 0.0
      %258 = vmatpush1.msra.mxu0 0.0
      %259 = vmatprep.subr.mxu0 0.0
      %260 = vmatpush1.msra.mxu0 0.0
      %261 = vmatprep.subr.mxu0 0.0
      %262 = vmatpush1.msra.mxu0 0.0
      %263 = vmatprep.subr.mxu0 0.0
      %264 = vmatpush1.msra.mxu0 0.0
      %265 = vmatprep.subr.mxu0 0.0
      %266 = vmatpush1.msra.mxu0 0.0
      %267 = vmatprep.subr.mxu0 0.0
      %268 = vmatpush1.msra.mxu0 0.0
      %269 = vmatprep.subr.mxu0 0.0
      %270 = vmatpush1.msra.mxu0 0.0
      %271 = vmatprep.subr.mxu0 0.0
      %272 = vmatpush1.msra.mxu0 0.0
      %273 = vmatprep.subr.mxu0 0.0
      %274 = vmatpush1.msra.mxu0 0.0
      %275 = vmatprep.subr.mxu0 0.0
      %276 = vmatpush1.msra.mxu0 0.0
      %277 = vmatprep.subr.mxu0 0.0
      %278 = vmatpush1.msra.mxu0 0.0
      %279 = vmatprep.subr.mxu0 0.0
      %280 = vmatpush1.msra.mxu0 0.0
      %281 = vmatprep.subr.mxu0 0.0
      %282 = vmatpush1.msra.mxu0 0.0
      %283 = vmatprep.mubr.f32.mxu0 0.0
      %284 = vmatmul.mubr.f32.gmra.mrb[0].mxu0 %v214
      %v285 = vpop.f32.mrb[0].mxu0
      %v286 = vadd.f32 0.0, %v285
      %v287 = vpop.f32.mrb[0].mxu0
      %288 = vmatprep.mubr.f32.mxu0 0.0
      %289 = vmatmul.mubr.f32.gmra.mrb[0].mxu0 %v217
      %v290 = vpop.f32.mrb[0].mxu0
      %v291 = vadd.f32 0.0, %v290
      %v292 = vpop.f32.mrb[0].mxu0
      %293 = vdwg.mxu0
      %v294 = vmul.f32 %v286, 0.001953125
      %v295 = vmul.f32 %v291, 0.001953125
      %297 = vset.pattern.permute.xlu0 0
      %298 = vperm.xlu0 %297, %v294
      %v299 = vpop.permute.xlu0 %298
      %302 = vset.pattern.permute.xlu0 0
      %303 = vperm.xlu0 %302, %v295
      %v304 = vpop.permute.xlu0 %303
      %v306 = vsub.f32 %v200, %v299
      %v307 = vsub.f32 %v201, %v299
      %v308 = vsub.f32 %v202, %v304
      %v309 = vsub.f32 %v203, %v304
      %v310 = vmul.f32 %v306, %v306
      %v311 = vmul.f32 %v307, %v307
      %v312 = vmul.f32 %v308, %v308
      %v313 = vmul.f32 %v309, %v309
      %v314 = vadd.f32 %v310, %v311
      %315 = vadd.xlane.f32.xlu0 %v314
      %v316 = vpop.xlane.xlu0 %315
      %v317 = vadd.f32 %v312, %v313
      %318 = vadd.xlane.f32.xlu0 %v317
      %v319 = vpop.xlane.xlu0 %318
      %320 = vmatprep.subr.mxu0 0.0
      %321 = vmatpush1.msra.mxu0 %v316
      %322 = vmatprep.subr.mxu0 0.0
      %323 = vmatpush1.msra.mxu0 %v319
      %324 = vmatprep.subr.mxu0 0.0
      %325 = vmatpush1.msra.mxu0 0.0
      %326 = vmatprep.subr.mxu0 0.0
      %327 = vmatpush1.msra.mxu0 0.0
      %328 = vmatprep.subr.mxu0 0.0
      %329 = vmatpush1.msra.mxu0 0.0
      %330 = vmatprep.subr.mxu0 0.0
      %331 = vmatpush1.msra.mxu0 0.0
      %332 = vmatprep.subr.mxu0 0.0
      %333 = vmatpush1.msra.mxu0 0.0
      %334 = vmatprep.subr.mxu0 0.0
      %335 = vmatpush1.msra.mxu0 0.0
      %336 = vmatprep.subr.mxu0 0.0
      %337 = vmatpush1.msra.mxu0 0.0
      %338 = vmatprep.subr.mxu0 0.0
      %339 = vmatpush1.msra.mxu0 0.0
      %340 = vmatprep.subr.mxu0 0.0
      %341 = vmatpush1.msra.mxu0 0.0
      %342 = vmatprep.subr.mxu0 0.0
      %343 = vmatpush1.msra.mxu0 0.0
      %344 = vmatprep.subr.mxu0 0.0
      %345 = vmatpush1.msra.mxu0 0.0
      %346 = vmatprep.subr.mxu0 0.0
      %347 = vmatpush1.msra.mxu0 0.0
      %348 = vmatprep.subr.mxu0 0.0
      %349 = vmatpush1.msra.mxu0 0.0
      %350 = vmatprep.subr.mxu0 0.0
      %351 = vmatpush1.msra.mxu0 0.0
      %352 = vmatprep.subr.mxu0 0.0
      %353 = vmatpush1.msra.mxu0 0.0
      %354 = vmatprep.subr.mxu0 0.0
      %355 = vmatpush1.msra.mxu0 0.0
      %356 = vmatprep.subr.mxu0 0.0
      %357 = vmatpush1.msra.mxu0 0.0
      %358 = vmatprep.subr.mxu0 0.0
      %359 = vmatpush1.msra.mxu0 0.0
      %360 = vmatprep.subr.mxu0 0.0
      %361 = vmatpush1.msra.mxu0 0.0
      %362 = vmatprep.subr.mxu0 0.0
      %363 = vmatpush1.msra.mxu0 0.0
      %364 = vmatprep.subr.mxu0 0.0
      %365 = vmatpush1.msra.mxu0 0.0
      %366 = vmatprep.subr.mxu0 0.0
      %367 = vmatpush1.msra.mxu0 0.0
      %368 = vmatprep.subr.mxu0 0.0
      %369 = vmatpush1.msra.mxu0 0.0
      %370 = vmatprep.subr.mxu0 0.0
      %371 = vmatpush1.msra.mxu0 0.0
      %372 = vmatprep.subr.mxu0 0.0
      %373 = vmatpush1.msra.mxu0 0.0
      %374 = vmatprep.subr.mxu0 0.0
      %375 = vmatpush1.msra.mxu0 0.0
      %376 = vmatprep.subr.mxu0 0.0
      %377 = vmatpush1.msra.mxu0 0.0
      %378 = vmatprep.subr.mxu0 0.0
      %379 = vmatpush1.msra.mxu0 0.0
      %380 = vmatprep.subr.mxu0 0.0
      %381 = vmatpush1.msra.mxu0 0.0
      %382 = vmatprep.subr.mxu0 0.0
      %383 = vmatpush1.msra.mxu0 0.0
      %384 = vmatprep.mubr.f32.mxu0 0.0
      %385 = vmatmul.mubr.f32.gmra.mrb[0].mxu0 %v214
      %v386 = vpop.f32.mrb[0].mxu0
      %v387 = vadd.f32 0.0, %v386
      %v388 = vpop.f32.mrb[0].mxu0
      %389 = vmatprep.mubr.f32.mxu0 0.0
      %390 = vmatmul.mubr.f32.gmra.mrb[0].mxu0 %v217
      %v391 = vpop.f32.mrb[0].mxu0
      %v392 = vadd.f32 0.0, %v391
      %v393 = vpop.f32.mrb[0].mxu0
      %394 = vdwg.mxu0
      %v395 = vmul.f32 %v387, 0.001953125
      %v396 = vmul.f32 %v392, 0.001953125
      %v397 = vadd.f32 %v395, 1e-05
      %v398 = vadd.f32 %v396, 1e-05
      %v399 = vrsqrt.pop %v397
      %v400 = vrsqrt.pop %v398
      %402 = vset.pattern.permute.xlu0 0
      %403 = vperm.xlu0 %402, %v399
      %v404 = vpop.permute.xlu0 %403
      %407 = vset.pattern.permute.xlu0 0
      %408 = vperm.xlu0 %407, %v400
      %v409 = vpop.permute.xlu0 %408
      %v411 = vmul.f32 %v306, %v404
      %v412 = vmul.f32 %v307, %v404
      %v413 = vmul.f32 %v308, %v409
      %v414 = vmul.f32 %v309, %v409
      %v415 = vld [vmem:[%s1] sm:$0xff]
      %v416 = vld [vmem:[%s1 + $0x8] sm:$0xff]
      %418 = vset.pattern.permute.xlu0 0
      %419 = vperm.xlu0 %418, %v415
      %v420 = vpop.permute.xlu0 %419
      %423 = vset.pattern.permute.xlu0 0
      %424 = vperm.xlu0 %423, %v416
      %v425 = vpop.permute.xlu0 %424
      %v427 = vmul.f32 %v411, %v420
      %v428 = vmul.f32 %v412, %v420
      %v429 = vmul.f32 %v413, %v425
      %v430 = vmul.f32 %v414, %v425
      %v431 = vld [vmem:[%s2] sm:$0xff]
      %v432 = vld [vmem:[%s2 + $0x8] sm:$0xff]
      %434 = vset.pattern.permute.xlu0 0
      %435 = vperm.xlu0 %434, %v431
      %v436 = vpop.permute.xlu0 %435
      %439 = vset.pattern.permute.xlu0 0
      %440 = vperm.xlu0 %439, %v432
      %v441 = vpop.permute.xlu0 %440
      %v443 = vadd.f32 %v427, %v436
      %v444 = vadd.f32 %v428, %v436
      %v445 = vadd.f32 %v429, %v441
      %v446 = vadd.f32 %v430, %v441
      %vm447 = vcmp.ge.f32.partialorder %v443, 0.0
      %vm448 = vcmp.ge.f32.partialorder %v444, 0.0
      %vm449 = vcmp.ge.f32.partialorder %v445, 0.0
      %vm450 = vcmp.ge.f32.partialorder %v446, 0.0
      %v451 = vmul.f32 %v443, 0.01
      %v452 = vmul.f32 %v444, 0.01
      %v453 = vmul.f32 %v445, 0.01
      %v454 = vmul.f32 %v446, 0.01
      %v455 = vsel %vm447, %v443, %v451
      %v456 = vsel %vm448, %v444, %v452
      %v457 = vsel %vm449, %v445, %v453
      %v458 = vsel %vm450, %v446, %v454
      %v459 = vpack.c.bf16 %v457, %v455
      %v460 = vpack.c.bf16 %v458, %v456
      %v463 = vunpack.c.l.b16 %v459
      %v464 = vunpack.c.l.b16 %v460
      %v465 = vunpack.c.h.b16 %v459
      %v466 = vunpack.c.h.b16 %v460
      %v467 = vpack.c.b16 %v464, %v463
      %v468 = vpack.c.b16 %v466, %v465
      %471 = vst [vmem:[%s197] sm:$0xff] %v467
      %472 = vst [vmem:[%s197 + $0x8] sm:$0xff] %v468
      %p473 = scmp.lt.s32.totalorder %s15, 1
      %s474 = scalar_select %p473, %s15, 1
      %s475 = smul.addr %s474, 4
      %s476 = smul.addr %s475, 4
      %s477 = scalar_lea.vmem %s4, %s476
      // Predicated region
      $region37: #{decoder_forward.12} parent=35 // pred_check
        %p478 = pneg %p122
      $region38: #{decoder_forward.12} parent=35 // pred_check_branch
        %480 = sbr.rel (%p478) target = $region40
      $region39: #{decoder_forward.12} parent=35 // pred_region
        _
      $region40: #{decoder_forward.12} parent=35 // pred_fallthru
        _
    $region36: #{decoder_forward.12} parent=5 // pred_fallthru
      _
    %p481 = scmp.le.s32.totalorder 2, %s10
    // Predicated region
    $region41: #{decoder_forward.12} parent=5 // pred_check
      %p482 = pneg %p481
    $region42: #{decoder_forward.12} parent=5 // pred_check_branch
      %484 = sbr.rel (%p482) target = $region44
    $region43: #{decoder_forward.12} parent=5 // pred_region
      %s485 = ssub.s32 %s10, 2
      // Predicated region
      $region45: #{decoder_forward.12} parent=43 // pred_check
        %p486 = pneg %p128
      $region46: #{decoder_forward.12} parent=43 // pred_check_branch
        %488 = sbr.rel (%p486) target = $region48
      $region47: #{decoder_forward.12} parent=43 // pred_region
        %p489 = scmp.lt.s32.totalorder %s16, 1
        %s490 = scalar_select %p489, %s16, 1
        %s491 = smul.addr %s490, 4
        %s492 = smul.addr %s491, 4
        %s493 = scalar_lea.vmem %s4, %s492
      $region48: #{decoder_forward.12} parent=43 // pred_fallthru
        _
    $region44: #{decoder_forward.12} parent=5 // pred_fallthru
      _
  $region6: #{decoder_forward.12} parent=0 // loop_footer
    %s14 = sadd.s32 1, %s10
  $region7: #{decoder_forward.12} parent=0 // loop_footer_branch
    %9 = sbr.rel target = $region3
  $region8: #{decoder_forward.12} parent=0 // loop_exit
    _

// kernel: decoder_forward.13
$region0: #{decoder_forward.13}
  #allocation0 [shape = 'u32[]', space=smem, size = 0x4, offset = 0x4, fixed_abs, tag = 'smem constant byte address 0x4 - core index']
  #allocation1 [shape = 'u32[144,128]{1,0:T(1,128)}', space=vmem, size = 0x12000, scoped, tag = 'internal scratch']
  %s0 = inlined_call_operand.vmem [shape: bf16[8,64], index: 0, kind: input, shape index: {}]
  %s1 = inlined_call_operand.vmem [shape: bf16[2,64,384], index: 1, kind: input, shape index: {}]
  %s2 = inlined_call_operand.vmem [shape: f32[8,1], index: 2, kind: input, shape index: {}]
  %s3 = inlined_call_operand.vmem [shape: f32[2,8,384], index: 3, kind: output, shape index: {}]
  %s4 = sld [smem:[#allocation0]]
  $region45: #{decoder_forward.13} parent=0
    _
  %s6 = ssub.s32 1, %s4
  %s7 = scalar_select 0, %s6, %s4
  loop: start=0, step=1, limit=4
  $region2: #{decoder_forward.13} parent=0 // loop_pre_header
    _
  $region3: #{decoder_forward.13} parent=0 // loop_header
    %s9 = sphi 0, %s13
    %p10 = scmp.ge.s32.totalorder %s9, 4
    %s16 = sphi 0, %s28
    %s17 = sphi 0, %s24
    %s18 = sphi 0, %s16
    %s19 = sphi 0, %s17
    %s20 = sphi 0, %s18
    %s21 = sphi 0, %s19
    %s29 = sphi 0, %s29
    %s31 = sphi 0, %s29
    %s32 = sphi 0, %s31
    %s46 = sphi 0, %s32
    %s54 = sphi 0, %s56
    %s57 = sphi 0, %s54
    %s58 = sphi 0, %s57
    %s74 = sphi 0, %s58
    %s78 = sphi 0, %s78
    %s80 = sphi 0, %s78
    %s81 = sphi 0, %s80
    %s95 = sphi 0, %s81
    %s103 = sphi 0, %s105
    %s106 = sphi 0, %s103
    %s107 = sphi 0, %s106
    %s123 = sphi 0, %s107
  $region4: #{decoder_forward.13} parent=0 // loop_header_branch
    %12 = sbr.rel (%p10) target = $region8
  $region5: #{decoder_forward.13} parent=0 // loop_body
    %s14 = ssub.s32 %s9, 1
    %s15 = ssub.s32 %s9, 2
    %s22 = sadd.s32 1, %s17
    %p23 = scmp.ge.s32.totalorder %s22, 1
    %s24 = scalar_select %p23, 0, %s22
    %s25 = sadd.s32 1, %s16
    %s26 = scalar_select %p23, %s25, %s16
    %p27 = scmp.ge.s32.totalorder %s26, 2
    %s28 = scalar_select %p27, 0, %s26
    %s30 = sadd.s32 %s29, 1
    %p33 = scmp.eq.s32.totalorder %s9, 1
    %p34 = scmp.ne.s32.totalorder %s29, %s31
    %p35 = scmp.eq.s32.totalorder %s9, 0
    %p36 = por %p34, %p35
    %p37 = scmp.ne.s32.totalorder %s29, %s31
    %p38 = scmp.eq.s32.totalorder %s14, 1
    %p39 = por %p37, %p38
    %p40 = scmp.ne.s32.totalorder %s31, %s32
    %p41 = scmp.eq.s32.totalorder %s14, 0
    %p42 = por %p40, %p41
    %p43 = scmp.ne.s32.totalorder %s31, %s32
    %p44 = scmp.eq.s32.totalorder %s15, 1
    %p45 = por %p43, %p44
    %p47 = scmp.ne.s32.totalorder %s32, %s46
    %p48 = scmp.eq.s32.totalorder %s15, 0
    %p49 = por %p47, %p48
    %s50 = ssub.s32 %s16, %s28
    %s51 = ssub.s32 %s17, %s24
    %s52 = sor.u32 %s50, %s51
    %p53 = scmp.eq.s32.totalorder %s52, 0
    %s55 = sadd.s32 %s54, 1
    %s56 = scalar_select %p53, %s54, %s55
    %p59 = pneg %p53
    %p60 = scmp.eq.s32.totalorder %s9, 1
    %p61 = por %p59, %p60
    %p62 = scmp.ne.s32.totalorder %s54, %s57
    %p63 = scmp.eq.s32.totalorder %s9, 0
    %p64 = por %p62, %p63
    %p65 = scmp.ne.s32.totalorder %s54, %s57
    %p66 = scmp.eq.s32.totalorder %s14, 1
    %p67 = por %p65, %p66
    %p68 = scmp.ne.s32.totalorder %s57, %s58
    %p69 = scmp.eq.s32.totalorder %s14, 0
    %p70 = por %p68, %p69
    %p71 = scmp.ne.s32.totalorder %s57, %s58
    %p72 = scmp.eq.s32.totalorder %s15, 1
    %p73 = por %p71, %p72
    %p75 = scmp.ne.s32.totalorder %s58, %s74
    %p76 = scmp.eq.s32.totalorder %s15, 0
    %p77 = por %p75, %p76
    %s79 = sadd.s32 %s78, 1
    %p82 = scmp.eq.s32.totalorder %s9, 1
    %p83 = scmp.ne.s32.totalorder %s78, %s80
    %p84 = scmp.eq.s32.totalorder %s9, 0
    %p85 = por %p83, %p84
    %p86 = scmp.ne.s32.totalorder %s78, %s80
    %p87 = scmp.eq.s32.totalorder %s14, 1
    %p88 = por %p86, %p87
    %p89 = scmp.ne.s32.totalorder %s80, %s81
    %p90 = scmp.eq.s32.totalorder %s14, 0
    %p91 = por %p89, %p90
    %p92 = scmp.ne.s32.totalorder %s80, %s81
    %p93 = scmp.eq.s32.totalorder %s15, 1
    %p94 = por %p92, %p93
    %p96 = scmp.ne.s32.totalorder %s81, %s95
    %p97 = scmp.eq.s32.totalorder %s15, 0
    %p98 = por %p96, %p97
    %s99 = ssub.s32 %s16, %s28
    %s100 = ssub.s32 %s17, %s24
    %s101 = sor.u32 %s99, %s100
    %p102 = scmp.eq.s32.totalorder %s101, 0
    %s104 = sadd.s32 %s103, 1
    %s105 = scalar_select %p102, %s103, %s104
    %p108 = pneg %p102
    %p109 = scmp.eq.s32.totalorder %s9, 1
    %p110 = por %p108, %p109
    %p111 = scmp.ne.s32.totalorder %s103, %s106
    %p112 = scmp.eq.s32.totalorder %s9, 0
    %p113 = por %p111, %p112
    %p114 = scmp.ne.s32.totalorder %s103, %s106
    %p115 = scmp.eq.s32.totalorder %s14, 1
    %p116 = por %p114, %p115
    %p117 = scmp.ne.s32.totalorder %s106, %s107
    %p118 = scmp.eq.s32.totalorder %s14, 0
    %p119 = por %p117, %p118
    %p120 = scmp.ne.s32.totalorder %s106, %s107
    %p121 = scmp.eq.s32.totalorder %s15, 1
    %p122 = por %p120, %p121
    %p124 = scmp.ne.s32.totalorder %s107, %s123
    %p125 = scmp.eq.s32.totalorder %s15, 0
    %p126 = por %p124, %p125
    %p127 = scmp.le.s32.totalorder 1, %s9
    %p128 = scmp.lt.s32.totalorder %s9, 3
    %p129 = pnand %p127, %p128
    %p130 = pneg %p129
    // Predicated region
    $region9: #{decoder_forward.13} parent=5 // pred_check
      _
    $region10: #{decoder_forward.13} parent=5 // pred_check_branch
      %132 = sbr.rel (%p129) target = $region12
    $region11: #{decoder_forward.13} parent=5 // pred_region
      %s133 = ssub.s32 %s9, 1
      // Predicated region
      $region13: #{decoder_forward.13} parent=11 // pred_check
        %p134 = pneg %p42
      $region14: #{decoder_forward.13} parent=11 // pred_check_branch
        %136 = sbr.rel (%p134) target = $region16
      $region15: #{decoder_forward.13} parent=11 // pred_region
        _
      $region16: #{decoder_forward.13} parent=11 // pred_fallthru
        _
      // Predicated region
      $region17: #{decoder_forward.13} parent=11 // pred_check
        %p137 = pneg %p91
      $region18: #{decoder_forward.13} parent=11 // pred_check_branch
        %139 = sbr.rel (%p137) target = $region20
      $region19: #{decoder_forward.13} parent=11 // pred_region
        _
      $region20: #{decoder_forward.13} parent=11 // pred_fallthru
        _
    $region12: #{decoder_forward.13} parent=5 // pred_fallthru
      _
    %p140 = scmp.lt.s32.totalorder %s9, 2
    // Predicated region
    $region21: #{decoder_forward.13} parent=5 // pred_check
      %p141 = pneg %p140
    $region22: #{decoder_forward.13} parent=5 // pred_check_branch
      %143 = sbr.rel (%p141) target = $region24
    $region23: #{decoder_forward.13} parent=5 // pred_region
      // Predicated region
      $region25: #{decoder_forward.13} parent=23 // pred_check
        %p144 = pneg %p64
      $region26: #{decoder_forward.13} parent=23 // pred_check_branch
        %146 = sbr.rel (%p144) target = $region28
      $region27: #{decoder_forward.13} parent=23 // pred_region
        %s147 = smul.u32 3, %s17
        %p148 = scmp.lt.s32.totalorder %s16, 1
        %s149 = scalar_select %p148, %s16, 1
        %p150 = scmp.lt.s32.totalorder %s147, 2
        %s151 = scalar_select %p150, %s147, 2
        %s152 = smul.addr %s149, 24
        %s153 = sadd.s32 %s151, %s152
        %s154 = smul.addr %s153, 4
        %s155 = scalar_lea.vmem %s1, %s154
        %s156 = smul.u32 3, %s17
      $region28: #{decoder_forward.13} parent=23 // pred_fallthru
        _
    $region24: #{decoder_forward.13} parent=5 // pred_fallthru
      _
    %p157 = scmp.le.s32.totalorder 1, %s9
    %p158 = scmp.lt.s32.totalorder %s9, 3
    %p159 = pnand %p157, %p158
    %p160 = pneg %p159
    // Predicated region
    $region29: #{decoder_forward.13} parent=5 // pred_check
      _
    $region30: #{decoder_forward.13} parent=5 // pred_check_branch
      %162 = sbr.rel (%p159) target = $region32
    $region31: #{decoder_forward.13} parent=5 // pred_region
      %s163 = ssub.s32 %s9, 1
      %p164 = pneg %p42
      %p165 = pneg %p39
      %s166 = smul.u32 3, %s19
      %p167 = scmp.lt.s32.totalorder %s18, 1
      %s168 = scalar_select %p167, %s18, 1
      %p169 = scmp.lt.s32.totalorder %s166, 2
      %s170 = scalar_select %p169, %s166, 2
      %s171 = smul.addr %s168, 24
      %s172 = sadd.s32 %s170, %s171
      %s173 = smul.addr %s172, 4
      %s174 = scalar_lea.vmem %s1, %s173
      %p175 = pneg %p70
      %p176 = pneg %p67
      %p177 = pneg %p91
      %p178 = pneg %p88
      %p179 = pneg %p119
      %p180 = pneg %p116
      %s181 = smul.u32 3, %s19
      %p182 = scmp.lt.s32.totalorder %s18, 1
      %s183 = scalar_select %p182, %s18, 1
      %p184 = scmp.lt.s32.totalorder %s181, 2
      %s185 = scalar_select %p184, %s181, 2
      %s186 = smul.addr %s183, 3
      %s187 = sadd.s32 %s185, %s186
      %s188 = smul.addr %s187, 8
      %s189 = scalar_lea.vmem %s3, %s188
      %s190 = smul.u32 3, %s19
      %p191 = scmp.lt.s32.totalorder %s18, 1
      %s192 = scalar_select %p191, %s18, 1
      %p193 = scmp.lt.s32.totalorder %s190, 2
      %s194 = scalar_select %p193, %s190, 2
      %s195 = smul.addr %s192, 24
      %s196 = sadd.s32 %s194, %s195
      %s197 = smul.addr %s196, 4
      %s198 = scalar_lea.vmem %s1, %s197
      %s199 = smul.u32 3, %s19
      %s200 = smul.u32 3, %s19
      %p201 = scmp.lt.s32.totalorder %s18, 1
      %s202 = scalar_select %p201, %s18, 1
      %p203 = scmp.lt.s32.totalorder %s200, 2
      %s204 = scalar_select %p203, %s200, 2
      %s205 = smul.addr %s202, 3
      %s206 = sadd.s32 %s204, %s205
      %s207 = smul.addr %s206, 8
      %s208 = scalar_lea.vmem %s3, %s207
      %s209 = smul.u32 3, %s19
      %v211 = vld [vmem:[%s0] sm:$0xf]
      %v212 = vld [vmem:[%s198] sm:$0xff]
      %v213 = vld [vmem:[%s198 + $0x8] sm:$0xf]
      %v214 = vld [vmem:[%s198 + $0xc] sm:$0xff]
      %v215 = vld [vmem:[%s198 + $0x14] sm:$0xf]
      %v216 = vld [vmem:[%s198 + $0x18] sm:$0xff]
      %v217 = vld [vmem:[%s198 + $0x20] sm:$0xf]
      %v218 = vld [vmem:[%s198 + $0x24] sm:$0xff]
      %v219 = vld [vmem:[%s198 + $0x2c] sm:$0xf]
      %v220 = vld [vmem:[%s198 + $0x30] sm:$0xff]
      %v221 = vld [vmem:[%s198 + $0x38] sm:$0xf]
      %v222 = vld [vmem:[%s198 + $0x3c] sm:$0xff]
      %v223 = vld [vmem:[%s198 + $0x44] sm:$0xf]
      %v224 = vld [vmem:[%s198 + $0x48] sm:$0xff]
      %v225 = vld [vmem:[%s198 + $0x50] sm:$0xf]
      %v226 = vld [vmem:[%s198 + $0x54] sm:$0xff]
      %v227 = vld [vmem:[%s198 + $0x5c] sm:$0xf]
      %v228 = vld [vmem:[%s2] sm:$0xff]
      %230 = vset.pattern.permute.xlu0 0
      %231 = vperm.xlu0 %230, %v228
      %v232 = vpop.permute.xlu0 %231
      %v250 = vunpack.c.l.b16 %v212
      %v251 = vunpack.c.h.b16 %v212
      %v252 = vunpack.c.l.b16 %v213
      %v253 = vunpack.c.l.b16 %v214
      %v254 = vunpack.c.h.b16 %v214
      %v255 = vunpack.c.l.b16 %v215
      %v256 = vunpack.c.l.b16 %v216
      %v257 = vunpack.c.h.b16 %v216
      %v258 = vunpack.c.l.b16 %v217
      %v259 = vunpack.c.l.b16 %v218
      %v260 = vunpack.c.h.b16 %v218
      %v261 = vunpack.c.l.b16 %v219
      %v262 = vunpack.c.l.b16 %v220
      %v263 = vunpack.c.h.b16 %v220
      %v264 = vunpack.c.l.b16 %v221
      %v265 = vunpack.c.l.b16 %v222
      %v266 = vunpack.c.h.b16 %v222
      %v267 = vunpack.c.l.b16 %v223
      %v268 = vunpack.c.l.b16 %v224
      %v269 = vunpack.c.h.b16 %v224
      %v270 = vunpack.c.l.b16 %v225
      %v271 = vunpack.c.l.b16 %v226
      %v272 = vunpack.c.h.b16 %v226
      %v273 = vunpack.c.l.b16 %v227
      %v274 = vpack.c.b16 %v253, %v250
      %v275 = vpack.c.b16 %v254, %v251
      %v276 = vpack.c.b16 %v255, %v252
      %v277 = vpack.c.b16 %v259, %v256
      %v278 = vpack.c.b16 %v260, %v257
      %v279 = vpack.c.b16 %v261, %v258
      %v280 = vpack.c.b16 %v265, %v262
      %v281 = vpack.c.b16 %v266, %v263
      %v282 = vpack.c.b16 %v267, %v264
      %v283 = vpack.c.b16 %v271, %v268
      %v284 = vpack.c.b16 %v272, %v269
      %v285 = vpack.c.b16 %v273, %v270
      %vm298 = vcmask 523264
      %v300 = vsel %vm298, %v211, 0
      %302 = vmatprep.subr.bf16.mxu0 %v275
      %303 = vmatpush1.bf16.msra.mxu0 %v274
      %304 = vmatprep.subr.bf16.mxu0 %v278
      %305 = vmatpush1.bf16.msra.mxu0 %v277
      %306 = vmatprep.subr.bf16.mxu0 %v281
      %307 = vmatpush1.bf16.msra.mxu0 %v280
      %308 = vmatprep.subr.bf16.mxu0 %v284
      %309 = vmatpush1.bf16.msra.mxu0 %v283
      %310 = vmatprep.subr.bf16.mxu0 0
      %311 = vmatpush1.bf16.msra.mxu0 0
      %312 = vmatprep.subr.bf16.mxu0 0
      %313 = vmatpush1.bf16.msra.mxu0 0
      %314 = vmatprep.subr.bf16.mxu0 0
      %315 = vmatpush1.bf16.msra.mxu0 0
      %316 = vmatprep.subr.bf16.mxu0 0
      %317 = vmatpush1.bf16.msra.mxu0 0
      %318 = vmatprep.subr.bf16.mxu0 0
      %319 = vmatpush1.bf16.msra.mxu0 0
      %320 = vmatprep.subr.bf16.mxu0 0
      %321 = vmatpush1.bf16.msra.mxu0 0
      %322 = vmatprep.subr.bf16.mxu0 0
      %323 = vmatpush1.bf16.msra.mxu0 0
      %324 = vmatprep.subr.bf16.mxu0 0
      %325 = vmatpush1.bf16.msra.mxu0 0
      %326 = vmatprep.subr.bf16.mxu0 0
      %327 = vmatpush1.bf16.msra.mxu0 0
      %328 = vmatprep.subr.bf16.mxu0 0
      %329 = vmatpush1.bf16.msra.mxu0 0
      %330 = vmatprep.subr.bf16.mxu0 0
      %331 = vmatpush1.bf16.msra.mxu0 0
      %332 = vmatprep.subr.bf16.mxu0 0
      %333 = vmatpush1.bf16.msra.mxu0 0
      %334 = vmatprep.mubr.bf16.mxu0 0
      %335 = vmatmul.mubr.bf16.gmra.mrb[0].mxu0 %v300
      %v336 = vpop.f32.mrb[0].mxu0
      %v337 = vadd.f32 %v232, %v336
      %v338 = vpop.f32.mrb[0].mxu0
      %v339 = vadd.f32 %v232, %v338
      %v340 = vpop.f32.mrb[0].mxu0
      %v341 = vpop.f32.mrb[0].mxu0
      %342 = vdwg.mxu0
      %343 = vmatprep.subr.bf16.mxu0 0
      %344 = vmatpush1.bf16.msra.mxu0 %v276
      %345 = vmatprep.subr.bf16.mxu0 0
      %346 = vmatpush1.bf16.msra.mxu0 %v279
      %347 = vmatprep.subr.bf16.mxu0 0
      %348 = vmatpush1.bf16.msra.mxu0 %v282
      %349 = vmatprep.subr.bf16.mxu0 0
      %350 = vmatpush1.bf16.msra.mxu0 %v285
      %351 = vmatprep.subr.bf16.mxu0 0
      %352 = vmatpush1.bf16.msra.mxu0 0
      %353 = vmatprep.subr.bf16.mxu0 0
      %354 = vmatpush1.bf16.msra.mxu0 0
      %355 = vmatprep.subr.bf16.mxu0 0
      %356 = vmatpush1.bf16.msra.mxu0 0
      %357 = vmatprep.subr.bf16.mxu0 0
      %358 = vmatpush1.bf16.msra.mxu0 0
      %359 = vmatprep.subr.bf16.mxu0 0
      %360 = vmatpush1.bf16.msra.mxu0 0
      %361 = vmatprep.subr.bf16.mxu0 0
      %362 = vmatpush1.bf16.msra.mxu0 0
      %363 = vmatprep.subr.bf16.mxu0 0
      %364 = vmatpush1.bf16.msra.mxu0 0
      %365 = vmatprep.subr.bf16.mxu0 0
      %366 = vmatpush1.bf16.msra.mxu0 0
      %367 = vmatprep.subr.bf16.mxu0 0
      %368 = vmatpush1.bf16.msra.mxu0 0
      %369 = vmatprep.subr.bf16.mxu0 0
      %370 = vmatpush1.bf16.msra.mxu0 0
      %371 = vmatprep.subr.bf16.mxu0 0
      %372 = vmatpush1.bf16.msra.mxu0 0
      %373 = vmatprep.subr.bf16.mxu0 0
      %374 = vmatpush1.bf16.msra.mxu0 0
      %375 = vmatprep.mubr.bf16.mxu0 0
      %376 = vmatmul.mubr.bf16.gmra.mrb[0].mxu0 %v300
      %v377 = vpop.f32.mrb[0].mxu0
      %v378 = vadd.f32 %v232, %v377
      %v379 = vpop.f32.mrb[0].mxu0
      %v380 = vpop.f32.mrb[0].mxu0
      %v381 = vpop.f32.mrb[0].mxu0
      %382 = vdwg.mxu0
      %v383 = vtanh.pop %v337
      %v384 = vtanh.pop %v339
      %v385 = vtanh.pop %v378
      %386 = vst [vmem:[%s208] sm:$0xff] %v383
      %387 = vst [vmem:[%s208 + $0x8] sm:$0xff] %v384
      %388 = vst [vmem:[%s208 + $0x10] sm:$0xff] %v385
      %s389 = smul.u32 3, %s19
      %p390 = scmp.lt.s32.totalorder %s18, 1
      %s391 = scalar_select %p390, %s18, 1
      %p392 = scmp.lt.s32.totalorder %s389, 2
      %s393 = scalar_select %p392, %s389, 2
      %s394 = smul.addr %s391, 3
      %s395 = sadd.s32 %s393, %s394
      %s396 = smul.addr %s395, 8
      %s397 = scalar_lea.vmem %s3, %s396
      // Predicated region
      $region33: #{decoder_forward.13} parent=31 // pred_check
        %p398 = pneg %p116
      $region34: #{decoder_forward.13} parent=31 // pred_check_branch
        %400 = sbr.rel (%p398) target = $region36
      $region35: #{decoder_forward.13} parent=31 // pred_region
        %s401 = smul.u32 3, %s19
      $region36: #{decoder_forward.13} parent=31 // pred_fallthru
        _
    $region32: #{decoder_forward.13} parent=5 // pred_fallthru
      _
    %p402 = scmp.le.s32.totalorder 2, %s9
    // Predicated region
    $region37: #{decoder_forward.13} parent=5 // pred_check
      %p403 = pneg %p402
    $region38: #{decoder_forward.13} parent=5 // pred_check_branch
      %405 = sbr.rel (%p403) target = $region40
    $region39: #{decoder_forward.13} parent=5 // pred_region
      %s406 = ssub.s32 %s9, 2
      // Predicated region
      $region41: #{decoder_forward.13} parent=39 // pred_check
        %p407 = pneg %p122
      $region42: #{decoder_forward.13} parent=39 // pred_check_branch
        %409 = sbr.rel (%p407) target = $region44
      $region43: #{decoder_forward.13} parent=39 // pred_region
        %s410 = smul.u32 3, %s21
        %p411 = scmp.lt.s32.totalorder %s20, 1
        %s412 = scalar_select %p411, %s20, 1
        %p413 = scmp.lt.s32.totalorder %s410, 2
        %s414 = scalar_select %p413, %s410, 2
        %s415 = smul.addr %s412, 3
        %s416 = sadd.s32 %s414, %s415
        %s417 = smul.addr %s416, 8
        %s418 = scalar_lea.vmem %s3, %s417
      $region44: #{decoder_forward.13} parent=39 // pred_fallthru
        _
    $region40: #{decoder_forward.13} parent=5 // pred_fallthru
      _
  $region6: #{decoder_forward.13} parent=0 // loop_footer
    %s13 = sadd.s32 1, %s9
  $region7: #{decoder_forward.13} parent=0 // loop_footer_branch
    %8 = sbr.rel target = $region3
  $region8: #{decoder_forward.13} parent=0 // loop_exit
    _

</llo_original>
